<compile_context>
chip_gen: v7x
topology: tpu7x:2x2x1
jax: 0.10.0
libtpu: 0.0.40
codegen_flags: <defaults>
</compile_context>

<pallas_src>
import functools
import math

import jax
import jax.numpy as jnp
from jax.experimental import pallas as pl
from jax.experimental.pallas import tpu as pltpu

# ----------------------- model hyper-params (small, consistent with module) -------------
D_MODEL = 32          # d_model == dim_feedforward of TransformerModel (small demo size)
NHEAD = 4
HEAD_DIM = D_MODEL // NHEAD
FF = D_MODEL
KSIZE = 36
OUT_PAD = 20
EPS = 1e-5
SCALE = 1.0 / math.sqrt(HEAD_DIM)
F32 = jnp.float32


# ----------------- shared math (used by the Pallas kernel AND the pure-JAX ref) ----------
# Params are indexed with `[...]`, which works identically on Pallas Ref views (in-kernel)
# and on plain jnp arrays (reference), so kernel and reference share the structural code.
# Only the attention inner math differs (consolidated in-kernel vs. naive in the reference).

def _ln(x, g, b):
    mu = jnp.mean(x, axis=-1, keepdims=True)
    xc = x - mu
    var = jnp.mean(xc * xc, axis=-1, keepdims=True)
    return xc * jax.lax.rsqrt(var + EPS) * g + b


def _attention_fused(q, k, v, wo, bo, *, head_mask, blk_ones, recip):
    """Consolidated multi-head attention for ONE sequence (q,k,v: (S, D_MODEL)).

    head_mask: (NHEAD*S, D_MODEL), 1 where row-block h matches column head h.
    blk_ones : (NHEAD*S, NHEAD*S), 1 where both indices are in the same head block.
    4 MXU ops total (scores, denom, PV, output projection); head outputs land already
    lane-concatenated in head order so no concat/transpose is needed.
    """
    kb = jnp.concatenate([k] * NHEAD, axis=0) * head_mask        # (NHEAD*S, D)
    vb = jnp.concatenate([v] * NHEAD, axis=0) * head_mask        # (NHEAD*S, D)
    s = jax.lax.dot_general(q, kb, (((1,), (1,)), ((), ())),
                            preferred_element_type=F32) * SCALE  # (S, NHEAD*S)
    # Global row max (>= every per-head max) keeps exponents <= 0; softmax within a
    # head block is invariant to the shared shift, so this is exact.
    e = jnp.exp(s - jnp.max(s, axis=-1, keepdims=True))
    denom = jnp.dot(e, blk_ones, preferred_element_type=F32)     # per-head sums, broadcast
    p = e * recip(denom)
    o = jnp.dot(p, vb, preferred_element_type=F32)               # (S, D), head-major lanes
    return jnp.dot(o, wo, preferred_element_type=F32) + bo


def _attention_ref(q, k, v, wo, bo):
    """Naive per-head attention (exact softmax) -- reference only, never lowered to Pallas."""
    outs = []
    for h in range(NHEAD):
        c = h * HEAD_DIM
        qh, kh, vh = q[:, c:c + HEAD_DIM], k[:, c:c + HEAD_DIM], v[:, c:c + HEAD_DIM]
        s = jnp.dot(qh, kh.T) * SCALE
        e = jnp.exp(s - jnp.max(s, axis=-1, keepdims=True))
        p = e / jnp.sum(e, axis=-1, keepdims=True)
        outs.append(jnp.dot(p, vh))
    return jnp.dot(jnp.concatenate(outs, axis=-1), wo) + bo


def _self_attn(x, lp, attn, seq):
    # fused QKV projection over ALL stacked rows: (Bblk*S, 32) @ (32, 96)
    qkv = jnp.dot(x, lp["wqkv"][...], preferred_element_type=F32) + lp["bqkv"][...]
    nb = x.shape[0] // seq
    outs = []
    for b in range(nb):                                   # attention is per-sequence
        r = qkv[b * seq:(b + 1) * seq]
        outs.append(attn(r[:, :D_MODEL], r[:, D_MODEL:2 * D_MODEL], r[:, 2 * D_MODEL:],
                         lp["wo"][...], lp["bo"][...]))
    return outs[0] if nb == 1 else jnp.concatenate(outs, axis=0)


def _cross_attn(x, mem, lp, attn, seq):
    q_all = jnp.dot(x, lp["wq"][...], preferred_element_type=F32) + lp["bq"][...]
    # fused KV projection: (Bblk*S, 32) @ (32, 64)
    kv_all = jnp.dot(mem, lp["wkv"][...], preferred_element_type=F32) + lp["bkv"][...]
    nb = x.shape[0] // seq
    outs = []
    for b in range(nb):
        q = q_all[b * seq:(b + 1) * seq]
        kv = kv_all[b * seq:(b + 1) * seq]
        outs.append(attn(q, kv[:, :D_MODEL], kv[:, D_MODEL:],
                         lp["wo"][...], lp["bo"][...]))
    return outs[0] if nb == 1 else jnp.concatenate(outs, axis=0)


def _ffn(x, lp):
    h = jnp.maximum(jnp.dot(x, lp["w1"][...], preferred_element_type=F32) + lp["b1"][...], 0.0)
    return jnp.dot(h, lp["w2"][...], preferred_element_type=F32) + lp["b2"][...]


def _enc_layer(x, lp, attn, seq):
    x = _ln(x + _self_attn(x, lp["sa"], attn, seq), lp["n1g"][...], lp["n1b"][...])
    return _ln(x + _ffn(x, lp), lp["n2g"][...], lp["n2b"][...])


def _dec_layer(x, mem, lp, attn, seq):
    x = _ln(x + _self_attn(x, lp["sa"], attn, seq), lp["n1g"][...], lp["n1b"][...])
    x = _ln(x + _cross_attn(x, mem, lp["ca"], attn, seq), lp["n2g"][...], lp["n2b"][...])
    return _ln(x + _ffn(x, lp), lp["n3g"][...], lp["n3b"][...])


def _transformer_stack(x_blk, p, attn, seq):
    """x_blk: (Bblk*S, 36) stacked conv1 patches. Returns sigmoid(conv2) slab (Bblk*S, 36)."""
    # conv1 (stride == kernel -> patch matmul) + ReLU, all rows at once
    h = jnp.maximum(jnp.dot(x_blk, p["conv1_w"][...], preferred_element_type=F32)
                    + p["conv1_b"][...], 0.0)                                   # (Bblk*S, D)
    # encoder: 2 post-LN layers + final LayerNorm
    mem = h
    for lp in p["enc"]:
        mem = _enc_layer(mem, lp, attn, seq)
    mem = _ln(mem, p["enc_ng"][...], p["enc_nb"][...])
    # decoder: 2 post-LN layers + final LayerNorm (tgt == src: transformer(x, x))
    out = h
    for lp in p["dec"]:
        out = _dec_layer(out, mem, lp, attn, seq)
    out = _ln(out, p["dec_ng"][...], p["dec_nb"][...])
    # conv2 (ConvTranspose1d, stride == kernel) + sigmoid (single EUP tanh, exactly bounded)
    y = jnp.dot(out, p["conv2_w"][...], preferred_element_type=F32) + p["conv2_b"][...]
    return 0.5 * (jnp.tanh(0.5 * y) + 1.0)                                      # (Bblk*S, 36)


# ------------------------------- parameter slab packing ---------------------------------
def _round_up(n, m):
    return -(-n // m) * m


def pack_params(params, seq):
    """Pack all parameter leaves + the two static attention masks into ONE (rows, 128) f32
    slab (each leaf 8-row aligned) so the kernel needs a single weight DMA."""
    assert NHEAD * seq <= 128, "block-diag attention needs NHEAD*S <= 128 (see TODO)"
    flat, treedef = jax.tree_util.tree_flatten(params)

    ns = NHEAD * seq
    hrow = jnp.arange(ns) // seq                                 # head index per stacked row
    hcol = jnp.arange(D_MODEL) // HEAD_DIM                       # head index per lane
    head_mask = (hrow[:, None] == hcol[None, :]).astype(F32)     # (NHEAD*S, D_MODEL)
    blk_ones = (hrow[:, None] == hrow[None, :]).astype(F32)      # (NHEAD*S, NHEAD*S)

    leaves = flat + [head_mask, blk_ones]
    layout, off = [], 0
    for leaf in leaves:
        r, c = leaf.shape
        layout.append((off, r, c))
        off += _round_up(r, 8)
    slab = jnp.zeros((max(off, 8), 128), F32)
    for (o, r, c), leaf in zip(layout, leaves):
        slab = slab.at[o:o + r, :c].set(leaf.astype(F32))
    return slab, treedef, tuple(layout)


# ----------------------------------- fused Pallas kernel --------------------------------
def _fused_kernel(x_ref, slab_ref, o_ref, *, treedef, layout, seq, bblk):
    # Zero-cost static views into the single weight slab (loads happen at use sites).
    views = [slab_ref.at[o:o + r, 0:c] for (o, r, c) in layout]
    head_mask = views[-2][...]
    blk_ones = views[-1][...]
    p = jax.tree_util.tree_unflatten(treedef, views[:-2])

    recip = lambda t: pl.reciprocal(t, approx=True)              # EUP slot
    attn = functools.partial(_attention_fused, head_mask=head_mask,
                             blk_ones=blk_ones, recip=recip)

    y = _transformer_stack(x_ref[...], p, attn, seq)             # (bblk*seq, 36)

    # output_padding region: no input taps contribute -> sigmoid(bias) only
    tail = 0.5 * (jnp.tanh(0.5 * p["conv2_b"][...]) + 1.0)       # (1, 1)
    tail_row = jnp.zeros((1, OUT_PAD), F32) + tail               # (1, 20)

    # Lane-major store: row i of sequence b lands at lanes [i*36, (i+1)*36) of output row b,
    # tail bias fills the last OUT_PAD lanes -> no wrapper reshape/pad pass over the output.
    for b in range(bblk):
        for i in range(seq):
            r = b * seq + i
            o_ref[b, 0:1, i * KSIZE:(i + 1) * KSIZE] = y[r:r + 1, :]
        o_ref[b, 0:1, seq * KSIZE:seq * KSIZE + OUT_PAD] = tail_row


@functools.partial(jax.jit, static_argnums=(2, 3))
def forward(x, slab, layout, treedef):
    B, L = x.shape
    S = L // KSIZE
    L_OUT = S * KSIZE + OUT_PAD

    # Batch block per grid step: keep the grid divisible by 2 (both TensorCores on v7x)
    # while stacking Bblk*S rows for the shared-weight matmuls; fall back to one grid step
    # (block == full array) when that would break the (8, ...) block constraint.
    if B % 2 == 0 and ((B // 2) * S) % 8 == 0:
        bblk = B // 2
    else:
        bblk = B
    grid = B // bblk

    xp = x.reshape(B * S, KSIZE)          # conv1 patches, rows stacked (free reshape)

    y = pl.pallas_call(
        functools.partial(_fused_kernel, treedef=treedef, layout=layout, seq=S, bblk=bblk),
        out_shape=jax.ShapeDtypeStruct((B, 1, L_OUT), F32),
        grid=(grid,),
        in_specs=[
            pl.BlockSpec((bblk * S, KSIZE), lambda i: (i, 0)),
            pl.BlockSpec(slab.shape, lambda i: (0, 0)),    # single resident weight slab
        ],
        out_specs=pl.BlockSpec((bblk, 1, L_OUT), lambda i: (i, 0, 0)),
        compiler_params=pltpu.CompilerParams(dimension_semantics=("parallel",)),
    )(xp, slab)

    return y.reshape(B, L_OUT)


# ---------------------------------- pure-JAX reference ----------------------------------
@jax.jit
def forward_reference(x, params):
    B, L = x.shape
    S = L // KSIZE
    xp = x.reshape(B * S, KSIZE)
    y = _transformer_stack(xp, params, _attention_ref, S)        # naive per-head attention
    y = y.reshape(B, S * KSIZE)
    tail = 0.5 * (jnp.tanh(0.5 * params["conv2_b"][0, 0]) + 1.0)
    return jnp.concatenate([y, jnp.full((B, OUT_PAD), tail, F32)], axis=1)


# ----------------------------------- parameter init -------------------------------------
def _w(key, shape, scale=0.05):
    return scale * jax.random.normal(key, shape, dtype=F32)


def _zeros(shape):
    return jnp.zeros(shape, F32)


def _ones(shape):
    return jnp.ones(shape, F32)


def _init_self_attn(key):
    k1, k2 = jax.random.split(key)
    return {"wqkv": _w(k1, (D_MODEL, 3 * D_MODEL)), "bqkv": _zeros((1, 3 * D_MODEL)),
            "wo": _w(k2, (D_MODEL, D_MODEL)), "bo": _zeros((1, D_MODEL))}


def _init_cross_attn(key):
    k1, k2, k3 = jax.random.split(key, 3)
    return {"wq": _w(k1, (D_MODEL, D_MODEL)), "bq": _zeros((1, D_MODEL)),
            "wkv": _w(k2, (D_MODEL, 2 * D_MODEL)), "bkv": _zeros((1, 2 * D_MODEL)),
            "wo": _w(k3, (D_MODEL, D_MODEL)), "bo": _zeros((1, D_MODEL))}


def _init_enc_layer(key):
    k1, k2, k3 = jax.random.split(key, 3)
    return {"sa": _init_self_attn(k1),
            "n1g": _ones((1, D_MODEL)), "n1b": _zeros((1, D_MODEL)),
            "w1": _w(k2, (D_MODEL, FF)), "b1": _zeros((1, FF)),
            "w2": _w(k3, (FF, D_MODEL)), "b2": _zeros((1, D_MODEL)),
            "n2g": _ones((1, D_MODEL)), "n2b": _zeros((1, D_MODEL))}


def _init_dec_layer(key):
    k1, k2, k3, k4 = jax.random.split(key, 4)
    return {"sa": _init_self_attn(k1),
            "n1g": _ones((1, D_MODEL)), "n1b": _zeros((1, D_MODEL)),
            "ca": _init_cross_attn(k2),
            "n2g": _ones((1, D_MODEL)), "n2b": _zeros((1, D_MODEL)),
            "w1": _w(k3, (D_MODEL, FF)), "b1": _zeros((1, FF)),
            "w2": _w(k4, (FF, D_MODEL)), "b2": _zeros((1, D_MODEL)),
            "n3g": _ones((1, D_MODEL)), "n3b": _zeros((1, D_MODEL))}


def init_params(key):
    ks = jax.random.split(key, 8)
    return {
        # conv1: Conv1d(1, D, k=36, s=36) -> patch matmul weight (36, D) + bias
        "conv1_w": _w(ks[0], (KSIZE, D_MODEL)),
        "conv1_b": _w(ks[1], (1, D_MODEL)),
        "enc": [_init_enc_layer(ks[2]), _init_enc_layer(ks[3])],
        "enc_ng": _ones((1, D_MODEL)), "enc_nb": _zeros((1, D_MODEL)),
        "dec": [_init_dec_layer(ks[4]), _init_dec_layer(ks[5])],
        "dec_ng": _ones((1, D_MODEL)), "dec_nb": _zeros((1, D_MODEL)),
        # conv2: ConvTranspose1d(D, 1, k=36, s=36, output_padding=20)
        "conv2_w": _w(ks[6], (D_MODEL, KSIZE)),
        "conv2_b": _w(ks[7], (1, 1)),
    }


# -------------------------------------- main ---------------------------------------------
if __name__ == "__main__":
    key = jax.random.PRNGKey(0)
    pkey, xkey = jax.random.split(key)

    B, S = 2, 8
    L = S * KSIZE                      # 288 -> output length 308

    params = init_params(pkey)
    x = jax.random.uniform(xkey, (B, L), dtype=F32)

    slab, treedef, layout = pack_params(params, S)   # packed once, outside jit

    y = jax.block_until_ready(forward(x, slab, layout, treedef))
    y_ref = jax.block_until_ready(forward_reference(x, params))

    assert y.shape == (B, S * KSIZE + OUT_PAD), y.shape
    assert bool(jnp.all(jnp.isfinite(y)))
    # tanh-form sigmoid is bounded in [0, 1] (tiny slack for f32 rounding only)
    assert bool(jnp.all((y >= -1e-6) & (y <= 1.0 + 1e-6)))
    err = float(jnp.max(jnp.abs(y - y_ref)))
    assert err < 1e-2, f"kernel vs pure-JAX reference max abs diff = {err}"
    print("KERNEL_OK")
</pallas_src>

<mosaic_0001>
module attributes {stable_mosaic.version = 11 : i64} {
  func.func @_fused_kernel(%arg0: i32, %arg1: memref<8x36xf32, #tpu.memory_space<vmem>>, %arg2: memref<1224x128xf32, #tpu.memory_space<vmem>>, %arg3: memref<1x1x308xf32, #tpu.memory_space<vmem>>) attributes {dimension_semantics = [#tpu.dimension_semantics<parallel>], iteration_bounds = array<i64: 2>, scalar_prefetch = 0 : i64, scratch_operands = 0 : i64, tpu.core_type = #tpu.core_type<tc>, window_params = [{transform_indices = @transform_0, window_bounds = array<i64: 8, 36>}, {pipeline_mode = #tpu.pipeline_mode<synchronous>, transform_indices = @transform_1, window_bounds = array<i64: 1224, 128>}, {transform_indices = @transform_2, window_bounds = array<i64: 1, 1, 308>}]} {
    %c1160 = arith.constant 1160 : index
    %c0 = arith.constant 0 : index
    %0 = vector.load %arg2[%c1160, %c0] : memref<1224x128xf32, #tpu.memory_space<vmem>>, vector<32x32xf32>
    %c1192 = arith.constant 1192 : index
    %c0_0 = arith.constant 0 : index
    %1 = vector.load %arg2[%c1192, %c0_0] : memref<1224x128xf32, #tpu.memory_space<vmem>>, vector<32x32xf32>
    %c0_1 = arith.constant 0 : index
    %c0_2 = arith.constant 0 : index
    %2 = vector.load %arg1[%c0_1, %c0_2] : memref<8x36xf32, #tpu.memory_space<vmem>>, vector<8x36xf32>
    %c8 = arith.constant 8 : index
    %c0_3 = arith.constant 0 : index
    %3 = vector.load %arg2[%c8, %c0_3] : memref<1224x128xf32, #tpu.memory_space<vmem>>, vector<36x32xf32>
    %cst = arith.constant dense<0.000000e+00> : vector<8x32xf32>
    %4 = tpu.matmul %2, %3, %cst {dimension_numbers = #tpu.dot_dimension_numbers<[1], [0], [0], [1], [0, 0, 1, 1], [], []>} : vector<8x36xf32>, vector<36x32xf32>, vector<8x32xf32> -> vector<8x32xf32>
    %c0_4 = arith.constant 0 : index
    %c0_5 = arith.constant 0 : index
    %5 = vector.load %arg2[%c0_4, %c0_5] : memref<1224x128xf32, #tpu.memory_space<vmem>>, vector<1x32xf32>
    %6 = vector.broadcast %5 : vector<1x32xf32> to vector<8x32xf32>
    %7 = arith.addf %4, %6 : vector<8x32xf32>
    %cst_6 = arith.constant 0.000000e+00 : f32
    %8 = vector.broadcast %cst_6 : f32 to vector<8x32xf32>
    %9 = arith.maximumf %7, %8 : vector<8x32xf32>
    %c856 = arith.constant 856 : index
    %c0_7 = arith.constant 0 : index
    %10 = vector.load %arg2[%c856, %c0_7] : memref<1224x128xf32, #tpu.memory_space<vmem>>, vector<32x96xf32>
    %cst_8 = arith.constant dense<0.000000e+00> : vector<8x96xf32>
    %11 = tpu.matmul %9, %10, %cst_8 {dimension_numbers = #tpu.dot_dimension_numbers<[1], [0], [0], [1], [0, 0, 1, 1], [], []>} : vector<8x32xf32>, vector<32x96xf32>, vector<8x96xf32> -> vector<8x96xf32>
    %c816 = arith.constant 816 : index
    %c0_9 = arith.constant 0 : index
    %12 = vector.load %arg2[%c816, %c0_9] : memref<1224x128xf32, #tpu.memory_space<vmem>>, vector<1x96xf32>
    %13 = vector.broadcast %12 : vector<1x96xf32> to vector<8x96xf32>
    %14 = arith.addf %11, %13 : vector<8x96xf32>
    %15 = vector.extract_strided_slice %14 {offsets = [0, 0], sizes = [8, 32], strides = [1, 1]} : vector<8x96xf32> to vector<8x32xf32>
    %16 = vector.extract_strided_slice %14 {offsets = [0, 32], sizes = [8, 32], strides = [1, 1]} : vector<8x96xf32> to vector<8x32xf32>
    %17 = vector.extract_strided_slice %14 {offsets = [0, 64], sizes = [8, 32], strides = [1, 1]} : vector<8x96xf32> to vector<8x32xf32>
    %c824 = arith.constant 824 : index
    %c0_10 = arith.constant 0 : index
    %18 = vector.load %arg2[%c824, %c0_10] : memref<1224x128xf32, #tpu.memory_space<vmem>>, vector<32x32xf32>
    %c808 = arith.constant 808 : index
    %c0_11 = arith.constant 0 : index
    %19 = vector.load %arg2[%c808, %c0_11] : memref<1224x128xf32, #tpu.memory_space<vmem>>, vector<1x32xf32>
    %20 = tpu.concatenate %16, %16, %16, %16 in 0 : vector<8x32xf32>, vector<8x32xf32>, vector<8x32xf32>, vector<8x32xf32> -> vector<32x32xf32>
    %21 = arith.mulf %20, %0 : vector<32x32xf32>
    %22 = tpu.concatenate %17, %17, %17, %17 in 0 : vector<8x32xf32>, vector<8x32xf32>, vector<8x32xf32>, vector<8x32xf32> -> vector<32x32xf32>
    %23 = arith.mulf %22, %0 : vector<32x32xf32>
    %cst_12 = arith.constant dense<0.000000e+00> : vector<8x32xf32>
    %24 = tpu.matmul %15, %21, %cst_12 {dimension_numbers = #tpu.dot_dimension_numbers<[1], [1], [0], [0], [0, 0, 1, 0], [], []>} : vector<8x32xf32>, vector<32x32xf32>, vector<8x32xf32> -> vector<8x32xf32>
    %cst_13 = arith.constant 0.353553385 : f32
    %25 = vector.broadcast %cst_13 : f32 to vector<8x32xf32>
    %26 = arith.mulf %24, %25 : vector<8x32xf32>
    %cst_14 = arith.constant dense<0xFF800000> : vector<8xf32>
    %27 = vector.multi_reduction <maximumf>, %26, %cst_14 [1] : vector<8x32xf32> to vector<8xf32>
    %28 = vector.shape_cast %27 : vector<8xf32> to vector<8x1xf32>
    %29 = vector.broadcast %28 : vector<8x1xf32> to vector<8x32xf32>
    %30 = arith.subf %26, %29 : vector<8x32xf32>
    %31 = math.exp %30 : vector<8x32xf32>
    %cst_15 = arith.constant dense<0.000000e+00> : vector<8x32xf32>
    %32 = tpu.matmul %31, %1, %cst_15 {dimension_numbers = #tpu.dot_dimension_numbers<[1], [0], [0], [1], [0, 0, 1, 1], [], []>} : vector<8x32xf32>, vector<32x32xf32>, vector<8x32xf32> -> vector<8x32xf32>
    %33 = tpu.reciprocal %32 {approx = true} : vector<8x32xf32> -> vector<8x32xf32>
    %34 = arith.mulf %31, %33 : vector<8x32xf32>
    %cst_16 = arith.constant dense<0.000000e+00> : vector<8x32xf32>
    %35 = tpu.matmul %34, %23, %cst_16 {dimension_numbers = #tpu.dot_dimension_numbers<[1], [0], [0], [1], [0, 0, 1, 1], [], []>} : vector<8x32xf32>, vector<32x32xf32>, vector<8x32xf32> -> vector<8x32xf32>
    %cst_17 = arith.constant dense<0.000000e+00> : vector<8x32xf32>
    %36 = tpu.matmul %35, %18, %cst_17 {dimension_numbers = #tpu.dot_dimension_numbers<[1], [0], [0], [1], [0, 0, 1, 1], [], []>} : vector<8x32xf32>, vector<32x32xf32>, vector<8x32xf32> -> vector<8x32xf32>
    %37 = vector.broadcast %19 : vector<1x32xf32> to vector<8x32xf32>
    %38 = arith.addf %36, %37 : vector<8x32xf32>
    %39 = arith.addf %9, %38 : vector<8x32xf32>
    %c784 = arith.constant 784 : index
    %c0_18 = arith.constant 0 : index
    %40 = vector.load %arg2[%c784, %c0_18] : memref<1224x128xf32, #tpu.memory_space<vmem>>, vector<1x32xf32>
    %c776 = arith.constant 776 : index
    %c0_19 = arith.constant 0 : index
    %41 = vector.load %arg2[%c776, %c0_19] : memref<1224x128xf32, #tpu.memory_space<vmem>>, vector<1x32xf32>
    %cst_20 = arith.constant dense<0.000000e+00> : vector<8xf32>
    %42 = vector.multi_reduction <add>, %39, %cst_20 [1] : vector<8x32xf32> to vector<8xf32>
    %43 = vector.shape_cast %42 : vector<8xf32> to vector<8x1xf32>
    %cst_21 = arith.constant 3.200000e+01 : f32
    %44 = vector.broadcast %cst_21 : f32 to vector<8x1xf32>
    %45 = arith.divf %43, %44 : vector<8x1xf32>
    %46 = vector.broadcast %45 : vector<8x1xf32> to vector<8x32xf32>
    %47 = arith.subf %39, %46 : vector<8x32xf32>
    %48 = arith.mulf %47, %47 : vector<8x32xf32>
    %cst_22 = arith.constant dense<0.000000e+00> : vector<8xf32>
    %49 = vector.multi_reduction <add>, %48, %cst_22 [1] : vector<8x32xf32> to vector<8xf32>
    %50 = vector.shape_cast %49 : vector<8xf32> to vector<8x1xf32>
    %cst_23 = arith.constant 3.200000e+01 : f32
    %51 = vector.broadcast %cst_23 : f32 to vector<8x1xf32>
    %52 = arith.divf %50, %51 : vector<8x1xf32>
    %cst_24 = arith.constant 9.99999974E-6 : f32
    %53 = vector.broadcast %cst_24 : f32 to vector<8x1xf32>
    %54 = arith.addf %52, %53 : vector<8x1xf32>
    %55 = math.rsqrt %54 : vector<8x1xf32>
    %56 = vector.broadcast %55 : vector<8x1xf32> to vector<8x32xf32>
    %57 = arith.mulf %47, %56 : vector<8x32xf32>
    %58 = vector.broadcast %40 : vector<1x32xf32> to vector<8x32xf32>
    %59 = arith.mulf %57, %58 : vector<8x32xf32>
    %60 = vector.broadcast %41 : vector<1x32xf32> to vector<8x32xf32>
    %61 = arith.addf %59, %60 : vector<8x32xf32>
    %c888 = arith.constant 888 : index
    %c0_25 = arith.constant 0 : index
    %62 = vector.load %arg2[%c888, %c0_25] : memref<1224x128xf32, #tpu.memory_space<vmem>>, vector<32x32xf32>
    %cst_26 = arith.constant dense<0.000000e+00> : vector<8x32xf32>
    %63 = tpu.matmul %61, %62, %cst_26 {dimension_numbers = #tpu.dot_dimension_numbers<[1], [0], [0], [1], [0, 0, 1, 1], [], []>} : vector<8x32xf32>, vector<32x32xf32>, vector<8x32xf32> -> vector<8x32xf32>
    %c760 = arith.constant 760 : index
    %c0_27 = arith.constant 0 : index
    %64 = vector.load %arg2[%c760, %c0_27] : memref<1224x128xf32, #tpu.memory_space<vmem>>, vector<1x32xf32>
    %65 = vector.broadcast %64 : vector<1x32xf32> to vector<8x32xf32>
    %66 = arith.addf %63, %65 : vector<8x32xf32>
    %cst_28 = arith.constant 0.000000e+00 : f32
    %67 = vector.broadcast %cst_28 : f32 to vector<8x32xf32>
    %68 = arith.maximumf %66, %67 : vector<8x32xf32>
    %c920 = arith.constant 920 : index
    %c0_29 = arith.constant 0 : index
    %69 = vector.load %arg2[%c920, %c0_29] : memref<1224x128xf32, #tpu.memory_space<vmem>>, vector<32x32xf32>
    %cst_30 = arith.constant dense<0.000000e+00> : vector<8x32xf32>
    %70 = tpu.matmul %68, %69, %cst_30 {dimension_numbers = #tpu.dot_dimension_numbers<[1], [0], [0], [1], [0, 0, 1, 1], [], []>} : vector<8x32xf32>, vector<32x32xf32>, vector<8x32xf32> -> vector<8x32xf32>
    %c768 = arith.constant 768 : index
    %c0_31 = arith.constant 0 : index
    %71 = vector.load %arg2[%c768, %c0_31] : memref<1224x128xf32, #tpu.memory_space<vmem>>, vector<1x32xf32>
    %72 = vector.broadcast %71 : vector<1x32xf32> to vector<8x32xf32>
    %73 = arith.addf %70, %72 : vector<8x32xf32>
    %74 = arith.addf %61, %73 : vector<8x32xf32>
    %c800 = arith.constant 800 : index
    %c0_32 = arith.constant 0 : index
    %75 = vector.load %arg2[%c800, %c0_32] : memref<1224x128xf32, #tpu.memory_space<vmem>>, vector<1x32xf32>
    %c792 = arith.constant 792 : index
    %c0_33 = arith.constant 0 : index
    %76 = vector.load %arg2[%c792, %c0_33] : memref<1224x128xf32, #tpu.memory_space<vmem>>, vector<1x32xf32>
    %cst_34 = arith.constant dense<0.000000e+00> : vector<8xf32>
    %77 = vector.multi_reduction <add>, %74, %cst_34 [1] : vector<8x32xf32> to vector<8xf32>
    %78 = vector.shape_cast %77 : vector<8xf32> to vector<8x1xf32>
    %cst_35 = arith.constant 3.200000e+01 : f32
    %79 = vector.broadcast %cst_35 : f32 to vector<8x1xf32>
    %80 = arith.divf %78, %79 : vector<8x1xf32>
    %81 = vector.broadcast %80 : vector<8x1xf32> to vector<8x32xf32>
    %82 = arith.subf %74, %81 : vector<8x32xf32>
    %83 = arith.mulf %82, %82 : vector<8x32xf32>
    %cst_36 = arith.constant dense<0.000000e+00> : vector<8xf32>
    %84 = vector.multi_reduction <add>, %83, %cst_36 [1] : vector<8x32xf32> to vector<8xf32>
    %85 = vector.shape_cast %84 : vector<8xf32> to vector<8x1xf32>
    %cst_37 = arith.constant 3.200000e+01 : f32
    %86 = vector.broadcast %cst_37 : f32 to vector<8x1xf32>
    %87 = arith.divf %85, %86 : vector<8x1xf32>
    %cst_38 = arith.constant 9.99999974E-6 : f32
    %88 = vector.broadcast %cst_38 : f32 to vector<8x1xf32>
    %89 = arith.addf %87, %88 : vector<8x1xf32>
    %90 = math.rsqrt %89 : vector<8x1xf32>
    %91 = vector.broadcast %90 : vector<8x1xf32> to vector<8x32xf32>
    %92 = arith.mulf %82, %91 : vector<8x32xf32>
    %93 = vector.broadcast %75 : vector<1x32xf32> to vector<8x32xf32>
    %94 = arith.mulf %92, %93 : vector<8x32xf32>
    %95 = vector.broadcast %76 : vector<1x32xf32> to vector<8x32xf32>
    %96 = arith.addf %94, %95 : vector<8x32xf32>
    %c1048 = arith.constant 1048 : index
    %c0_39 = arith.constant 0 : index
    %97 = vector.load %arg2[%c1048, %c0_39] : memref<1224x128xf32, #tpu.memory_space<vmem>>, vector<32x96xf32>
    %cst_40 = arith.constant dense<0.000000e+00> : vector<8x96xf32>
    %98 = tpu.matmul %96, %97, %cst_40 {dimension_numbers = #tpu.dot_dimension_numbers<[1], [0], [0], [1], [0, 0, 1, 1], [], []>} : vector<8x32xf32>, vector<32x96xf32>, vector<8x96xf32> -> vector<8x96xf32>
    %c1008 = arith.constant 1008 : index
    %c0_41 = arith.constant 0 : index
    %99 = vector.load %arg2[%c1008, %c0_41] : memref<1224x128xf32, #tpu.memory_space<vmem>>, vector<1x96xf32>
    %100 = vector.broadcast %99 : vector<1x96xf32> to vector<8x96xf32>
    %101 = arith.addf %98, %100 : vector<8x96xf32>
    %102 = vector.extract_strided_slice %101 {offsets = [0, 0], sizes = [8, 32], strides = [1, 1]} : vector<8x96xf32> to vector<8x32xf32>
    %103 = vector.extract_strided_slice %101 {offsets = [0, 32], sizes = [8, 32], strides = [1, 1]} : vector<8x96xf32> to vector<8x32xf32>
    %104 = vector.extract_strided_slice %101 {offsets = [0, 64], sizes = [8, 32], strides = [1, 1]} : vector<8x96xf32> to vector<8x32xf32>
    %c1016 = arith.constant 1016 : index
    %c0_42 = arith.constant 0 : index
    %105 = vector.load %arg2[%c1016, %c0_42] : memref<1224x128xf32, #tpu.memory_space<vmem>>, vector<32x32xf32>
    %c1000 = arith.constant 1000 : index
    %c0_43 = arith.constant 0 : index
    %106 = vector.load %arg2[%c1000, %c0_43] : memref<1224x128xf32, #tpu.memory_space<vmem>>, vector<1x32xf32>
    %107 = tpu.concatenate %103, %103, %103, %103 in 0 : vector<8x32xf32>, vector<8x32xf32>, vector<8x32xf32>, vector<8x32xf32> -> vector<32x32xf32>
    %108 = arith.mulf %107, %0 : vector<32x32xf32>
    %109 = tpu.concatenate %104, %104, %104, %104 in 0 : vector<8x32xf32>, vector<8x32xf32>, vector<8x32xf32>, vector<8x32xf32> -> vector<32x32xf32>
    %110 = arith.mulf %109, %0 : vector<32x32xf32>
    %cst_44 = arith.constant dense<0.000000e+00> : vector<8x32xf32>
    %111 = tpu.matmul %102, %108, %cst_44 {dimension_numbers = #tpu.dot_dimension_numbers<[1], [1], [0], [0], [0, 0, 1, 0], [], []>} : vector<8x32xf32>, vector<32x32xf32>, vector<8x32xf32> -> vector<8x32xf32>
    %cst_45 = arith.constant 0.353553385 : f32
    %112 = vector.broadcast %cst_45 : f32 to vector<8x32xf32>
    %113 = arith.mulf %111, %112 : vector<8x32xf32>
    %cst_46 = arith.constant dense<0xFF800000> : vector<8xf32>
    %114 = vector.multi_reduction <maximumf>, %113, %cst_46 [1] : vector<8x32xf32> to vector<8xf32>
    %115 = vector.shape_cast %114 : vector<8xf32> to vector<8x1xf32>
    %116 = vector.broadcast %115 : vector<8x1xf32> to vector<8x32xf32>
    %117 = arith.subf %113, %116 : vector<8x32xf32>
    %118 = math.exp %117 : vector<8x32xf32>
    %cst_47 = arith.constant dense<0.000000e+00> : vector<8x32xf32>
    %119 = tpu.matmul %118, %1, %cst_47 {dimension_numbers = #tpu.dot_dimension_numbers<[1], [0], [0], [1], [0, 0, 1, 1], [], []>} : vector<8x32xf32>, vector<32x32xf32>, vector<8x32xf32> -> vector<8x32xf32>
    %120 = tpu.reciprocal %119 {approx = true} : vector<8x32xf32> -> vector<8x32xf32>
    %121 = arith.mulf %118, %120 : vector<8x32xf32>
    %cst_48 = arith.constant dense<0.000000e+00> : vector<8x32xf32>
    %122 = tpu.matmul %121, %110, %cst_48 {dimension_numbers = #tpu.dot_dimension_numbers<[1], [0], [0], [1], [0, 0, 1, 1], [], []>} : vector<8x32xf32>, vector<32x32xf32>, vector<8x32xf32> -> vector<8x32xf32>
    %cst_49 = arith.constant dense<0.000000e+00> : vector<8x32xf32>
    %123 = tpu.matmul %122, %105, %cst_49 {dimension_numbers = #tpu.dot_dimension_numbers<[1], [0], [0], [1], [0, 0, 1, 1], [], []>} : vector<8x32xf32>, vector<32x32xf32>, vector<8x32xf32> -> vector<8x32xf32>
    %124 = vector.broadcast %106 : vector<1x32xf32> to vector<8x32xf32>
    %125 = arith.addf %123, %124 : vector<8x32xf32>
    %126 = arith.addf %96, %125 : vector<8x32xf32>
    %c976 = arith.constant 976 : index
    %c0_50 = arith.constant 0 : index
    %127 = vector.load %arg2[%c976, %c0_50] : memref<1224x128xf32, #tpu.memory_space<vmem>>, vector<1x32xf32>
    %c968 = arith.constant 968 : index
    %c0_51 = arith.constant 0 : index
    %128 = vector.load %arg2[%c968, %c0_51] : memref<1224x128xf32, #tpu.memory_space<vmem>>, vector<1x32xf32>
    %cst_52 = arith.constant dense<0.000000e+00> : vector<8xf32>
    %129 = vector.multi_reduction <add>, %126, %cst_52 [1] : vector<8x32xf32> to vector<8xf32>
    %130 = vector.shape_cast %129 : vector<8xf32> to vector<8x1xf32>
    %cst_53 = arith.constant 3.200000e+01 : f32
    %131 = vector.broadcast %cst_53 : f32 to vector<8x1xf32>
    %132 = arith.divf %130, %131 : vector<8x1xf32>
    %133 = vector.broadcast %132 : vector<8x1xf32> to vector<8x32xf32>
    %134 = arith.subf %126, %133 : vector<8x32xf32>
    %135 = arith.mulf %134, %134 : vector<8x32xf32>
    %cst_54 = arith.constant dense<0.000000e+00> : vector<8xf32>
    %136 = vector.multi_reduction <add>, %135, %cst_54 [1] : vector<8x32xf32> to vector<8xf32>
    %137 = vector.shape_cast %136 : vector<8xf32> to vector<8x1xf32>
    %cst_55 = arith.constant 3.200000e+01 : f32
    %138 = vector.broadcast %cst_55 : f32 to vector<8x1xf32>
    %139 = arith.divf %137, %138 : vector<8x1xf32>
    %cst_56 = arith.constant 9.99999974E-6 : f32
    %140 = vector.broadcast %cst_56 : f32 to vector<8x1xf32>
    %141 = arith.addf %139, %140 : vector<8x1xf32>
    %142 = math.rsqrt %141 : vector<8x1xf32>
    %143 = vector.broadcast %142 : vector<8x1xf32> to vector<8x32xf32>
    %144 = arith.mulf %134, %143 : vector<8x32xf32>
    %145 = vector.broadcast %127 : vector<1x32xf32> to vector<8x32xf32>
    %146 = arith.mulf %144, %145 : vector<8x32xf32>
    %147 = vector.broadcast %128 : vector<1x32xf32> to vector<8x32xf32>
    %148 = arith.addf %146, %147 : vector<8x32xf32>
    %c1080 = arith.constant 1080 : index
    %c0_57 = arith.constant 0 : index
    %149 = vector.load %arg2[%c1080, %c0_57] : memref<1224x128xf32, #tpu.memory_space<vmem>>, vector<32x32xf32>
    %cst_58 = arith.constant dense<0.000000e+00> : vector<8x32xf32>
    %150 = tpu.matmul %148, %149, %cst_58 {dimension_numbers = #tpu.dot_dimension_numbers<[1], [0], [0], [1], [0, 0, 1, 1], [], []>} : vector<8x32xf32>, vector<32x32xf32>, vector<8x32xf32> -> vector<8x32xf32>
    %c952 = arith.constant 952 : index
    %c0_59 = arith.constant 0 : index
    %151 = vector.load %arg2[%c952, %c0_59] : memref<1224x128xf32, #tpu.memory_space<vmem>>, vector<1x32xf32>
    %152 = vector.broadcast %151 : vector<1x32xf32> to vector<8x32xf32>
    %153 = arith.addf %150, %152 : vector<8x32xf32>
    %cst_60 = arith.constant 0.000000e+00 : f32
    %154 = vector.broadcast %cst_60 : f32 to vector<8x32xf32>
    %155 = arith.maximumf %153, %154 : vector<8x32xf32>
    %c1112 = arith.constant 1112 : index
    %c0_61 = arith.constant 0 : index
    %156 = vector.load %arg2[%c1112, %c0_61] : memref<1224x128xf32, #tpu.memory_space<vmem>>, vector<32x32xf32>
    %cst_62 = arith.constant dense<0.000000e+00> : vector<8x32xf32>
    %157 = tpu.matmul %155, %156, %cst_62 {dimension_numbers = #tpu.dot_dimension_numbers<[1], [0], [0], [1], [0, 0, 1, 1], [], []>} : vector<8x32xf32>, vector<32x32xf32>, vector<8x32xf32> -> vector<8x32xf32>
    %c960 = arith.constant 960 : index
    %c0_63 = arith.constant 0 : index
    %158 = vector.load %arg2[%c960, %c0_63] : memref<1224x128xf32, #tpu.memory_space<vmem>>, vector<1x32xf32>
    %159 = vector.broadcast %158 : vector<1x32xf32> to vector<8x32xf32>
    %160 = arith.addf %157, %159 : vector<8x32xf32>
    %161 = arith.addf %148, %160 : vector<8x32xf32>
    %c992 = arith.constant 992 : index
    %c0_64 = arith.constant 0 : index
    %162 = vector.load %arg2[%c992, %c0_64] : memref<1224x128xf32, #tpu.memory_space<vmem>>, vector<1x32xf32>
    %c984 = arith.constant 984 : index
    %c0_65 = arith.constant 0 : index
    %163 = vector.load %arg2[%c984, %c0_65] : memref<1224x128xf32, #tpu.memory_space<vmem>>, vector<1x32xf32>
    %cst_66 = arith.constant dense<0.000000e+00> : vector<8xf32>
    %164 = vector.multi_reduction <add>, %161, %cst_66 [1] : vector<8x32xf32> to vector<8xf32>
    %165 = vector.shape_cast %164 : vector<8xf32> to vector<8x1xf32>
    %cst_67 = arith.constant 3.200000e+01 : f32
    %166 = vector.broadcast %cst_67 : f32 to vector<8x1xf32>
    %167 = arith.divf %165, %166 : vector<8x1xf32>
    %168 = vector.broadcast %167 : vector<8x1xf32> to vector<8x32xf32>
    %169 = arith.subf %161, %168 : vector<8x32xf32>
    %170 = arith.mulf %169, %169 : vector<8x32xf32>
    %cst_68 = arith.constant dense<0.000000e+00> : vector<8xf32>
    %171 = vector.multi_reduction <add>, %170, %cst_68 [1] : vector<8x32xf32> to vector<8xf32>
    %172 = vector.shape_cast %171 : vector<8xf32> to vector<8x1xf32>
    %cst_69 = arith.constant 3.200000e+01 : f32
    %173 = vector.broadcast %cst_69 : f32 to vector<8x1xf32>
    %174 = arith.divf %172, %173 : vector<8x1xf32>
    %cst_70 = arith.constant 9.99999974E-6 : f32
    %175 = vector.broadcast %cst_70 : f32 to vector<8x1xf32>
    %176 = arith.addf %174, %175 : vector<8x1xf32>
    %177 = math.rsqrt %176 : vector<8x1xf32>
    %178 = vector.broadcast %177 : vector<8x1xf32> to vector<8x32xf32>
    %179 = arith.mulf %169, %178 : vector<8x32xf32>
    %180 = vector.broadcast %162 : vector<1x32xf32> to vector<8x32xf32>
    %181 = arith.mulf %179, %180 : vector<8x32xf32>
    %182 = vector.broadcast %163 : vector<1x32xf32> to vector<8x32xf32>
    %183 = arith.addf %181, %182 : vector<8x32xf32>
    %c1152 = arith.constant 1152 : index
    %c0_71 = arith.constant 0 : index
    %184 = vector.load %arg2[%c1152, %c0_71] : memref<1224x128xf32, #tpu.memory_space<vmem>>, vector<1x32xf32>
    %c1144 = arith.constant 1144 : index
    %c0_72 = arith.constant 0 : index
    %185 = vector.load %arg2[%c1144, %c0_72] : memref<1224x128xf32, #tpu.memory_space<vmem>>, vector<1x32xf32>
    %cst_73 = arith.constant dense<0.000000e+00> : vector<8xf32>
    %186 = vector.multi_reduction <add>, %183, %cst_73 [1] : vector<8x32xf32> to vector<8xf32>
    %187 = vector.shape_cast %186 : vector<8xf32> to vector<8x1xf32>
    %cst_74 = arith.constant 3.200000e+01 : f32
    %188 = vector.broadcast %cst_74 : f32 to vector<8x1xf32>
    %189 = arith.divf %187, %188 : vector<8x1xf32>
    %190 = vector.broadcast %189 : vector<8x1xf32> to vector<8x32xf32>
    %191 = arith.subf %183, %190 : vector<8x32xf32>
    %192 = arith.mulf %191, %191 : vector<8x32xf32>
    %cst_75 = arith.constant dense<0.000000e+00> : vector<8xf32>
    %193 = vector.multi_reduction <add>, %192, %cst_75 [1] : vector<8x32xf32> to vector<8xf32>
    %194 = vector.shape_cast %193 : vector<8xf32> to vector<8x1xf32>
    %cst_76 = arith.constant 3.200000e+01 : f32
    %195 = vector.broadcast %cst_76 : f32 to vector<8x1xf32>
    %196 = arith.divf %194, %195 : vector<8x1xf32>
    %cst_77 = arith.constant 9.99999974E-6 : f32
    %197 = vector.broadcast %cst_77 : f32 to vector<8x1xf32>
    %198 = arith.addf %196, %197 : vector<8x1xf32>
    %199 = math.rsqrt %198 : vector<8x1xf32>
    %200 = vector.broadcast %199 : vector<8x1xf32> to vector<8x32xf32>
    %201 = arith.mulf %191, %200 : vector<8x32xf32>
    %202 = vector.broadcast %184 : vector<1x32xf32> to vector<8x32xf32>
    %203 = arith.mulf %201, %202 : vector<8x32xf32>
    %204 = vector.broadcast %185 : vector<1x32xf32> to vector<8x32xf32>
    %205 = arith.addf %203, %204 : vector<8x32xf32>
    %c320 = arith.constant 320 : index
    %c0_78 = arith.constant 0 : index
    %206 = vector.load %arg2[%c320, %c0_78] : memref<1224x128xf32, #tpu.memory_space<vmem>>, vector<32x96xf32>
    %cst_79 = arith.constant dense<0.000000e+00> : vector<8x96xf32>
    %207 = tpu.matmul %9, %206, %cst_79 {dimension_numbers = #tpu.dot_dimension_numbers<[1], [0], [0], [1], [0, 0, 1, 1], [], []>} : vector<8x32xf32>, vector<32x96xf32>, vector<8x96xf32> -> vector<8x96xf32>
    %c280 = arith.constant 280 : index
    %c0_80 = arith.constant 0 : index
    %208 = vector.load %arg2[%c280, %c0_80] : memref<1224x128xf32, #tpu.memory_space<vmem>>, vector<1x96xf32>
    %209 = vector.broadcast %208 : vector<1x96xf32> to vector<8x96xf32>
    %210 = arith.addf %207, %209 : vector<8x96xf32>
    %211 = vector.extract_strided_slice %210 {offsets = [0, 0], sizes = [8, 32], strides = [1, 1]} : vector<8x96xf32> to vector<8x32xf32>
    %212 = vector.extract_strided_slice %210 {offsets = [0, 32], sizes = [8, 32], strides = [1, 1]} : vector<8x96xf32> to vector<8x32xf32>
    %213 = vector.extract_strided_slice %210 {offsets = [0, 64], sizes = [8, 32], strides = [1, 1]} : vector<8x96xf32> to vector<8x32xf32>
    %c288 = arith.constant 288 : index
    %c0_81 = arith.constant 0 : index
    %214 = vector.load %arg2[%c288, %c0_81] : memref<1224x128xf32, #tpu.memory_space<vmem>>, vector<32x32xf32>
    %c272 = arith.constant 272 : index
    %c0_82 = arith.constant 0 : index
    %215 = vector.load %arg2[%c272, %c0_82] : memref<1224x128xf32, #tpu.memory_space<vmem>>, vector<1x32xf32>
    %216 = tpu.concatenate %212, %212, %212, %212 in 0 : vector<8x32xf32>, vector<8x32xf32>, vector<8x32xf32>, vector<8x32xf32> -> vector<32x32xf32>
    %217 = arith.mulf %216, %0 : vector<32x32xf32>
    %218 = tpu.concatenate %213, %213, %213, %213 in 0 : vector<8x32xf32>, vector<8x32xf32>, vector<8x32xf32>, vector<8x32xf32> -> vector<32x32xf32>
    %219 = arith.mulf %218, %0 : vector<32x32xf32>
    %cst_83 = arith.constant dense<0.000000e+00> : vector<8x32xf32>
    %220 = tpu.matmul %211, %217, %cst_83 {dimension_numbers = #tpu.dot_dimension_numbers<[1], [1], [0], [0], [0, 0, 1, 0], [], []>} : vector<8x32xf32>, vector<32x32xf32>, vector<8x32xf32> -> vector<8x32xf32>
    %cst_84 = arith.constant 0.353553385 : f32
    %221 = vector.broadcast %cst_84 : f32 to vector<8x32xf32>
    %222 = arith.mulf %220, %221 : vector<8x32xf32>
    %cst_85 = arith.constant dense<0xFF800000> : vector<8xf32>
    %223 = vector.multi_reduction <maximumf>, %222, %cst_85 [1] : vector<8x32xf32> to vector<8xf32>
    %224 = vector.shape_cast %223 : vector<8xf32> to vector<8x1xf32>
    %225 = vector.broadcast %224 : vector<8x1xf32> to vector<8x32xf32>
    %226 = arith.subf %222, %225 : vector<8x32xf32>
    %227 = math.exp %226 : vector<8x32xf32>
    %cst_86 = arith.constant dense<0.000000e+00> : vector<8x32xf32>
    %228 = tpu.matmul %227, %1, %cst_86 {dimension_numbers = #tpu.dot_dimension_numbers<[1], [0], [0], [1], [0, 0, 1, 1], [], []>} : vector<8x32xf32>, vector<32x32xf32>, vector<8x32xf32> -> vector<8x32xf32>
    %229 = tpu.reciprocal %228 {approx = true} : vector<8x32xf32> -> vector<8x32xf32>
    %230 = arith.mulf %227, %229 : vector<8x32xf32>
    %cst_87 = arith.constant dense<0.000000e+00> : vector<8x32xf32>
    %231 = tpu.matmul %230, %219, %cst_87 {dimension_numbers = #tpu.dot_dimension_numbers<[1], [0], [0], [1], [0, 0, 1, 1], [], []>} : vector<8x32xf32>, vector<32x32xf32>, vector<8x32xf32> -> vector<8x32xf32>
    %cst_88 = arith.constant dense<0.000000e+00> : vector<8x32xf32>
    %232 = tpu.matmul %231, %214, %cst_88 {dimension_numbers = #tpu.dot_dimension_numbers<[1], [0], [0], [1], [0, 0, 1, 1], [], []>} : vector<8x32xf32>, vector<32x32xf32>, vector<8x32xf32> -> vector<8x32xf32>
    %233 = vector.broadcast %215 : vector<1x32xf32> to vector<8x32xf32>
    %234 = arith.addf %232, %233 : vector<8x32xf32>
    %235 = arith.addf %9, %234 : vector<8x32xf32>
    %c232 = arith.constant 232 : index
    %c0_89 = arith.constant 0 : index
    %236 = vector.load %arg2[%c232, %c0_89] : memref<1224x128xf32, #tpu.memory_space<vmem>>, vector<1x32xf32>
    %c224 = arith.constant 224 : index
    %c0_90 = arith.constant 0 : index
    %237 = vector.load %arg2[%c224, %c0_90] : memref<1224x128xf32, #tpu.memory_space<vmem>>, vector<1x32xf32>
    %cst_91 = arith.constant dense<0.000000e+00> : vector<8xf32>
    %238 = vector.multi_reduction <add>, %235, %cst_91 [1] : vector<8x32xf32> to vector<8xf32>
    %239 = vector.shape_cast %238 : vector<8xf32> to vector<8x1xf32>
    %cst_92 = arith.constant 3.200000e+01 : f32
    %240 = vector.broadcast %cst_92 : f32 to vector<8x1xf32>
    %241 = arith.divf %239, %240 : vector<8x1xf32>
    %242 = vector.broadcast %241 : vector<8x1xf32> to vector<8x32xf32>
    %243 = arith.subf %235, %242 : vector<8x32xf32>
    %244 = arith.mulf %243, %243 : vector<8x32xf32>
    %cst_93 = arith.constant dense<0.000000e+00> : vector<8xf32>
    %245 = vector.multi_reduction <add>, %244, %cst_93 [1] : vector<8x32xf32> to vector<8xf32>
    %246 = vector.shape_cast %245 : vector<8xf32> to vector<8x1xf32>
    %cst_94 = arith.constant 3.200000e+01 : f32
    %247 = vector.broadcast %cst_94 : f32 to vector<8x1xf32>
    %248 = arith.divf %246, %247 : vector<8x1xf32>
    %cst_95 = arith.constant 9.99999974E-6 : f32
    %249 = vector.broadcast %cst_95 : f32 to vector<8x1xf32>
    %250 = arith.addf %248, %249 : vector<8x1xf32>
    %251 = math.rsqrt %250 : vector<8x1xf32>
    %252 = vector.broadcast %251 : vector<8x1xf32> to vector<8x32xf32>
    %253 = arith.mulf %243, %252 : vector<8x32xf32>
    %254 = vector.broadcast %236 : vector<1x32xf32> to vector<8x32xf32>
    %255 = arith.mulf %253, %254 : vector<8x32xf32>
    %256 = vector.broadcast %237 : vector<1x32xf32> to vector<8x32xf32>
    %257 = arith.addf %255, %256 : vector<8x32xf32>
    %c192 = arith.constant 192 : index
    %c0_96 = arith.constant 0 : index
    %258 = vector.load %arg2[%c192, %c0_96] : memref<1224x128xf32, #tpu.memory_space<vmem>>, vector<32x32xf32>
    %cst_97 = arith.constant dense<0.000000e+00> : vector<8x32xf32>
    %259 = tpu.matmul %257, %258, %cst_97 {dimension_numbers = #tpu.dot_dimension_numbers<[1], [0], [0], [1], [0, 0, 1, 1], [], []>} : vector<8x32xf32>, vector<32x32xf32>, vector<8x32xf32> -> vector<8x32xf32>
    %c120 = arith.constant 120 : index
    %c0_98 = arith.constant 0 : index
    %260 = vector.load %arg2[%c120, %c0_98] : memref<1224x128xf32, #tpu.memory_space<vmem>>, vector<1x32xf32>
    %261 = vector.broadcast %260 : vector<1x32xf32> to vector<8x32xf32>
    %262 = arith.addf %259, %261 : vector<8x32xf32>
    %c128 = arith.constant 128 : index
    %c0_99 = arith.constant 0 : index
    %263 = vector.load %arg2[%c128, %c0_99] : memref<1224x128xf32, #tpu.memory_space<vmem>>, vector<32x64xf32>
    %cst_100 = arith.constant dense<0.000000e+00> : vector<8x64xf32>
    %264 = tpu.matmul %205, %263, %cst_100 {dimension_numbers = #tpu.dot_dimension_numbers<[1], [0], [0], [1], [0, 0, 1, 1], [], []>} : vector<8x32xf32>, vector<32x64xf32>, vector<8x64xf32> -> vector<8x64xf32>
    %c104 = arith.constant 104 : index
    %c0_101 = arith.constant 0 : index
    %265 = vector.load %arg2[%c104, %c0_101] : memref<1224x128xf32, #tpu.memory_space<vmem>>, vector<1x64xf32>
    %266 = vector.broadcast %265 : vector<1x64xf32> to vector<8x64xf32>
    %267 = arith.addf %264, %266 : vector<8x64xf32>
    %268 = vector.extract_strided_slice %267 {offsets = [0, 0], sizes = [8, 32], strides = [1, 1]} : vector<8x64xf32> to vector<8x32xf32>
    %269 = vector.extract_strided_slice %267 {offsets = [0, 32], sizes = [8, 32], strides = [1, 1]} : vector<8x64xf32> to vector<8x32xf32>
    %c160 = arith.constant 160 : index
    %c0_102 = arith.constant 0 : index
    %270 = vector.load %arg2[%c160, %c0_102] : memref<1224x128xf32, #tpu.memory_space<vmem>>, vector<32x32xf32>
    %c112 = arith.constant 112 : index
    %c0_103 = arith.constant 0 : index
    %271 = vector.load %arg2[%c112, %c0_103] : memref<1224x128xf32, #tpu.memory_space<vmem>>, vector<1x32xf32>
    %272 = tpu.concatenate %268, %268, %268, %268 in 0 : vector<8x32xf32>, vector<8x32xf32>, vector<8x32xf32>, vector<8x32xf32> -> vector<32x32xf32>
    %273 = arith.mulf %272, %0 : vector<32x32xf32>
    %274 = tpu.concatenate %269, %269, %269, %269 in 0 : vector<8x32xf32>, vector<8x32xf32>, vector<8x32xf32>, vector<8x32xf32> -> vector<32x32xf32>
    %275 = arith.mulf %274, %0 : vector<32x32xf32>
    %cst_104 = arith.constant dense<0.000000e+00> : vector<8x32xf32>
    %276 = tpu.matmul %262, %273, %cst_104 {dimension_numbers = #tpu.dot_dimension_numbers<[1], [1], [0], [0], [0, 0, 1, 0], [], []>} : vector<8x32xf32>, vector<32x32xf32>, vector<8x32xf32> -> vector<8x32xf32>
    %cst_105 = arith.constant 0.353553385 : f32
    %277 = vector.broadcast %cst_105 : f32 to vector<8x32xf32>
    %278 = arith.mulf %276, %277 : vector<8x32xf32>
    %cst_106 = arith.constant dense<0xFF800000> : vector<8xf32>
    %279 = vector.multi_reduction <maximumf>, %278, %cst_106 [1] : vector<8x32xf32> to vector<8xf32>
    %280 = vector.shape_cast %279 : vector<8xf32> to vector<8x1xf32>
    %281 = vector.broadcast %280 : vector<8x1xf32> to vector<8x32xf32>
    %282 = arith.subf %278, %281 : vector<8x32xf32>
    %283 = math.exp %282 : vector<8x32xf32>
    %cst_107 = arith.constant dense<0.000000e+00> : vector<8x32xf32>
    %284 = tpu.matmul %283, %1, %cst_107 {dimension_numbers = #tpu.dot_dimension_numbers<[1], [0], [0], [1], [0, 0, 1, 1], [], []>} : vector<8x32xf32>, vector<32x32xf32>, vector<8x32xf32> -> vector<8x32xf32>
    %285 = tpu.reciprocal %284 {approx = true} : vector<8x32xf32> -> vector<8x32xf32>
    %286 = arith.mulf %283, %285 : vector<8x32xf32>
    %cst_108 = arith.constant dense<0.000000e+00> : vector<8x32xf32>
    %287 = tpu.matmul %286, %275, %cst_108 {dimension_numbers = #tpu.dot_dimension_numbers<[1], [0], [0], [1], [0, 0, 1, 1], [], []>} : vector<8x32xf32>, vector<32x32xf32>, vector<8x32xf32> -> vector<8x32xf32>
    %cst_109 = arith.constant dense<0.000000e+00> : vector<8x32xf32>
    %288 = tpu.matmul %287, %270, %cst_109 {dimension_numbers = #tpu.dot_dimension_numbers<[1], [0], [0], [1], [0, 0, 1, 1], [], []>} : vector<8x32xf32>, vector<32x32xf32>, vector<8x32xf32> -> vector<8x32xf32>
    %289 = vector.broadcast %271 : vector<1x32xf32> to vector<8x32xf32>
    %290 = arith.addf %288, %289 : vector<8x32xf32>
    %291 = arith.addf %257, %290 : vector<8x32xf32>
    %c248 = arith.constant 248 : index
    %c0_110 = arith.constant 0 : index
    %292 = vector.load %arg2[%c248, %c0_110] : memref<1224x128xf32, #tpu.memory_space<vmem>>, vector<1x32xf32>
    %c240 = arith.constant 240 : index
    %c0_111 = arith.constant 0 : index
    %293 = vector.load %arg2[%c240, %c0_111] : memref<1224x128xf32, #tpu.memory_space<vmem>>, vector<1x32xf32>
    %cst_112 = arith.constant dense<0.000000e+00> : vector<8xf32>
    %294 = vector.multi_reduction <add>, %291, %cst_112 [1] : vector<8x32xf32> to vector<8xf32>
    %295 = vector.shape_cast %294 : vector<8xf32> to vector<8x1xf32>
    %cst_113 = arith.constant 3.200000e+01 : f32
    %296 = vector.broadcast %cst_113 : f32 to vector<8x1xf32>
    %297 = arith.divf %295, %296 : vector<8x1xf32>
    %298 = vector.broadcast %297 : vector<8x1xf32> to vector<8x32xf32>
    %299 = arith.subf %291, %298 : vector<8x32xf32>
    %300 = arith.mulf %299, %299 : vector<8x32xf32>
    %cst_114 = arith.constant dense<0.000000e+00> : vector<8xf32>
    %301 = vector.multi_reduction <add>, %300, %cst_114 [1] : vector<8x32xf32> to vector<8xf32>
    %302 = vector.shape_cast %301 : vector<8xf32> to vector<8x1xf32>
    %cst_115 = arith.constant 3.200000e+01 : f32
    %303 = vector.broadcast %cst_115 : f32 to vector<8x1xf32>
    %304 = arith.divf %302, %303 : vector<8x1xf32>
    %cst_116 = arith.constant 9.99999974E-6 : f32
    %305 = vector.broadcast %cst_116 : f32 to vector<8x1xf32>
    %306 = arith.addf %304, %305 : vector<8x1xf32>
    %307 = math.rsqrt %306 : vector<8x1xf32>
    %308 = vector.broadcast %307 : vector<8x1xf32> to vector<8x32xf32>
    %309 = arith.mulf %299, %308 : vector<8x32xf32>
    %310 = vector.broadcast %292 : vector<1x32xf32> to vector<8x32xf32>
    %311 = arith.mulf %309, %310 : vector<8x32xf32>
    %312 = vector.broadcast %293 : vector<1x32xf32> to vector<8x32xf32>
    %313 = arith.addf %311, %312 : vector<8x32xf32>
    %c352 = arith.constant 352 : index
    %c0_117 = arith.constant 0 : index
    %314 = vector.load %arg2[%c352, %c0_117] : memref<1224x128xf32, #tpu.memory_space<vmem>>, vector<32x32xf32>
    %cst_118 = arith.constant dense<0.000000e+00> : vector<8x32xf32>
    %315 = tpu.matmul %313, %314, %cst_118 {dimension_numbers = #tpu.dot_dimension_numbers<[1], [0], [0], [1], [0, 0, 1, 1], [], []>} : vector<8x32xf32>, vector<32x32xf32>, vector<8x32xf32> -> vector<8x32xf32>
    %c88 = arith.constant 88 : index
    %c0_119 = arith.constant 0 : index
    %316 = vector.load %arg2[%c88, %c0_119] : memref<1224x128xf32, #tpu.memory_space<vmem>>, vector<1x32xf32>
    %317 = vector.broadcast %316 : vector<1x32xf32> to vector<8x32xf32>
    %318 = arith.addf %315, %317 : vector<8x32xf32>
    %cst_120 = arith.constant 0.000000e+00 : f32
    %319 = vector.broadcast %cst_120 : f32 to vector<8x32xf32>
    %320 = arith.maximumf %318, %319 : vector<8x32xf32>
    %c384 = arith.constant 384 : index
    %c0_121 = arith.constant 0 : index
    %321 = vector.load %arg2[%c384, %c0_121] : memref<1224x128xf32, #tpu.memory_space<vmem>>, vector<32x32xf32>
    %cst_122 = arith.constant dense<0.000000e+00> : vector<8x32xf32>
    %322 = tpu.matmul %320, %321, %cst_122 {dimension_numbers = #tpu.dot_dimension_numbers<[1], [0], [0], [1], [0, 0, 1, 1], [], []>} : vector<8x32xf32>, vector<32x32xf32>, vector<8x32xf32> -> vector<8x32xf32>
    %c96 = arith.constant 96 : index
    %c0_123 = arith.constant 0 : index
    %323 = vector.load %arg2[%c96, %c0_123] : memref<1224x128xf32, #tpu.memory_space<vmem>>, vector<1x32xf32>
    %324 = vector.broadcast %323 : vector<1x32xf32> to vector<8x32xf32>
    %325 = arith.addf %322, %324 : vector<8x32xf32>
    %326 = arith.addf %313, %325 : vector<8x32xf32>
    %c264 = arith.constant 264 : index
    %c0_124 = arith.constant 0 : index
    %327 = vector.load %arg2[%c264, %c0_124] : memref<1224x128xf32, #tpu.memory_space<vmem>>, vector<1x32xf32>
    %c256 = arith.constant 256 : index
    %c0_125 = arith.constant 0 : index
    %328 = vector.load %arg2[%c256, %c0_125] : memref<1224x128xf32, #tpu.memory_space<vmem>>, vector<1x32xf32>
    %cst_126 = arith.constant dense<0.000000e+00> : vector<8xf32>
    %329 = vector.multi_reduction <add>, %326, %cst_126 [1] : vector<8x32xf32> to vector<8xf32>
    %330 = vector.shape_cast %329 : vector<8xf32> to vector<8x1xf32>
    %cst_127 = arith.constant 3.200000e+01 : f32
    %331 = vector.broadcast %cst_127 : f32 to vector<8x1xf32>
    %332 = arith.divf %330, %331 : vector<8x1xf32>
    %333 = vector.broadcast %332 : vector<8x1xf32> to vector<8x32xf32>
    %334 = arith.subf %326, %333 : vector<8x32xf32>
    %335 = arith.mulf %334, %334 : vector<8x32xf32>
    %cst_128 = arith.constant dense<0.000000e+00> : vector<8xf32>
    %336 = vector.multi_reduction <add>, %335, %cst_128 [1] : vector<8x32xf32> to vector<8xf32>
    %337 = vector.shape_cast %336 : vector<8xf32> to vector<8x1xf32>
    %cst_129 = arith.constant 3.200000e+01 : f32
    %338 = vector.broadcast %cst_129 : f32 to vector<8x1xf32>
    %339 = arith.divf %337, %338 : vector<8x1xf32>
    %cst_130 = arith.constant 9.99999974E-6 : f32
    %340 = vector.broadcast %cst_130 : f32 to vector<8x1xf32>
    %341 = arith.addf %339, %340 : vector<8x1xf32>
    %342 = math.rsqrt %341 : vector<8x1xf32>
    %343 = vector.broadcast %342 : vector<8x1xf32> to vector<8x32xf32>
    %344 = arith.mulf %334, %343 : vector<8x32xf32>
    %345 = vector.broadcast %327 : vector<1x32xf32> to vector<8x32xf32>
    %346 = arith.mulf %344, %345 : vector<8x32xf32>
    %347 = vector.broadcast %328 : vector<1x32xf32> to vector<8x32xf32>
    %348 = arith.addf %346, %347 : vector<8x32xf32>
    %c648 = arith.constant 648 : index
    %c0_131 = arith.constant 0 : index
    %349 = vector.load %arg2[%c648, %c0_131] : memref<1224x128xf32, #tpu.memory_space<vmem>>, vector<32x96xf32>
    %cst_132 = arith.constant dense<0.000000e+00> : vector<8x96xf32>
    %350 = tpu.matmul %348, %349, %cst_132 {dimension_numbers = #tpu.dot_dimension_numbers<[1], [0], [0], [1], [0, 0, 1, 1], [], []>} : vector<8x32xf32>, vector<32x96xf32>, vector<8x96xf32> -> vector<8x96xf32>
    %c608 = arith.constant 608 : index
    %c0_133 = arith.constant 0 : index
    %351 = vector.load %arg2[%c608, %c0_133] : memref<1224x128xf32, #tpu.memory_space<vmem>>, vector<1x96xf32>
    %352 = vector.broadcast %351 : vector<1x96xf32> to vector<8x96xf32>
    %353 = arith.addf %350, %352 : vector<8x96xf32>
    %354 = vector.extract_strided_slice %353 {offsets = [0, 0], sizes = [8, 32], strides = [1, 1]} : vector<8x96xf32> to vector<8x32xf32>
    %355 = vector.extract_strided_slice %353 {offsets = [0, 32], sizes = [8, 32], strides = [1, 1]} : vector<8x96xf32> to vector<8x32xf32>
    %356 = vector.extract_strided_slice %353 {offsets = [0, 64], sizes = [8, 32], strides = [1, 1]} : vector<8x96xf32> to vector<8x32xf32>
    %c616 = arith.constant 616 : index
    %c0_134 = arith.constant 0 : index
    %357 = vector.load %arg2[%c616, %c0_134] : memref<1224x128xf32, #tpu.memory_space<vmem>>, vector<32x32xf32>
    %c600 = arith.constant 600 : index
    %c0_135 = arith.constant 0 : index
    %358 = vector.load %arg2[%c600, %c0_135] : memref<1224x128xf32, #tpu.memory_space<vmem>>, vector<1x32xf32>
    %359 = tpu.concatenate %355, %355, %355, %355 in 0 : vector<8x32xf32>, vector<8x32xf32>, vector<8x32xf32>, vector<8x32xf32> -> vector<32x32xf32>
    %360 = arith.mulf %359, %0 : vector<32x32xf32>
    %361 = tpu.concatenate %356, %356, %356, %356 in 0 : vector<8x32xf32>, vector<8x32xf32>, vector<8x32xf32>, vector<8x32xf32> -> vector<32x32xf32>
    %362 = arith.mulf %361, %0 : vector<32x32xf32>
    %cst_136 = arith.constant dense<0.000000e+00> : vector<8x32xf32>
    %363 = tpu.matmul %354, %360, %cst_136 {dimension_numbers = #tpu.dot_dimension_numbers<[1], [1], [0], [0], [0, 0, 1, 0], [], []>} : vector<8x32xf32>, vector<32x32xf32>, vector<8x32xf32> -> vector<8x32xf32>
    %cst_137 = arith.constant 0.353553385 : f32
    %364 = vector.broadcast %cst_137 : f32 to vector<8x32xf32>
    %365 = arith.mulf %363, %364 : vector<8x32xf32>
    %cst_138 = arith.constant dense<0xFF800000> : vector<8xf32>
    %366 = vector.multi_reduction <maximumf>, %365, %cst_138 [1] : vector<8x32xf32> to vector<8xf32>
    %367 = vector.shape_cast %366 : vector<8xf32> to vector<8x1xf32>
    %368 = vector.broadcast %367 : vector<8x1xf32> to vector<8x32xf32>
    %369 = arith.subf %365, %368 : vector<8x32xf32>
    %370 = math.exp %369 : vector<8x32xf32>
    %cst_139 = arith.constant dense<0.000000e+00> : vector<8x32xf32>
    %371 = tpu.matmul %370, %1, %cst_139 {dimension_numbers = #tpu.dot_dimension_numbers<[1], [0], [0], [1], [0, 0, 1, 1], [], []>} : vector<8x32xf32>, vector<32x32xf32>, vector<8x32xf32> -> vector<8x32xf32>
    %372 = tpu.reciprocal %371 {approx = true} : vector<8x32xf32> -> vector<8x32xf32>
    %373 = arith.mulf %370, %372 : vector<8x32xf32>
    %cst_140 = arith.constant dense<0.000000e+00> : vector<8x32xf32>
    %374 = tpu.matmul %373, %362, %cst_140 {dimension_numbers = #tpu.dot_dimension_numbers<[1], [0], [0], [1], [0, 0, 1, 1], [], []>} : vector<8x32xf32>, vector<32x32xf32>, vector<8x32xf32> -> vector<8x32xf32>
    %cst_141 = arith.constant dense<0.000000e+00> : vector<8x32xf32>
    %375 = tpu.matmul %374, %357, %cst_141 {dimension_numbers = #tpu.dot_dimension_numbers<[1], [0], [0], [1], [0, 0, 1, 1], [], []>} : vector<8x32xf32>, vector<32x32xf32>, vector<8x32xf32> -> vector<8x32xf32>
    %376 = vector.broadcast %358 : vector<1x32xf32> to vector<8x32xf32>
    %377 = arith.addf %375, %376 : vector<8x32xf32>
    %378 = arith.addf %348, %377 : vector<8x32xf32>
    %c560 = arith.constant 560 : index
    %c0_142 = arith.constant 0 : index
    %379 = vector.load %arg2[%c560, %c0_142] : memref<1224x128xf32, #tpu.memory_space<vmem>>, vector<1x32xf32>
    %c552 = arith.constant 552 : index
    %c0_143 = arith.constant 0 : index
    %380 = vector.load %arg2[%c552, %c0_143] : memref<1224x128xf32, #tpu.memory_space<vmem>>, vector<1x32xf32>
    %cst_144 = arith.constant dense<0.000000e+00> : vector<8xf32>
    %381 = vector.multi_reduction <add>, %378, %cst_144 [1] : vector<8x32xf32> to vector<8xf32>
    %382 = vector.shape_cast %381 : vector<8xf32> to vector<8x1xf32>
    %cst_145 = arith.constant 3.200000e+01 : f32
    %383 = vector.broadcast %cst_145 : f32 to vector<8x1xf32>
    %384 = arith.divf %382, %383 : vector<8x1xf32>
    %385 = vector.broadcast %384 : vector<8x1xf32> to vector<8x32xf32>
    %386 = arith.subf %378, %385 : vector<8x32xf32>
    %387 = arith.mulf %386, %386 : vector<8x32xf32>
    %cst_146 = arith.constant dense<0.000000e+00> : vector<8xf32>
    %388 = vector.multi_reduction <add>, %387, %cst_146 [1] : vector<8x32xf32> to vector<8xf32>
    %389 = vector.shape_cast %388 : vector<8xf32> to vector<8x1xf32>
    %cst_147 = arith.constant 3.200000e+01 : f32
    %390 = vector.broadcast %cst_147 : f32 to vector<8x1xf32>
    %391 = arith.divf %389, %390 : vector<8x1xf32>
    %cst_148 = arith.constant 9.99999974E-6 : f32
    %392 = vector.broadcast %cst_148 : f32 to vector<8x1xf32>
    %393 = arith.addf %391, %392 : vector<8x1xf32>
    %394 = math.rsqrt %393 : vector<8x1xf32>
    %395 = vector.broadcast %394 : vector<8x1xf32> to vector<8x32xf32>
    %396 = arith.mulf %386, %395 : vector<8x32xf32>
    %397 = vector.broadcast %379 : vector<1x32xf32> to vector<8x32xf32>
    %398 = arith.mulf %396, %397 : vector<8x32xf32>
    %399 = vector.broadcast %380 : vector<1x32xf32> to vector<8x32xf32>
    %400 = arith.addf %398, %399 : vector<8x32xf32>
    %c520 = arith.constant 520 : index
    %c0_149 = arith.constant 0 : index
    %401 = vector.load %arg2[%c520, %c0_149] : memref<1224x128xf32, #tpu.memory_space<vmem>>, vector<32x32xf32>
    %cst_150 = arith.constant dense<0.000000e+00> : vector<8x32xf32>
    %402 = tpu.matmul %400, %401, %cst_150 {dimension_numbers = #tpu.dot_dimension_numbers<[1], [0], [0], [1], [0, 0, 1, 1], [], []>} : vector<8x32xf32>, vector<32x32xf32>, vector<8x32xf32> -> vector<8x32xf32>
    %c448 = arith.constant 448 : index
    %c0_151 = arith.constant 0 : index
    %403 = vector.load %arg2[%c448, %c0_151] : memref<1224x128xf32, #tpu.memory_space<vmem>>, vector<1x32xf32>
    %404 = vector.broadcast %403 : vector<1x32xf32> to vector<8x32xf32>
    %405 = arith.addf %402, %404 : vector<8x32xf32>
    %c456 = arith.constant 456 : index
    %c0_152 = arith.constant 0 : index
    %406 = vector.load %arg2[%c456, %c0_152] : memref<1224x128xf32, #tpu.memory_space<vmem>>, vector<32x64xf32>
    %cst_153 = arith.constant dense<0.000000e+00> : vector<8x64xf32>
    %407 = tpu.matmul %205, %406, %cst_153 {dimension_numbers = #tpu.dot_dimension_numbers<[1], [0], [0], [1], [0, 0, 1, 1], [], []>} : vector<8x32xf32>, vector<32x64xf32>, vector<8x64xf32> -> vector<8x64xf32>
    %c432 = arith.constant 432 : index
    %c0_154 = arith.constant 0 : index
    %408 = vector.load %arg2[%c432, %c0_154] : memref<1224x128xf32, #tpu.memory_space<vmem>>, vector<1x64xf32>
    %409 = vector.broadcast %408 : vector<1x64xf32> to vector<8x64xf32>
    %410 = arith.addf %407, %409 : vector<8x64xf32>
    %411 = vector.extract_strided_slice %410 {offsets = [0, 0], sizes = [8, 32], strides = [1, 1]} : vector<8x64xf32> to vector<8x32xf32>
    %412 = vector.extract_strided_slice %410 {offsets = [0, 32], sizes = [8, 32], strides = [1, 1]} : vector<8x64xf32> to vector<8x32xf32>
    %c488 = arith.constant 488 : index
    %c0_155 = arith.constant 0 : index
    %413 = vector.load %arg2[%c488, %c0_155] : memref<1224x128xf32, #tpu.memory_space<vmem>>, vector<32x32xf32>
    %c440 = arith.constant 440 : index
    %c0_156 = arith.constant 0 : index
    %414 = vector.load %arg2[%c440, %c0_156] : memref<1224x128xf32, #tpu.memory_space<vmem>>, vector<1x32xf32>
    %415 = tpu.concatenate %411, %411, %411, %411 in 0 : vector<8x32xf32>, vector<8x32xf32>, vector<8x32xf32>, vector<8x32xf32> -> vector<32x32xf32>
    %416 = arith.mulf %415, %0 : vector<32x32xf32>
    %417 = tpu.concatenate %412, %412, %412, %412 in 0 : vector<8x32xf32>, vector<8x32xf32>, vector<8x32xf32>, vector<8x32xf32> -> vector<32x32xf32>
    %418 = arith.mulf %417, %0 : vector<32x32xf32>
    %cst_157 = arith.constant dense<0.000000e+00> : vector<8x32xf32>
    %419 = tpu.matmul %405, %416, %cst_157 {dimension_numbers = #tpu.dot_dimension_numbers<[1], [1], [0], [0], [0, 0, 1, 0], [], []>} : vector<8x32xf32>, vector<32x32xf32>, vector<8x32xf32> -> vector<8x32xf32>
    %cst_158 = arith.constant 0.353553385 : f32
    %420 = vector.broadcast %cst_158 : f32 to vector<8x32xf32>
    %421 = arith.mulf %419, %420 : vector<8x32xf32>
    %cst_159 = arith.constant dense<0xFF800000> : vector<8xf32>
    %422 = vector.multi_reduction <maximumf>, %421, %cst_159 [1] : vector<8x32xf32> to vector<8xf32>
    %423 = vector.shape_cast %422 : vector<8xf32> to vector<8x1xf32>
    %424 = vector.broadcast %423 : vector<8x1xf32> to vector<8x32xf32>
    %425 = arith.subf %421, %424 : vector<8x32xf32>
    %426 = math.exp %425 : vector<8x32xf32>
    %cst_160 = arith.constant dense<0.000000e+00> : vector<8x32xf32>
    %427 = tpu.matmul %426, %1, %cst_160 {dimension_numbers = #tpu.dot_dimension_numbers<[1], [0], [0], [1], [0, 0, 1, 1], [], []>} : vector<8x32xf32>, vector<32x32xf32>, vector<8x32xf32> -> vector<8x32xf32>
    %428 = tpu.reciprocal %427 {approx = true} : vector<8x32xf32> -> vector<8x32xf32>
    %429 = arith.mulf %426, %428 : vector<8x32xf32>
    %cst_161 = arith.constant dense<0.000000e+00> : vector<8x32xf32>
    %430 = tpu.matmul %429, %418, %cst_161 {dimension_numbers = #tpu.dot_dimension_numbers<[1], [0], [0], [1], [0, 0, 1, 1], [], []>} : vector<8x32xf32>, vector<32x32xf32>, vector<8x32xf32> -> vector<8x32xf32>
    %cst_162 = arith.constant dense<0.000000e+00> : vector<8x32xf32>
    %431 = tpu.matmul %430, %413, %cst_162 {dimension_numbers = #tpu.dot_dimension_numbers<[1], [0], [0], [1], [0, 0, 1, 1], [], []>} : vector<8x32xf32>, vector<32x32xf32>, vector<8x32xf32> -> vector<8x32xf32>
    %432 = vector.broadcast %414 : vector<1x32xf32> to vector<8x32xf32>
    %433 = arith.addf %431, %432 : vector<8x32xf32>
    %434 = arith.addf %400, %433 : vector<8x32xf32>
    %c576 = arith.constant 576 : index
    %c0_163 = arith.constant 0 : index
    %435 = vector.load %arg2[%c576, %c0_163] : memref<1224x128xf32, #tpu.memory_space<vmem>>, vector<1x32xf32>
    %c568 = arith.constant 568 : index
    %c0_164 = arith.constant 0 : index
    %436 = vector.load %arg2[%c568, %c0_164] : memref<1224x128xf32, #tpu.memory_space<vmem>>, vector<1x32xf32>
    %cst_165 = arith.constant dense<0.000000e+00> : vector<8xf32>
    %437 = vector.multi_reduction <add>, %434, %cst_165 [1] : vector<8x32xf32> to vector<8xf32>
    %438 = vector.shape_cast %437 : vector<8xf32> to vector<8x1xf32>
    %cst_166 = arith.constant 3.200000e+01 : f32
    %439 = vector.broadcast %cst_166 : f32 to vector<8x1xf32>
    %440 = arith.divf %438, %439 : vector<8x1xf32>
    %441 = vector.broadcast %440 : vector<8x1xf32> to vector<8x32xf32>
    %442 = arith.subf %434, %441 : vector<8x32xf32>
    %443 = arith.mulf %442, %442 : vector<8x32xf32>
    %cst_167 = arith.constant dense<0.000000e+00> : vector<8xf32>
    %444 = vector.multi_reduction <add>, %443, %cst_167 [1] : vector<8x32xf32> to vector<8xf32>
    %445 = vector.shape_cast %444 : vector<8xf32> to vector<8x1xf32>
    %cst_168 = arith.constant 3.200000e+01 : f32
    %446 = vector.broadcast %cst_168 : f32 to vector<8x1xf32>
    %447 = arith.divf %445, %446 : vector<8x1xf32>
    %cst_169 = arith.constant 9.99999974E-6 : f32
    %448 = vector.broadcast %cst_169 : f32 to vector<8x1xf32>
    %449 = arith.addf %447, %448 : vector<8x1xf32>
    %450 = math.rsqrt %449 : vector<8x1xf32>
    %451 = vector.broadcast %450 : vector<8x1xf32> to vector<8x32xf32>
    %452 = arith.mulf %442, %451 : vector<8x32xf32>
    %453 = vector.broadcast %435 : vector<1x32xf32> to vector<8x32xf32>
    %454 = arith.mulf %452, %453 : vector<8x32xf32>
    %455 = vector.broadcast %436 : vector<1x32xf32> to vector<8x32xf32>
    %456 = arith.addf %454, %455 : vector<8x32xf32>
    %c680 = arith.constant 680 : index
    %c0_170 = arith.constant 0 : index
    %457 = vector.load %arg2[%c680, %c0_170] : memref<1224x128xf32, #tpu.memory_space<vmem>>, vector<32x32xf32>
    %cst_171 = arith.constant dense<0.000000e+00> : vector<8x32xf32>
    %458 = tpu.matmul %456, %457, %cst_171 {dimension_numbers = #tpu.dot_dimension_numbers<[1], [0], [0], [1], [0, 0, 1, 1], [], []>} : vector<8x32xf32>, vector<32x32xf32>, vector<8x32xf32> -> vector<8x32xf32>
    %c416 = arith.constant 416 : index
    %c0_172 = arith.constant 0 : index
    %459 = vector.load %arg2[%c416, %c0_172] : memref<1224x128xf32, #tpu.memory_space<vmem>>, vector<1x32xf32>
    %460 = vector.broadcast %459 : vector<1x32xf32> to vector<8x32xf32>
    %461 = arith.addf %458, %460 : vector<8x32xf32>
    %cst_173 = arith.constant 0.000000e+00 : f32
    %462 = vector.broadcast %cst_173 : f32 to vector<8x32xf32>
    %463 = arith.maximumf %461, %462 : vector<8x32xf32>
    %c712 = arith.constant 712 : index
    %c0_174 = arith.constant 0 : index
    %464 = vector.load %arg2[%c712, %c0_174] : memref<1224x128xf32, #tpu.memory_space<vmem>>, vector<32x32xf32>
    %cst_175 = arith.constant dense<0.000000e+00> : vector<8x32xf32>
    %465 = tpu.matmul %463, %464, %cst_175 {dimension_numbers = #tpu.dot_dimension_numbers<[1], [0], [0], [1], [0, 0, 1, 1], [], []>} : vector<8x32xf32>, vector<32x32xf32>, vector<8x32xf32> -> vector<8x32xf32>
    %c424 = arith.constant 424 : index
    %c0_176 = arith.constant 0 : index
    %466 = vector.load %arg2[%c424, %c0_176] : memref<1224x128xf32, #tpu.memory_space<vmem>>, vector<1x32xf32>
    %467 = vector.broadcast %466 : vector<1x32xf32> to vector<8x32xf32>
    %468 = arith.addf %465, %467 : vector<8x32xf32>
    %469 = arith.addf %456, %468 : vector<8x32xf32>
    %c592 = arith.constant 592 : index
    %c0_177 = arith.constant 0 : index
    %470 = vector.load %arg2[%c592, %c0_177] : memref<1224x128xf32, #tpu.memory_space<vmem>>, vector<1x32xf32>
    %c584 = arith.constant 584 : index
    %c0_178 = arith.constant 0 : index
    %471 = vector.load %arg2[%c584, %c0_178] : memref<1224x128xf32, #tpu.memory_space<vmem>>, vector<1x32xf32>
    %cst_179 = arith.constant dense<0.000000e+00> : vector<8xf32>
    %472 = vector.multi_reduction <add>, %469, %cst_179 [1] : vector<8x32xf32> to vector<8xf32>
    %473 = vector.shape_cast %472 : vector<8xf32> to vector<8x1xf32>
    %cst_180 = arith.constant 3.200000e+01 : f32
    %474 = vector.broadcast %cst_180 : f32 to vector<8x1xf32>
    %475 = arith.divf %473, %474 : vector<8x1xf32>
    %476 = vector.broadcast %475 : vector<8x1xf32> to vector<8x32xf32>
    %477 = arith.subf %469, %476 : vector<8x32xf32>
    %478 = arith.mulf %477, %477 : vector<8x32xf32>
    %cst_181 = arith.constant dense<0.000000e+00> : vector<8xf32>
    %479 = vector.multi_reduction <add>, %478, %cst_181 [1] : vector<8x32xf32> to vector<8xf32>
    %480 = vector.shape_cast %479 : vector<8xf32> to vector<8x1xf32>
    %cst_182 = arith.constant 3.200000e+01 : f32
    %481 = vector.broadcast %cst_182 : f32 to vector<8x1xf32>
    %482 = arith.divf %480, %481 : vector<8x1xf32>
    %cst_183 = arith.constant 9.99999974E-6 : f32
    %483 = vector.broadcast %cst_183 : f32 to vector<8x1xf32>
    %484 = arith.addf %482, %483 : vector<8x1xf32>
    %485 = math.rsqrt %484 : vector<8x1xf32>
    %486 = vector.broadcast %485 : vector<8x1xf32> to vector<8x32xf32>
    %487 = arith.mulf %477, %486 : vector<8x32xf32>
    %488 = vector.broadcast %470 : vector<1x32xf32> to vector<8x32xf32>
    %489 = arith.mulf %487, %488 : vector<8x32xf32>
    %490 = vector.broadcast %471 : vector<1x32xf32> to vector<8x32xf32>
    %491 = arith.addf %489, %490 : vector<8x32xf32>
    %c752 = arith.constant 752 : index
    %c0_184 = arith.constant 0 : index
    %492 = vector.load %arg2[%c752, %c0_184] : memref<1224x128xf32, #tpu.memory_space<vmem>>, vector<1x32xf32>
    %c744 = arith.constant 744 : index
    %c0_185 = arith.constant 0 : index
    %493 = vector.load %arg2[%c744, %c0_185] : memref<1224x128xf32, #tpu.memory_space<vmem>>, vector<1x32xf32>
    %cst_186 = arith.constant dense<0.000000e+00> : vector<8xf32>
    %494 = vector.multi_reduction <add>, %491, %cst_186 [1] : vector<8x32xf32> to vector<8xf32>
    %495 = vector.shape_cast %494 : vector<8xf32> to vector<8x1xf32>
    %cst_187 = arith.constant 3.200000e+01 : f32
    %496 = vector.broadcast %cst_187 : f32 to vector<8x1xf32>
    %497 = arith.divf %495, %496 : vector<8x1xf32>
    %498 = vector.broadcast %497 : vector<8x1xf32> to vector<8x32xf32>
    %499 = arith.subf %491, %498 : vector<8x32xf32>
    %500 = arith.mulf %499, %499 : vector<8x32xf32>
    %cst_188 = arith.constant dense<0.000000e+00> : vector<8xf32>
    %501 = vector.multi_reduction <add>, %500, %cst_188 [1] : vector<8x32xf32> to vector<8xf32>
    %502 = vector.shape_cast %501 : vector<8xf32> to vector<8x1xf32>
    %cst_189 = arith.constant 3.200000e+01 : f32
    %503 = vector.broadcast %cst_189 : f32 to vector<8x1xf32>
    %504 = arith.divf %502, %503 : vector<8x1xf32>
    %cst_190 = arith.constant 9.99999974E-6 : f32
    %505 = vector.broadcast %cst_190 : f32 to vector<8x1xf32>
    %506 = arith.addf %504, %505 : vector<8x1xf32>
    %507 = math.rsqrt %506 : vector<8x1xf32>
    %508 = vector.broadcast %507 : vector<8x1xf32> to vector<8x32xf32>
    %509 = arith.mulf %499, %508 : vector<8x32xf32>
    %510 = vector.broadcast %492 : vector<1x32xf32> to vector<8x32xf32>
    %511 = arith.mulf %509, %510 : vector<8x32xf32>
    %512 = vector.broadcast %493 : vector<1x32xf32> to vector<8x32xf32>
    %513 = arith.addf %511, %512 : vector<8x32xf32>
    %c56 = arith.constant 56 : index
    %c0_191 = arith.constant 0 : index
    %514 = vector.load %arg2[%c56, %c0_191] : memref<1224x128xf32, #tpu.memory_space<vmem>>, vector<32x36xf32>
    %cst_192 = arith.constant dense<0.000000e+00> : vector<8x36xf32>
    %515 = tpu.matmul %513, %514, %cst_192 {dimension_numbers = #tpu.dot_dimension_numbers<[1], [0], [0], [1], [0, 0, 1, 1], [], []>} : vector<8x32xf32>, vector<32x36xf32>, vector<8x36xf32> -> vector<8x36xf32>
    %c48 = arith.constant 48 : index
    %c0_193 = arith.constant 0 : index
    %516 = vector.load %arg2[%c48, %c0_193] : memref<1224x128xf32, #tpu.memory_space<vmem>>, vector<1x1xf32>
    %517 = vector.broadcast %516 : vector<1x1xf32> to vector<8x36xf32>
    %518 = arith.addf %515, %517 : vector<8x36xf32>
    %cst_194 = arith.constant 5.000000e-01 : f32
    %519 = vector.broadcast %cst_194 : f32 to vector<8x36xf32>
    %520 = arith.mulf %519, %518 : vector<8x36xf32>
    %521 = math.tanh %520 : vector<8x36xf32>
    %cst_195 = arith.constant 1.000000e+00 : f32
    %522 = vector.broadcast %cst_195 : f32 to vector<8x36xf32>
    %523 = arith.addf %521, %522 : vector<8x36xf32>
    %cst_196 = arith.constant 5.000000e-01 : f32
    %524 = vector.broadcast %cst_196 : f32 to vector<8x36xf32>
    %525 = arith.mulf %524, %523 : vector<8x36xf32>
    %c48_197 = arith.constant 48 : index
    %c0_198 = arith.constant 0 : index
    %526 = vector.load %arg2[%c48_197, %c0_198] : memref<1224x128xf32, #tpu.memory_space<vmem>>, vector<1x1xf32>
    %cst_199 = arith.constant 5.000000e-01 : f32
    %527 = vector.broadcast %cst_199 : f32 to vector<1x1xf32>
    %528 = arith.mulf %527, %526 : vector<1x1xf32>
    %529 = math.tanh %528 : vector<1x1xf32>
    %cst_200 = arith.constant 1.000000e+00 : f32
    %530 = vector.broadcast %cst_200 : f32 to vector<1x1xf32>
    %531 = arith.addf %529, %530 : vector<1x1xf32>
    %cst_201 = arith.constant 5.000000e-01 : f32
    %532 = vector.broadcast %cst_201 : f32 to vector<1x1xf32>
    %533 = arith.mulf %532, %531 : vector<1x1xf32>
    %cst_202 = arith.constant 0.000000e+00 : f32
    %534 = vector.broadcast %cst_202 : f32 to vector<1x20xf32>
    %535 = vector.broadcast %533 : vector<1x1xf32> to vector<1x20xf32>
    %536 = arith.addf %534, %535 : vector<1x20xf32>
    %537 = vector.extract_strided_slice %525 {offsets = [0, 0], sizes = [1, 36], strides = [1, 1]} : vector<8x36xf32> to vector<1x36xf32>
    %c0_203 = arith.constant 0 : index
    %c0_204 = arith.constant 0 : index
    %c0_205 = arith.constant 0 : index
    %538 = vector.load %arg3[%c0_203, %c0_204, %c0_205] : memref<1x1x308xf32, #tpu.memory_space<vmem>>, vector<1x1x36xf32>
    %539 = vector.shape_cast %538 : vector<1x1x36xf32> to vector<1x36xf32>
    %540 = vector.shape_cast %537 : vector<1x36xf32> to vector<1x1x36xf32>
    tpu.vector_store %arg3[%c0_203, %c0_204, %c0_205], %540 {strides = array<i32>} : memref<1x1x308xf32, #tpu.memory_space<vmem>>, vector<1x1x36xf32>,
    %541 = vector.extract_strided_slice %525 {offsets = [1, 0], sizes = [1, 36], strides = [1, 1]} : vector<8x36xf32> to vector<1x36xf32>
    %c0_206 = arith.constant 0 : index
    %c0_207 = arith.constant 0 : index
    %c36 = arith.constant 36 : index
    %542 = vector.load %arg3[%c0_206, %c0_207, %c36] : memref<1x1x308xf32, #tpu.memory_space<vmem>>, vector<1x1x36xf32>
    %543 = vector.shape_cast %542 : vector<1x1x36xf32> to vector<1x36xf32>
    %544 = vector.shape_cast %541 : vector<1x36xf32> to vector<1x1x36xf32>
    tpu.vector_store %arg3[%c0_206, %c0_207, %c36], %544 {strides = array<i32>} : memref<1x1x308xf32, #tpu.memory_space<vmem>>, vector<1x1x36xf32>,
    %545 = vector.extract_strided_slice %525 {offsets = [2, 0], sizes = [1, 36], strides = [1, 1]} : vector<8x36xf32> to vector<1x36xf32>
    %c0_208 = arith.constant 0 : index
    %c0_209 = arith.constant 0 : index
    %c72 = arith.constant 72 : index
    %546 = vector.load %arg3[%c0_208, %c0_209, %c72] : memref<1x1x308xf32, #tpu.memory_space<vmem>>, vector<1x1x36xf32>
    %547 = vector.shape_cast %546 : vector<1x1x36xf32> to vector<1x36xf32>
    %548 = vector.shape_cast %545 : vector<1x36xf32> to vector<1x1x36xf32>
    tpu.vector_store %arg3[%c0_208, %c0_209, %c72], %548 {strides = array<i32>} : memref<1x1x308xf32, #tpu.memory_space<vmem>>, vector<1x1x36xf32>,
    %549 = vector.extract_strided_slice %525 {offsets = [3, 0], sizes = [1, 36], strides = [1, 1]} : vector<8x36xf32> to vector<1x36xf32>
    %c0_210 = arith.constant 0 : index
    %c0_211 = arith.constant 0 : index
    %c108 = arith.constant 108 : index
    %550 = vector.load %arg3[%c0_210, %c0_211, %c108] : memref<1x1x308xf32, #tpu.memory_space<vmem>>, vector<1x1x36xf32>
    %551 = vector.shape_cast %550 : vector<1x1x36xf32> to vector<1x36xf32>
    %552 = vector.shape_cast %549 : vector<1x36xf32> to vector<1x1x36xf32>
    tpu.vector_store %arg3[%c0_210, %c0_211, %c108], %552 {strides = array<i32>} : memref<1x1x308xf32, #tpu.memory_space<vmem>>, vector<1x1x36xf32>,
    %553 = vector.extract_strided_slice %525 {offsets = [4, 0], sizes = [1, 36], strides = [1, 1]} : vector<8x36xf32> to vector<1x36xf32>
    %c0_212 = arith.constant 0 : index
    %c0_213 = arith.constant 0 : index
    %c144 = arith.constant 144 : index
    %554 = vector.load %arg3[%c0_212, %c0_213, %c144] : memref<1x1x308xf32, #tpu.memory_space<vmem>>, vector<1x1x36xf32>
    %555 = vector.shape_cast %554 : vector<1x1x36xf32> to vector<1x36xf32>
    %556 = vector.shape_cast %553 : vector<1x36xf32> to vector<1x1x36xf32>
    tpu.vector_store %arg3[%c0_212, %c0_213, %c144], %556 {strides = array<i32>} : memref<1x1x308xf32, #tpu.memory_space<vmem>>, vector<1x1x36xf32>,
    %557 = vector.extract_strided_slice %525 {offsets = [5, 0], sizes = [1, 36], strides = [1, 1]} : vector<8x36xf32> to vector<1x36xf32>
    %c0_214 = arith.constant 0 : index
    %c0_215 = arith.constant 0 : index
    %c180 = arith.constant 180 : index
    %558 = vector.load %arg3[%c0_214, %c0_215, %c180] : memref<1x1x308xf32, #tpu.memory_space<vmem>>, vector<1x1x36xf32>
    %559 = vector.shape_cast %558 : vector<1x1x36xf32> to vector<1x36xf32>
    %560 = vector.shape_cast %557 : vector<1x36xf32> to vector<1x1x36xf32>
    tpu.vector_store %arg3[%c0_214, %c0_215, %c180], %560 {strides = array<i32>} : memref<1x1x308xf32, #tpu.memory_space<vmem>>, vector<1x1x36xf32>,
    %561 = vector.extract_strided_slice %525 {offsets = [6, 0], sizes = [1, 36], strides = [1, 1]} : vector<8x36xf32> to vector<1x36xf32>
    %c0_216 = arith.constant 0 : index
    %c0_217 = arith.constant 0 : index
    %c216 = arith.constant 216 : index
    %562 = vector.load %arg3[%c0_216, %c0_217, %c216] : memref<1x1x308xf32, #tpu.memory_space<vmem>>, vector<1x1x36xf32>
    %563 = vector.shape_cast %562 : vector<1x1x36xf32> to vector<1x36xf32>
    %564 = vector.shape_cast %561 : vector<1x36xf32> to vector<1x1x36xf32>
    tpu.vector_store %arg3[%c0_216, %c0_217, %c216], %564 {strides = array<i32>} : memref<1x1x308xf32, #tpu.memory_space<vmem>>, vector<1x1x36xf32>,
    %565 = vector.extract_strided_slice %525 {offsets = [7, 0], sizes = [1, 36], strides = [1, 1]} : vector<8x36xf32> to vector<1x36xf32>
    %c0_218 = arith.constant 0 : index
    %c0_219 = arith.constant 0 : index
    %c252 = arith.constant 252 : index
    %566 = vector.load %arg3[%c0_218, %c0_219, %c252] : memref<1x1x308xf32, #tpu.memory_space<vmem>>, vector<1x1x36xf32>
    %567 = vector.shape_cast %566 : vector<1x1x36xf32> to vector<1x36xf32>
    %568 = vector.shape_cast %565 : vector<1x36xf32> to vector<1x1x36xf32>
    tpu.vector_store %arg3[%c0_218, %c0_219, %c252], %568 {strides = array<i32>} : memref<1x1x308xf32, #tpu.memory_space<vmem>>, vector<1x1x36xf32>,
    %c0_220 = arith.constant 0 : index
    %c0_221 = arith.constant 0 : index
    %c288_222 = arith.constant 288 : index
    %569 = vector.load %arg3[%c0_220, %c0_221, %c288_222] : memref<1x1x308xf32, #tpu.memory_space<vmem>>, vector<1x1x20xf32>
    %570 = vector.shape_cast %569 : vector<1x1x20xf32> to vector<1x20xf32>
    %571 = vector.shape_cast %536 : vector<1x20xf32> to vector<1x1x20xf32>
    tpu.vector_store %arg3[%c0_220, %c0_221, %c288_222], %571 {strides = array<i32>} : memref<1x1x308xf32, #tpu.memory_space<vmem>>, vector<1x1x20xf32>,
    return
  }
  func.func @transform_0(%arg0: i32) -> (i32, i32) {
    %c0_i32 = arith.constant 0 : i32
    %c0_i32_0 = arith.constant 0 : i32
    return %arg0, %c0_i32 : i32, i32
  }
  func.func @transform_1(%arg0: i32) -> (i32, i32) {
    %c0_i32 = arith.constant 0 : i32
    %c0_i32_0 = arith.constant 0 : i32
    %c0_i32_1 = arith.constant 0 : i32
    return %c0_i32, %c0_i32_0 : i32, i32
  }
  func.func @transform_2(%arg0: i32) -> (i32, i32, i32) {
    %c0_i32 = arith.constant 0 : i32
    %c0_i32_0 = arith.constant 0 : i32
    %c0_i32_1 = arith.constant 0 : i32
    return %arg0, %c0_i32, %c0_i32_0 : i32, i32, i32
  }
}

</mosaic_0001>

<llo_original>
// kernel: forward.1
$region0: #{forward.1}
  #allocation0 [shape = 'u32[]', space=smem, size = 0x4, offset = 0x4, fixed_abs, tag = 'smem constant byte address 0x4 - core index']
  #allocation1 [shape = 'u32[144,128]{1,0:T(1,128)}', space=vmem, size = 0x12000, scoped, tag = 'internal scratch']
  %s0 = inlined_call_operand.vmem [shape: f32[16,36], index: 0, kind: input, shape index: {}]
  %s1 = inlined_call_operand.hbm [shape: f32[1224,128], index: 1, kind: input, shape index: {}]
  %s2 = inlined_call_operand.vmem [shape: f32[2,1,308], index: 2, kind: output, shape index: {}]
  %s3 = sld [smem:[#allocation0]]
  $region45: #{forward.1} parent=0
    _
  %s5 = ssub.s32 1, %s3
  %s6 = scalar_select 0, %s5, %s3
  $region1: #{forward.1} parent=0
    #allocation2 [shape = 'u8[626688]{0}', space=vmem, size = 0x99000, scoped, tag = 'input window, operand 1, single buffered']
    #allocation3 [shape = 's32[2]{0}', space=sflag, size = 0x8, scoped, tag = 'scoped memory for forward.1']
    %7 = vsyncpa [#allocation3], 0
    loop: start=0, step=1, limit=4
    $region2: #{forward.1} parent=1 // loop_pre_header
      _
    $region3: #{forward.1} parent=1 // loop_header
      %s9 = sphi 0, %s13
      %p10 = scmp.ge.s32.totalorder %s9, 4
      %s19 = sphi 0, %s21
      %s22 = sphi 0, %s19
      %s23 = sphi 0, %s22
      %s39 = sphi 0, %s23
      %s43 = sphi 0, %s43
      %s45 = sphi 0, %s43
      %s46 = sphi 0, %s45
      %s60 = sphi 0, %s46
      %s66 = sphi 0, %s68
      %s69 = sphi 0, %s66
      %s70 = sphi 0, %s69
      %s86 = sphi 0, %s70
    $region4: #{forward.1} parent=1 // loop_header_branch
      %12 = sbr.rel (%p10) target = $region8
    $region5: #{forward.1} parent=1 // loop_body
      %s14 = ssub.s32 %s9, 1
      %s15 = ssub.s32 %s9, 2
      %s16 = sadd.s32 %s9, 1
      %s17 = ssub.s32 %s9, %s16
      %p18 = scmp.eq.s32.totalorder %s17, 0
      %s20 = sadd.s32 %s19, 1
      %s21 = scalar_select %p18, %s19, %s20
      %p24 = pneg %p18
      %p25 = scmp.eq.s32.totalorder %s9, 1
      %p26 = por %p24, %p25
      %p27 = scmp.ne.s32.totalorder %s19, %s22
      %p28 = scmp.eq.s32.totalorder %s9, 0
      %p29 = por %p27, %p28
      %p30 = scmp.ne.s32.totalorder %s19, %s22
      %p31 = scmp.eq.s32.totalorder %s14, 1
      %p32 = por %p30, %p31
      %p33 = scmp.ne.s32.totalorder %s22, %s23
      %p34 = scmp.eq.s32.totalorder %s14, 0
      %p35 = por %p33, %p34
      %p36 = scmp.ne.s32.totalorder %s22, %s23
      %p37 = scmp.eq.s32.totalorder %s15, 1
      %p38 = por %p36, %p37
      %p40 = scmp.ne.s32.totalorder %s23, %s39
      %p41 = scmp.eq.s32.totalorder %s15, 0
      %p42 = por %p40, %p41
      %s44 = sadd.s32 %s43, 1
      %p47 = scmp.eq.s32.totalorder %s9, 1
      %p48 = scmp.ne.s32.totalorder %s43, %s45
      %p49 = scmp.eq.s32.totalorder %s9, 0
      %p50 = por %p48, %p49
      %p51 = scmp.ne.s32.totalorder %s43, %s45
      %p52 = scmp.eq.s32.totalorder %s14, 1
      %p53 = por %p51, %p52
      %p54 = scmp.ne.s32.totalorder %s45, %s46
      %p55 = scmp.eq.s32.totalorder %s14, 0
      %p56 = por %p54, %p55
      %p57 = scmp.ne.s32.totalorder %s45, %s46
      %p58 = scmp.eq.s32.totalorder %s15, 1
      %p59 = por %p57, %p58
      %p61 = scmp.ne.s32.totalorder %s46, %s60
      %p62 = scmp.eq.s32.totalorder %s15, 0
      %p63 = por %p61, %p62
      %s64 = ssub.s32 %s9, %s16
      %p65 = scmp.eq.s32.totalorder %s64, 0
      %s67 = sadd.s32 %s66, 1
      %s68 = scalar_select %p65, %s66, %s67
      %p71 = pneg %p65
      %p72 = scmp.eq.s32.totalorder %s9, 1
      %p73 = por %p71, %p72
      %p74 = scmp.ne.s32.totalorder %s66, %s69
      %p75 = scmp.eq.s32.totalorder %s9, 0
      %p76 = por %p74, %p75
      %p77 = scmp.ne.s32.totalorder %s66, %s69
      %p78 = scmp.eq.s32.totalorder %s14, 1
      %p79 = por %p77, %p78
      %p80 = scmp.ne.s32.totalorder %s69, %s70
      %p81 = scmp.eq.s32.totalorder %s14, 0
      %p82 = por %p80, %p81
      %p83 = scmp.ne.s32.totalorder %s69, %s70
      %p84 = scmp.eq.s32.totalorder %s15, 1
      %p85 = por %p83, %p84
      %p87 = scmp.ne.s32.totalorder %s70, %s86
      %p88 = scmp.eq.s32.totalorder %s15, 0
      %p89 = por %p87, %p88
      %p90 = scmp.le.s32.totalorder 1, %s9
      %p91 = scmp.lt.s32.totalorder %s9, 3
      %p92 = pnand %p90, %p91
      %p93 = pneg %p92
      // Predicated region
      $region9: #{forward.1} parent=5 // pred_check
        _
      $region10: #{forward.1} parent=5 // pred_check_branch
        %95 = sbr.rel (%p92) target = $region12
      $region11: #{forward.1} parent=5 // pred_region
        %s96 = ssub.s32 %s9, 1
        // Predicated region
        $region13: #{forward.1} parent=11 // pred_check
          %p97 = pneg %p56
        $region14: #{forward.1} parent=11 // pred_check_branch
          %99 = sbr.rel (%p97) target = $region16
        $region15: #{forward.1} parent=11 // pred_region
          %s101 = ssub.s32 19584, 19584
          %102 = vsyncadd [#allocation3], %s101
          %s103 = sshll.u32 [#allocation2], 4
          %s104 = int_to_ptr.vmem [resolvable:$true] %s103
          %109 = dma.hbm_to_vmem [thread:$0]  %s1, 19584, %s104, [#allocation3], 128, 128, 8
        $region16: #{forward.1} parent=11 // pred_fallthru
          _
      $region12: #{forward.1} parent=5 // pred_fallthru
        _
      %p110 = scmp.lt.s32.totalorder %s9, 2
      // Predicated region
      $region17: #{forward.1} parent=5 // pred_check
        %p111 = pneg %p110
      $region18: #{forward.1} parent=5 // pred_check_branch
        %113 = sbr.rel (%p111) target = $region20
      $region19: #{forward.1} parent=5 // pred_region
        // Predicated region
        $region21: #{forward.1} parent=19 // pred_check
          %p114 = pneg %p29
        $region22: #{forward.1} parent=19 // pred_check_branch
          %116 = sbr.rel (%p114) target = $region24
        $region23: #{forward.1} parent=19 // pred_region
          %p117 = scmp.lt.s32.totalorder %s9, 1
          %s118 = scalar_select %p117, %s9, 1
          %s119 = smul.addr %s118, 8
          %s120 = scalar_lea.vmem %s0, %s119
        $region24: #{forward.1} parent=19 // pred_fallthru
          _
      $region20: #{forward.1} parent=5 // pred_fallthru
        _
      %p121 = scmp.le.s32.totalorder 1, %s9
      %p122 = scmp.lt.s32.totalorder %s9, 3
      %p123 = pnand %p121, %p122
      %p124 = pneg %p123
      // Predicated region
      $region25: #{forward.1} parent=5 // pred_check
        _
      $region26: #{forward.1} parent=5 // pred_check_branch
        %126 = sbr.rel (%p123) target = $region28
      $region27: #{forward.1} parent=5 // pred_region
        %s127 = ssub.s32 %s9, 1
        // Predicated region
        $region29: #{forward.1} parent=27 // pred_check
          %p128 = pneg %p56
        $region30: #{forward.1} parent=27 // pred_check_branch
          %130 = sbr.rel (%p128) target = $region32
        $region31: #{forward.1} parent=27 // pred_region
          %131 = dma.done [#allocation3], 19584
        $region32: #{forward.1} parent=27 // pred_fallthru
          _
        %p132 = scmp.lt.s32.totalorder %s14, 1
        %s133 = scalar_select %p132, %s14, 1
        %s134 = smul.addr %s133, 8
        %s135 = scalar_lea.vmem %s0, %s134
        %p136 = pneg %p35
        %p137 = pneg %p32
        %p138 = pneg %p56
        %p139 = pneg %p53
        %p140 = pneg %p82
        %p141 = pneg %p79
        %p142 = scmp.lt.s32.totalorder %s14, 1
        %s143 = scalar_select %p142, %s14, 1
        %s144 = smul.addr %s143, 3
        %s145 = scalar_lea.vmem %s2, %s144
        %p146 = scmp.lt.s32.totalorder %s14, 1
        %s147 = scalar_select %p146, %s14, 1
        %s148 = smul.addr %s147, 8
        %s149 = scalar_lea.vmem %s0, %s148
        %p150 = scmp.lt.s32.totalorder %s14, 1
        %s151 = scalar_select %p150, %s14, 1
        %s152 = smul.addr %s151, 3
        %s153 = scalar_lea.vmem %s2, %s152
        %v154 = vld [vmem:[#allocation2 + $0x488] sm:$0xff]
        %v155 = vld [vmem:[#allocation2 + $0x490] sm:$0xff]
        %v156 = vld [vmem:[#allocation2 + $0x498] sm:$0xff]
        %v157 = vld [vmem:[#allocation2 + $0x4a0] sm:$0xff]
        %v158 = vld [vmem:[#allocation2 + $0x4a8] sm:$0xff]
        %v159 = vld [vmem:[#allocation2 + $0x4b0] sm:$0xff]
        %v160 = vld [vmem:[#allocation2 + $0x4b8] sm:$0xff]
        %v161 = vld [vmem:[#allocation2 + $0x4c0] sm:$0xff]
        %v162 = vld [vmem:[%s149] sm:$0xff]
        %v163 = vld [vmem:[#allocation2 + $0x8] sm:$0xff]
        %v164 = vld [vmem:[#allocation2 + $0x10] sm:$0xff]
        %v165 = vld [vmem:[#allocation2 + $0x18] sm:$0xff]
        %v166 = vld [vmem:[#allocation2 + $0x20] sm:$0xff]
        %v167 = vld [vmem:[#allocation2 + $0x28] sm:$0xf]
        %v168 = vld [vmem:[#allocation2] sm:$0x1]
        %v169 = vlaneseq
        %v170 = vshrl.u32 %v169, 7
        %v171 = vsub.s32 0, %v170
        %v172 = vrot.slane %v168, %v171
        %vm173 = vcmask 293888
        %v175 = vsel %vm173, %v162, 0
        %vm177 = vcmask 1043456
        %v179 = vsel %vm177, %v167, 0
        %181 = vmatprep.subr.mxu0 0.0
        %182 = vmatpush1.msra.mxu0 %v163
        %183 = vmatprep.subr.mxu0 0.0
        %184 = vmatpush1.msra.mxu0 %v164
        %185 = vmatprep.subr.mxu0 0.0
        %186 = vmatpush1.msra.mxu0 %v165
        %187 = vmatprep.subr.mxu0 0.0
        %188 = vmatpush1.msra.mxu0 %v166
        %189 = vmatprep.subr.mxu0 0.0
        %190 = vmatpush1.msra.mxu0 %v179
        %191 = vmatprep.subr.mxu0 0.0
        %192 = vmatpush1.msra.mxu0 0.0
        %193 = vmatprep.subr.mxu0 0.0
        %194 = vmatpush1.msra.mxu0 0.0
        %195 = vmatprep.subr.mxu0 0.0
        %196 = vmatpush1.msra.mxu0 0.0
        %197 = vmatprep.subr.mxu0 0.0
        %198 = vmatpush1.msra.mxu0 0.0
        %199 = vmatprep.subr.mxu0 0.0
        %200 = vmatpush1.msra.mxu0 0.0
        %201 = vmatprep.subr.mxu0 0.0
        %202 = vmatpush1.msra.mxu0 0.0
        %203 = vmatprep.subr.mxu0 0.0
        %204 = vmatpush1.msra.mxu0 0.0
        %205 = vmatprep.subr.mxu0 0.0
        %206 = vmatpush1.msra.mxu0 0.0
        %207 = vmatprep.subr.mxu0 0.0
        %208 = vmatpush1.msra.mxu0 0.0
        %209 = vmatprep.subr.mxu0 0.0
        %210 = vmatpush1.msra.mxu0 0.0
        %211 = vmatprep.subr.mxu0 0.0
        %212 = vmatpush1.msra.mxu0 0.0
        %213 = vmatprep.subr.mxu0 0.0
        %214 = vmatpush1.msra.mxu0 0.0
        %215 = vmatprep.subr.mxu0 0.0
        %216 = vmatpush1.msra.mxu0 0.0
        %217 = vmatprep.subr.mxu0 0.0
        %218 = vmatpush1.msra.mxu0 0.0
        %219 = vmatprep.subr.mxu0 0.0
        %220 = vmatpush1.msra.mxu0 0.0
        %221 = vmatprep.subr.mxu0 0.0
        %222 = vmatpush1.msra.mxu0 0.0
        %223 = vmatprep.subr.mxu0 0.0
        %224 = vmatpush1.msra.mxu0 0.0
        %225 = vmatprep.subr.mxu0 0.0
        %226 = vmatpush1.msra.mxu0 0.0
        %227 = vmatprep.subr.mxu0 0.0
        %228 = vmatpush1.msra.mxu0 0.0
        %229 = vmatprep.subr.mxu0 0.0
        %230 = vmatpush1.msra.mxu0 0.0
        %231 = vmatprep.subr.mxu0 0.0
        %232 = vmatpush1.msra.mxu0 0.0
        %233 = vmatprep.subr.mxu0 0.0
        %234 = vmatpush1.msra.mxu0 0.0
        %235 = vmatprep.subr.mxu0 0.0
        %236 = vmatpush1.msra.mxu0 0.0
        %237 = vmatprep.subr.mxu0 0.0
        %238 = vmatpush1.msra.mxu0 0.0
        %239 = vmatprep.subr.mxu0 0.0
        %240 = vmatpush1.msra.mxu0 0.0
        %241 = vmatprep.subr.mxu0 0.0
        %242 = vmatpush1.msra.mxu0 0.0
        %243 = vmatprep.subr.mxu0 0.0
        %244 = vmatpush1.msra.mxu0 0.0
        %245 = vmatprep.mubr.f32.mxu0 0.0
        %246 = vmatmul.mubr.f32.gmra.mrb[0].mxu0 %v175
        %v247 = vpop.f32.mrb[0].mxu0
        %v248 = vadd.f32 %v172, %v247
        %v249 = vpop.f32.mrb[0].mxu0
        %250 = vdwg.mxu0
        %v251 = vmax.f32 %v248, 0.0
        %v252 = vld [vmem:[#allocation2 + $0x358] sm:$0xff]
        %v253 = vld [vmem:[#allocation2 + $0x360] sm:$0xff]
        %v254 = vld [vmem:[#allocation2 + $0x368] sm:$0xff]
        %v255 = vld [vmem:[#allocation2 + $0x370] sm:$0xff]
        %v256 = vld [vmem:[#allocation2 + $0x330] sm:$0x1]
        %v257 = vlaneseq
        %v258 = vshrl.u32 %v257, 7
        %v259 = vsub.s32 0, %v258
        %v260 = vrot.slane %v256, %v259
        %vm261 = vcmask 261120
        %v263 = vsel %vm261, %v251, 0
        %265 = vmatprep.subr.mxu0 0.0
        %266 = vmatpush1.msra.mxu0 %v252
        %267 = vmatprep.subr.mxu0 0.0
        %268 = vmatpush1.msra.mxu0 %v253
        %269 = vmatprep.subr.mxu0 0.0
        %270 = vmatpush1.msra.mxu0 %v254
        %271 = vmatprep.subr.mxu0 0.0
        %272 = vmatpush1.msra.mxu0 %v255
        %273 = vmatprep.subr.mxu0 0.0
        %274 = vmatpush1.msra.mxu0 0.0
        %275 = vmatprep.subr.mxu0 0.0
        %276 = vmatpush1.msra.mxu0 0.0
        %277 = vmatprep.subr.mxu0 0.0
        %278 = vmatpush1.msra.mxu0 0.0
        %279 = vmatprep.subr.mxu0 0.0
        %280 = vmatpush1.msra.mxu0 0.0
        %281 = vmatprep.subr.mxu0 0.0
        %282 = vmatpush1.msra.mxu0 0.0
        %283 = vmatprep.subr.mxu0 0.0
        %284 = vmatpush1.msra.mxu0 0.0
        %285 = vmatprep.subr.mxu0 0.0
        %286 = vmatpush1.msra.mxu0 0.0
        %287 = vmatprep.subr.mxu0 0.0
        %288 = vmatpush1.msra.mxu0 0.0
        %289 = vmatprep.subr.mxu0 0.0
        %290 = vmatpush1.msra.mxu0 0.0
        %291 = vmatprep.subr.mxu0 0.0
        %292 = vmatpush1.msra.mxu0 0.0
        %293 = vmatprep.subr.mxu0 0.0
        %294 = vmatpush1.msra.mxu0 0.0
        %295 = vmatprep.subr.mxu0 0.0
        %296 = vmatpush1.msra.mxu0 0.0
        %297 = vmatprep.subr.mxu0 0.0
        %298 = vmatpush1.msra.mxu0 0.0
        %299 = vmatprep.subr.mxu0 0.0
        %300 = vmatpush1.msra.mxu0 0.0
        %301 = vmatprep.subr.mxu0 0.0
        %302 = vmatpush1.msra.mxu0 0.0
        %303 = vmatprep.subr.mxu0 0.0
        %304 = vmatpush1.msra.mxu0 0.0
        %305 = vmatprep.subr.mxu0 0.0
        %306 = vmatpush1.msra.mxu0 0.0
        %307 = vmatprep.subr.mxu0 0.0
        %308 = vmatpush1.msra.mxu0 0.0
        %309 = vmatprep.subr.mxu0 0.0
        %310 = vmatpush1.msra.mxu0 0.0
        %311 = vmatprep.subr.mxu0 0.0
        %312 = vmatpush1.msra.mxu0 0.0
        %313 = vmatprep.subr.mxu0 0.0
        %314 = vmatpush1.msra.mxu0 0.0
        %315 = vmatprep.subr.mxu0 0.0
        %316 = vmatpush1.msra.mxu0 0.0
        %317 = vmatprep.subr.mxu0 0.0
        %318 = vmatpush1.msra.mxu0 0.0
        %319 = vmatprep.subr.mxu0 0.0
        %320 = vmatpush1.msra.mxu0 0.0
        %321 = vmatprep.subr.mxu0 0.0
        %322 = vmatpush1.msra.mxu0 0.0
        %323 = vmatprep.subr.mxu0 0.0
        %324 = vmatpush1.msra.mxu0 0.0
        %325 = vmatprep.subr.mxu0 0.0
        %326 = vmatpush1.msra.mxu0 0.0
        %327 = vmatprep.subr.mxu0 0.0
        %328 = vmatpush1.msra.mxu0 0.0
        %329 = vmatprep.mubr.f32.mxu0 0.0
        %330 = vmatmul.mubr.f32.gmra.mrb[0].mxu0 %v263
        %v331 = vpop.f32.mrb[0].mxu0
        %v332 = vadd.f32 %v260, %v331
        %v333 = vpop.f32.mrb[0].mxu0
        %334 = vdwg.mxu0
        %v335 = vld [vmem:[#allocation2 + $0x338] sm:$0xff]
        %v336 = vld [vmem:[#allocation2 + $0x340] sm:$0xff]
        %v337 = vld [vmem:[#allocation2 + $0x348] sm:$0xff]
        %v338 = vld [vmem:[#allocation2 + $0x350] sm:$0xff]
        %v339 = vld [vmem:[#allocation2 + $0x328] sm:$0x1]
        %344 = vrot.lane.b32.xlu0 %v154, 32
        %v345 = vpop.permute.xlu0 %344
        %346 = vrot.lane.b32.xlu0 %v155, 32
        %v347 = vpop.permute.xlu0 %346
        %348 = vrot.lane.b32.xlu0 %v156, 32
        %v349 = vpop.permute.xlu0 %348
        %350 = vrot.lane.b32.xlu0 %v157, 32
        %v351 = vpop.permute.xlu0 %350
        %v356 = vmul.f32 %v332, %v345
        %v357 = vmul.f32 %v332, %v347
        %v358 = vmul.f32 %v332, %v349
        %v359 = vmul.f32 %v332, %v351
        %360 = vrot.lane.b32.xlu0 %v154, 64
        %v361 = vpop.permute.xlu0 %360
        %362 = vrot.lane.b32.xlu0 %v155, 64
        %v363 = vpop.permute.xlu0 %362
        %364 = vrot.lane.b32.xlu0 %v156, 64
        %v365 = vpop.permute.xlu0 %364
        %366 = vrot.lane.b32.xlu0 %v157, 64
        %v367 = vpop.permute.xlu0 %366
        %v372 = vmul.f32 %v332, %v361
        %v373 = vmul.f32 %v332, %v363
        %v374 = vmul.f32 %v332, %v365
        %v375 = vmul.f32 %v332, %v367
        %380 = vrot.lane.b32.xlu0 %v356, 96
        %v381 = vpop.permute.xlu0 %380
        %382 = vrot.lane.b32.xlu0 %v357, 96
        %v383 = vpop.permute.xlu0 %382
        %384 = vrot.lane.b32.xlu0 %v358, 96
        %v385 = vpop.permute.xlu0 %384
        %386 = vrot.lane.b32.xlu0 %v359, 96
        %v387 = vpop.permute.xlu0 %386
        %v389 = vsel %vm261, %v332, 0
        %v391 = vsel %vm261, %v381, 0
        %v393 = vsel %vm261, %v383, 0
        %v395 = vsel %vm261, %v385, 0
        %v397 = vsel %vm261, %v387, 0
        %399 = vmatprep.subr.mxu0 0.0
        %400 = vmatpush1.xpose.msra.mxu0 %v391
        %401 = vmatprep.subr.mxu0 0.0
        %402 = vmatpush1.xpose.msra.mxu0 %v393
        %403 = vmatprep.subr.mxu0 0.0
        %404 = vmatpush1.xpose.msra.mxu0 %v395
        %405 = vmatprep.subr.mxu0 0.0
        %406 = vmatpush1.xpose.msra.mxu0 %v397
        %407 = vmatprep.subr.mxu0 0.0
        %408 = vmatpush1.xpose.msra.mxu0 0.0
        %409 = vmatprep.subr.mxu0 0.0
        %410 = vmatpush1.xpose.msra.mxu0 0.0
        %411 = vmatprep.subr.mxu0 0.0
        %412 = vmatpush1.xpose.msra.mxu0 0.0
        %413 = vmatprep.subr.mxu0 0.0
        %414 = vmatpush1.xpose.msra.mxu0 0.0
        %415 = vmatprep.subr.mxu0 0.0
        %416 = vmatpush1.xpose.msra.mxu0 0.0
        %417 = vmatprep.subr.mxu0 0.0
        %418 = vmatpush1.xpose.msra.mxu0 0.0
        %419 = vmatprep.subr.mxu0 0.0
        %420 = vmatpush1.xpose.msra.mxu0 0.0
        %421 = vmatprep.subr.mxu0 0.0
        %422 = vmatpush1.xpose.msra.mxu0 0.0
        %423 = vmatprep.subr.mxu0 0.0
        %424 = vmatpush1.xpose.msra.mxu0 0.0
        %425 = vmatprep.subr.mxu0 0.0
        %426 = vmatpush1.xpose.msra.mxu0 0.0
        %427 = vmatprep.subr.mxu0 0.0
        %428 = vmatpush1.xpose.msra.mxu0 0.0
        %429 = vmatprep.subr.mxu0 0.0
        %430 = vmatpush1.xpose.msra.mxu0 0.0
        %431 = vmatprep.subr.mxu0 0.0
        %432 = vmatpush1.xpose.msra.mxu0 0.0
        %433 = vmatprep.subr.mxu0 0.0
        %434 = vmatpush1.xpose.msra.mxu0 0.0
        %435 = vmatprep.subr.mxu0 0.0
        %436 = vmatpush1.xpose.msra.mxu0 0.0
        %437 = vmatprep.subr.mxu0 0.0
        %438 = vmatpush1.xpose.msra.mxu0 0.0
        %439 = vmatprep.subr.mxu0 0.0
        %440 = vmatpush1.xpose.msra.mxu0 0.0
        %441 = vmatprep.subr.mxu0 0.0
        %442 = vmatpush1.xpose.msra.mxu0 0.0
        %443 = vmatprep.subr.mxu0 0.0
        %444 = vmatpush1.xpose.msra.mxu0 0.0
        %445 = vmatprep.subr.mxu0 0.0
        %446 = vmatpush1.xpose.msra.mxu0 0.0
        %447 = vmatprep.subr.mxu0 0.0
        %448 = vmatpush1.xpose.msra.mxu0 0.0
        %449 = vmatprep.subr.mxu0 0.0
        %450 = vmatpush1.xpose.msra.mxu0 0.0
        %451 = vmatprep.subr.mxu0 0.0
        %452 = vmatpush1.xpose.msra.mxu0 0.0
        %453 = vmatprep.subr.mxu0 0.0
        %454 = vmatpush1.xpose.msra.mxu0 0.0
        %455 = vmatprep.subr.mxu0 0.0
        %456 = vmatpush1.xpose.msra.mxu0 0.0
        %457 = vmatprep.subr.mxu0 0.0
        %458 = vmatpush1.xpose.msra.mxu0 0.0
        %459 = vmatprep.subr.mxu0 0.0
        %460 = vmatpush1.xpose.msra.mxu0 0.0
        %461 = vmatprep.subr.mxu0 0.0
        %462 = vmatpush1.xpose.msra.mxu0 0.0
        %463 = vmatprep.mubr.f32.mxu0 0.0
        %464 = vmatmul.mubr.f32.gmra.mrb[0].mxu0 %v389
        %v465 = vpop.f32.mrb[0].mxu0
        %v466 = vadd.f32 0.0, %v465
        %v467 = vpop.f32.mrb[0].mxu0
        %468 = vdwg.mxu0
        %v469 = vmul.f32 %v466, 0.35355338
        %v470 = vsel %vm261, %v469, -inf
        %471 = vmax.xlane.f32.xlu0 %v470
        %v472 = vpop.xlane.xlu0 %471
        %v473 = vsub.f32 %v469, %v472
        %v474 = vmul.f32 %v473, 1.442695
        %v475 = vpow.pop %v474
        %v477 = vsel %vm261, %v475, 0
        %479 = vmatprep.subr.mxu0 0.0
        %480 = vmatpush1.msra.mxu0 %v158
        %481 = vmatprep.subr.mxu0 0.0
        %482 = vmatpush1.msra.mxu0 %v159
        %483 = vmatprep.subr.mxu0 0.0
        %484 = vmatpush1.msra.mxu0 %v160
        %485 = vmatprep.subr.mxu0 0.0
        %486 = vmatpush1.msra.mxu0 %v161
        %487 = vmatprep.subr.mxu0 0.0
        %488 = vmatpush1.msra.mxu0 0.0
        %489 = vmatprep.subr.mxu0 0.0
        %490 = vmatpush1.msra.mxu0 0.0
        %491 = vmatprep.subr.mxu0 0.0
        %492 = vmatpush1.msra.mxu0 0.0
        %493 = vmatprep.subr.mxu0 0.0
        %494 = vmatpush1.msra.mxu0 0.0
        %495 = vmatprep.subr.mxu0 0.0
        %496 = vmatpush1.msra.mxu0 0.0
        %497 = vmatprep.subr.mxu0 0.0
        %498 = vmatpush1.msra.mxu0 0.0
        %499 = vmatprep.subr.mxu0 0.0
        %500 = vmatpush1.msra.mxu0 0.0
        %501 = vmatprep.subr.mxu0 0.0
        %502 = vmatpush1.msra.mxu0 0.0
        %503 = vmatprep.subr.mxu0 0.0
        %504 = vmatpush1.msra.mxu0 0.0
        %505 = vmatprep.subr.mxu0 0.0
        %506 = vmatpush1.msra.mxu0 0.0
        %507 = vmatprep.subr.mxu0 0.0
        %508 = vmatpush1.msra.mxu0 0.0
        %509 = vmatprep.subr.mxu0 0.0
        %510 = vmatpush1.msra.mxu0 0.0
        %511 = vmatprep.subr.mxu0 0.0
        %512 = vmatpush1.msra.mxu0 0.0
        %513 = vmatprep.subr.mxu0 0.0
        %514 = vmatpush1.msra.mxu0 0.0
        %515 = vmatprep.subr.mxu0 0.0
        %516 = vmatpush1.msra.mxu0 0.0
        %517 = vmatprep.subr.mxu0 0.0
        %518 = vmatpush1.msra.mxu0 0.0
        %519 = vmatprep.subr.mxu0 0.0
        %520 = vmatpush1.msra.mxu0 0.0
        %521 = vmatprep.subr.mxu0 0.0
        %522 = vmatpush1.msra.mxu0 0.0
        %523 = vmatprep.subr.mxu0 0.0
        %524 = vmatpush1.msra.mxu0 0.0
        %525 = vmatprep.subr.mxu0 0.0
        %526 = vmatpush1.msra.mxu0 0.0
        %527 = vmatprep.subr.mxu0 0.0
        %528 = vmatpush1.msra.mxu0 0.0
        %529 = vmatprep.subr.mxu0 0.0
        %530 = vmatpush1.msra.mxu0 0.0
        %531 = vmatprep.subr.mxu0 0.0
        %532 = vmatpush1.msra.mxu0 0.0
        %533 = vmatprep.subr.mxu0 0.0
        %534 = vmatpush1.msra.mxu0 0.0
        %535 = vmatprep.subr.mxu0 0.0
        %536 = vmatpush1.msra.mxu0 0.0
        %537 = vmatprep.subr.mxu0 0.0
        %538 = vmatpush1.msra.mxu0 0.0
        %539 = vmatprep.subr.mxu0 0.0
        %540 = vmatpush1.msra.mxu0 0.0
        %541 = vmatprep.subr.mxu0 0.0
        %542 = vmatpush1.msra.mxu0 0.0
        %543 = vmatprep.mubr.f32.mxu0 0.0
        %544 = vmatmul.mubr.f32.gmra.mrb[0].mxu0 %v477
        %v545 = vpop.f32.mrb[0].mxu0
        %v546 = vadd.f32 0.0, %v545
        %v547 = vpop.f32.mrb[0].mxu0
        %548 = vdwg.mxu0
        %v549 = vrcp.pop %v546
        %v550 = vmul.f32 %v475, %v549
        %555 = vrot.lane.b32.xlu0 %v372, 64
        %v556 = vpop.permute.xlu0 %555
        %557 = vrot.lane.b32.xlu0 %v373, 64
        %v558 = vpop.permute.xlu0 %557
        %559 = vrot.lane.b32.xlu0 %v374, 64
        %v560 = vpop.permute.xlu0 %559
        %561 = vrot.lane.b32.xlu0 %v375, 64
        %v562 = vpop.permute.xlu0 %561
        %v568 = vsel %vm261, %v550, 0
        %570 = vmatprep.subr.mxu0 0.0
        %571 = vmatpush1.msra.mxu0 %v556
        %572 = vmatprep.subr.mxu0 0.0
        %573 = vmatpush1.msra.mxu0 %v558
        %574 = vmatprep.subr.mxu0 0.0
        %575 = vmatpush1.msra.mxu0 %v560
        %576 = vmatprep.subr.mxu0 0.0
        %577 = vmatpush1.msra.mxu0 %v562
        %578 = vmatprep.subr.mxu0 0.0
        %579 = vmatpush1.msra.mxu0 0.0
        %580 = vmatprep.subr.mxu0 0.0
        %581 = vmatpush1.msra.mxu0 0.0
        %582 = vmatprep.subr.mxu0 0.0
        %583 = vmatpush1.msra.mxu0 0.0
        %584 = vmatprep.subr.mxu0 0.0
        %585 = vmatpush1.msra.mxu0 0.0
        %586 = vmatprep.subr.mxu0 0.0
        %587 = vmatpush1.msra.mxu0 0.0
        %588 = vmatprep.subr.mxu0 0.0
        %589 = vmatpush1.msra.mxu0 0.0
        %590 = vmatprep.subr.mxu0 0.0
        %591 = vmatpush1.msra.mxu0 0.0
        %592 = vmatprep.subr.mxu0 0.0
        %593 = vmatpush1.msra.mxu0 0.0
        %594 = vmatprep.subr.mxu0 0.0
        %595 = vmatpush1.msra.mxu0 0.0
        %596 = vmatprep.subr.mxu0 0.0
        %597 = vmatpush1.msra.mxu0 0.0
        %598 = vmatprep.subr.mxu0 0.0
        %599 = vmatpush1.msra.mxu0 0.0
        %600 = vmatprep.subr.mxu0 0.0
        %601 = vmatpush1.msra.mxu0 0.0
        %602 = vmatprep.subr.mxu0 0.0
        %603 = vmatpush1.msra.mxu0 0.0
        %604 = vmatprep.subr.mxu0 0.0
        %605 = vmatpush1.msra.mxu0 0.0
        %606 = vmatprep.subr.mxu0 0.0
        %607 = vmatpush1.msra.mxu0 0.0
        %608 = vmatprep.subr.mxu0 0.0
        %609 = vmatpush1.msra.mxu0 0.0
        %610 = vmatprep.subr.mxu0 0.0
        %611 = vmatpush1.msra.mxu0 0.0
        %612 = vmatprep.subr.mxu0 0.0
        %613 = vmatpush1.msra.mxu0 0.0
        %614 = vmatprep.subr.mxu0 0.0
        %615 = vmatpush1.msra.mxu0 0.0
        %616 = vmatprep.subr.mxu0 0.0
        %617 = vmatpush1.msra.mxu0 0.0
        %618 = vmatprep.subr.mxu0 0.0
        %619 = vmatpush1.msra.mxu0 0.0
        %620 = vmatprep.subr.mxu0 0.0
        %621 = vmatpush1.msra.mxu0 0.0
        %622 = vmatprep.subr.mxu0 0.0
        %623 = vmatpush1.msra.mxu0 0.0
        %624 = vmatprep.subr.mxu0 0.0
        %625 = vmatpush1.msra.mxu0 0.0
        %626 = vmatprep.subr.mxu0 0.0
        %627 = vmatpush1.msra.mxu0 0.0
        %628 = vmatprep.subr.mxu0 0.0
        %629 = vmatpush1.msra.mxu0 0.0
        %630 = vmatprep.subr.mxu0 0.0
        %631 = vmatpush1.msra.mxu0 0.0
        %632 = vmatprep.subr.mxu0 0.0
        %633 = vmatpush1.msra.mxu0 0.0
        %634 = vmatprep.mubr.f32.mxu0 0.0
        %635 = vmatmul.mubr.f32.gmra.mrb[0].mxu0 %v568
        %v636 = vpop.f32.mrb[0].mxu0
        %v637 = vadd.f32 0.0, %v636
        %v638 = vpop.f32.mrb[0].mxu0
        %639 = vdwg.mxu0
        %v640 = vlaneseq
        %v641 = vshrl.u32 %v640, 7
        %v642 = vsub.s32 0, %v641
        %v643 = vrot.slane %v339, %v642
        %v645 = vsel %vm261, %v637, 0
        %647 = vmatprep.subr.mxu0 0.0
        %648 = vmatpush1.msra.mxu0 %v335
        %649 = vmatprep.subr.mxu0 0.0
        %650 = vmatpush1.msra.mxu0 %v336
        %651 = vmatprep.subr.mxu0 0.0
        %652 = vmatpush1.msra.mxu0 %v337
        %653 = vmatprep.subr.mxu0 0.0
        %654 = vmatpush1.msra.mxu0 %v338
        %655 = vmatprep.subr.mxu0 0.0
        %656 = vmatpush1.msra.mxu0 0.0
        %657 = vmatprep.subr.mxu0 0.0
        %658 = vmatpush1.msra.mxu0 0.0
        %659 = vmatprep.subr.mxu0 0.0
        %660 = vmatpush1.msra.mxu0 0.0
        %661 = vmatprep.subr.mxu0 0.0
        %662 = vmatpush1.msra.mxu0 0.0
        %663 = vmatprep.subr.mxu0 0.0
        %664 = vmatpush1.msra.mxu0 0.0
        %665 = vmatprep.subr.mxu0 0.0
        %666 = vmatpush1.msra.mxu0 0.0
        %667 = vmatprep.subr.mxu0 0.0
        %668 = vmatpush1.msra.mxu0 0.0
        %669 = vmatprep.subr.mxu0 0.0
        %670 = vmatpush1.msra.mxu0 0.0
        %671 = vmatprep.subr.mxu0 0.0
        %672 = vmatpush1.msra.mxu0 0.0
        %673 = vmatprep.subr.mxu0 0.0
        %674 = vmatpush1.msra.mxu0 0.0
        %675 = vmatprep.subr.mxu0 0.0
        %676 = vmatpush1.msra.mxu0 0.0
        %677 = vmatprep.subr.mxu0 0.0
        %678 = vmatpush1.msra.mxu0 0.0
        %679 = vmatprep.subr.mxu0 0.0
        %680 = vmatpush1.msra.mxu0 0.0
        %681 = vmatprep.subr.mxu0 0.0
        %682 = vmatpush1.msra.mxu0 0.0
        %683 = vmatprep.subr.mxu0 0.0
        %684 = vmatpush1.msra.mxu0 0.0
        %685 = vmatprep.subr.mxu0 0.0
        %686 = vmatpush1.msra.mxu0 0.0
        %687 = vmatprep.subr.mxu0 0.0
        %688 = vmatpush1.msra.mxu0 0.0
        %689 = vmatprep.subr.mxu0 0.0
        %690 = vmatpush1.msra.mxu0 0.0
        %691 = vmatprep.subr.mxu0 0.0
        %692 = vmatpush1.msra.mxu0 0.0
        %693 = vmatprep.subr.mxu0 0.0
        %694 = vmatpush1.msra.mxu0 0.0
        %695 = vmatprep.subr.mxu0 0.0
        %696 = vmatpush1.msra.mxu0 0.0
        %697 = vmatprep.subr.mxu0 0.0
        %698 = vmatpush1.msra.mxu0 0.0
        %699 = vmatprep.subr.mxu0 0.0
        %700 = vmatpush1.msra.mxu0 0.0
        %701 = vmatprep.subr.mxu0 0.0
        %702 = vmatpush1.msra.mxu0 0.0
        %703 = vmatprep.subr.mxu0 0.0
        %704 = vmatpush1.msra.mxu0 0.0
        %705 = vmatprep.subr.mxu0 0.0
        %706 = vmatpush1.msra.mxu0 0.0
        %707 = vmatprep.subr.mxu0 0.0
        %708 = vmatpush1.msra.mxu0 0.0
        %709 = vmatprep.subr.mxu0 0.0
        %710 = vmatpush1.msra.mxu0 0.0
        %711 = vmatprep.mubr.f32.mxu0 0.0
        %712 = vmatmul.mubr.f32.gmra.mrb[0].mxu0 %v645
        %v713 = vpop.f32.mrb[0].mxu0
        %v714 = vadd.f32 %v643, %v713
        %v715 = vpop.f32.mrb[0].mxu0
        %716 = vdwg.mxu0
        %v717 = vadd.f32 %v251, %v714
        %v718 = vld [vmem:[#allocation2 + $0x310] sm:$0x1]
        %v719 = vld [vmem:[#allocation2 + $0x308] sm:$0x1]
        %v720 = vsel %vm261, %v717, 0.0
        %721 = vadd.xlane.f32.xlu0 %v720
        %v722 = vpop.xlane.xlu0 %721
        %v723 = vrcp.pop 32.0
        %v724 = vmul.f32 %v722, %v723
        %v725 = vsub.f32 %v717, %v724
        %v726 = vmul.f32 %v725, %v725
        %v727 = vsel %vm261, %v726, 0.0
        %728 = vadd.xlane.f32.xlu0 %v727
        %v729 = vpop.xlane.xlu0 %728
        %v730 = vmul.f32 %v729, %v723
        %v731 = vadd.f32 %v730, 1e-05
        %v732 = vrsqrt.pop %v731
        %v733 = vmul.f32 %v725, %v732
        %v734 = vlaneseq
        %v735 = vshrl.u32 %v734, 7
        %v736 = vsub.s32 0, %v735
        %v737 = vrot.slane %v718, %v736
        %v738 = vmul.f32 %v733, %v737
        %v739 = vlaneseq
        %v740 = vshrl.u32 %v739, 7
        %v741 = vsub.s32 0, %v740
        %v742 = vrot.slane %v719, %v741
        %v743 = vadd.f32 %v738, %v742
        %v744 = vld [vmem:[#allocation2 + $0x378] sm:$0xff]
        %v745 = vld [vmem:[#allocation2 + $0x380] sm:$0xff]
        %v746 = vld [vmem:[#allocation2 + $0x388] sm:$0xff]
        %v747 = vld [vmem:[#allocation2 + $0x390] sm:$0xff]
        %v748 = vld [vmem:[#allocation2 + $0x2f8] sm:$0x1]
        %v749 = vlaneseq
        %v750 = vshrl.u32 %v749, 7
        %v751 = vsub.s32 0, %v750
        %v752 = vrot.slane %v748, %v751
        %v754 = vsel %vm261, %v743, 0
        %756 = vmatprep.subr.mxu0 0.0
        %757 = vmatpush1.msra.mxu0 %v744
        %758 = vmatprep.subr.mxu0 0.0
        %759 = vmatpush1.msra.mxu0 %v745
        %760 = vmatprep.subr.mxu0 0.0
        %761 = vmatpush1.msra.mxu0 %v746
        %762 = vmatprep.subr.mxu0 0.0
        %763 = vmatpush1.msra.mxu0 %v747
        %764 = vmatprep.subr.mxu0 0.0
        %765 = vmatpush1.msra.mxu0 0.0
        %766 = vmatprep.subr.mxu0 0.0
        %767 = vmatpush1.msra.mxu0 0.0
        %768 = vmatprep.subr.mxu0 0.0
        %769 = vmatpush1.msra.mxu0 0.0
        %770 = vmatprep.subr.mxu0 0.0
        %771 = vmatpush1.msra.mxu0 0.0
        %772 = vmatprep.subr.mxu0 0.0
        %773 = vmatpush1.msra.mxu0 0.0
        %774 = vmatprep.subr.mxu0 0.0
        %775 = vmatpush1.msra.mxu0 0.0
        %776 = vmatprep.subr.mxu0 0.0
        %777 = vmatpush1.msra.mxu0 0.0
        %778 = vmatprep.subr.mxu0 0.0
        %779 = vmatpush1.msra.mxu0 0.0
        %780 = vmatprep.subr.mxu0 0.0
        %781 = vmatpush1.msra.mxu0 0.0
        %782 = vmatprep.subr.mxu0 0.0
        %783 = vmatpush1.msra.mxu0 0.0
        %784 = vmatprep.subr.mxu0 0.0
        %785 = vmatpush1.msra.mxu0 0.0
        %786 = vmatprep.subr.mxu0 0.0
        %787 = vmatpush1.msra.mxu0 0.0
        %788 = vmatprep.subr.mxu0 0.0
        %789 = vmatpush1.msra.mxu0 0.0
        %790 = vmatprep.subr.mxu0 0.0
        %791 = vmatpush1.msra.mxu0 0.0
        %792 = vmatprep.subr.mxu0 0.0
        %793 = vmatpush1.msra.mxu0 0.0
        %794 = vmatprep.subr.mxu0 0.0
        %795 = vmatpush1.msra.mxu0 0.0
        %796 = vmatprep.subr.mxu0 0.0
        %797 = vmatpush1.msra.mxu0 0.0
        %798 = vmatprep.subr.mxu0 0.0
        %799 = vmatpush1.msra.mxu0 0.0
        %800 = vmatprep.subr.mxu0 0.0
        %801 = vmatpush1.msra.mxu0 0.0
        %802 = vmatprep.subr.mxu0 0.0
        %803 = vmatpush1.msra.mxu0 0.0
        %804 = vmatprep.subr.mxu0 0.0
        %805 = vmatpush1.msra.mxu0 0.0
        %806 = vmatprep.subr.mxu0 0.0
        %807 = vmatpush1.msra.mxu0 0.0
        %808 = vmatprep.subr.mxu0 0.0
        %809 = vmatpush1.msra.mxu0 0.0
        %810 = vmatprep.subr.mxu0 0.0
        %811 = vmatpush1.msra.mxu0 0.0
        %812 = vmatprep.subr.mxu0 0.0
        %813 = vmatpush1.msra.mxu0 0.0
        %814 = vmatprep.subr.mxu0 0.0
        %815 = vmatpush1.msra.mxu0 0.0
        %816 = vmatprep.subr.mxu0 0.0
        %817 = vmatpush1.msra.mxu0 0.0
        %818 = vmatprep.subr.mxu0 0.0
        %819 = vmatpush1.msra.mxu0 0.0
        %820 = vmatprep.mubr.f32.mxu0 0.0
        %821 = vmatmul.mubr.f32.gmra.mrb[0].mxu0 %v754
        %v822 = vpop.f32.mrb[0].mxu0
        %v823 = vadd.f32 %v752, %v822
        %v824 = vpop.f32.mrb[0].mxu0
        %825 = vdwg.mxu0
        %v826 = vmax.f32 %v823, 0.0
        %v827 = vld [vmem:[#allocation2 + $0x398] sm:$0xff]
        %v828 = vld [vmem:[#allocation2 + $0x3a0] sm:$0xff]
        %v829 = vld [vmem:[#allocation2 + $0x3a8] sm:$0xff]
        %v830 = vld [vmem:[#allocation2 + $0x3b0] sm:$0xff]
        %v831 = vld [vmem:[#allocation2 + $0x300] sm:$0x1]
        %v832 = vlaneseq
        %v833 = vshrl.u32 %v832, 7
        %v834 = vsub.s32 0, %v833
        %v835 = vrot.slane %v831, %v834
        %v837 = vsel %vm261, %v826, 0
        %839 = vmatprep.subr.mxu0 0.0
        %840 = vmatpush1.msra.mxu0 %v827
        %841 = vmatprep.subr.mxu0 0.0
        %842 = vmatpush1.msra.mxu0 %v828
        %843 = vmatprep.subr.mxu0 0.0
        %844 = vmatpush1.msra.mxu0 %v829
        %845 = vmatprep.subr.mxu0 0.0
        %846 = vmatpush1.msra.mxu0 %v830
        %847 = vmatprep.subr.mxu0 0.0
        %848 = vmatpush1.msra.mxu0 0.0
        %849 = vmatprep.subr.mxu0 0.0
        %850 = vmatpush1.msra.mxu0 0.0
        %851 = vmatprep.subr.mxu0 0.0
        %852 = vmatpush1.msra.mxu0 0.0
        %853 = vmatprep.subr.mxu0 0.0
        %854 = vmatpush1.msra.mxu0 0.0
        %855 = vmatprep.subr.mxu0 0.0
        %856 = vmatpush1.msra.mxu0 0.0
        %857 = vmatprep.subr.mxu0 0.0
        %858 = vmatpush1.msra.mxu0 0.0
        %859 = vmatprep.subr.mxu0 0.0
        %860 = vmatpush1.msra.mxu0 0.0
        %861 = vmatprep.subr.mxu0 0.0
        %862 = vmatpush1.msra.mxu0 0.0
        %863 = vmatprep.subr.mxu0 0.0
        %864 = vmatpush1.msra.mxu0 0.0
        %865 = vmatprep.subr.mxu0 0.0
        %866 = vmatpush1.msra.mxu0 0.0
        %867 = vmatprep.subr.mxu0 0.0
        %868 = vmatpush1.msra.mxu0 0.0
        %869 = vmatprep.subr.mxu0 0.0
        %870 = vmatpush1.msra.mxu0 0.0
        %871 = vmatprep.subr.mxu0 0.0
        %872 = vmatpush1.msra.mxu0 0.0
        %873 = vmatprep.subr.mxu0 0.0
        %874 = vmatpush1.msra.mxu0 0.0
        %875 = vmatprep.subr.mxu0 0.0
        %876 = vmatpush1.msra.mxu0 0.0
        %877 = vmatprep.subr.mxu0 0.0
        %878 = vmatpush1.msra.mxu0 0.0
        %879 = vmatprep.subr.mxu0 0.0
        %880 = vmatpush1.msra.mxu0 0.0
        %881 = vmatprep.subr.mxu0 0.0
        %882 = vmatpush1.msra.mxu0 0.0
        %883 = vmatprep.subr.mxu0 0.0
        %884 = vmatpush1.msra.mxu0 0.0
        %885 = vmatprep.subr.mxu0 0.0
        %886 = vmatpush1.msra.mxu0 0.0
        %887 = vmatprep.subr.mxu0 0.0
        %888 = vmatpush1.msra.mxu0 0.0
        %889 = vmatprep.subr.mxu0 0.0
        %890 = vmatpush1.msra.mxu0 0.0
        %891 = vmatprep.subr.mxu0 0.0
        %892 = vmatpush1.msra.mxu0 0.0
        %893 = vmatprep.subr.mxu0 0.0
        %894 = vmatpush1.msra.mxu0 0.0
        %895 = vmatprep.subr.mxu0 0.0
        %896 = vmatpush1.msra.mxu0 0.0
        %897 = vmatprep.subr.mxu0 0.0
        %898 = vmatpush1.msra.mxu0 0.0
        %899 = vmatprep.subr.mxu0 0.0
        %900 = vmatpush1.msra.mxu0 0.0
        %901 = vmatprep.subr.mxu0 0.0
        %902 = vmatpush1.msra.mxu0 0.0
        %903 = vmatprep.mubr.f32.mxu0 0.0
        %904 = vmatmul.mubr.f32.gmra.mrb[0].mxu0 %v837
        %v905 = vpop.f32.mrb[0].mxu0
        %v906 = vadd.f32 %v835, %v905
        %v907 = vpop.f32.mrb[0].mxu0
        %908 = vdwg.mxu0
        %v909 = vadd.f32 %v743, %v906
        %v910 = vld [vmem:[#allocation2 + $0x320] sm:$0x1]
        %v911 = vld [vmem:[#allocation2 + $0x318] sm:$0x1]
        %v912 = vsel %vm261, %v909, 0.0
        %913 = vadd.xlane.f32.xlu0 %v912
        %v914 = vpop.xlane.xlu0 %913
        %v915 = vmul.f32 %v914, %v723
        %v916 = vsub.f32 %v909, %v915
        %v917 = vmul.f32 %v916, %v916
        %v918 = vsel %vm261, %v917, 0.0
        %919 = vadd.xlane.f32.xlu0 %v918
        %v920 = vpop.xlane.xlu0 %919
        %v921 = vmul.f32 %v920, %v723
        %v922 = vadd.f32 %v921, 1e-05
        %v923 = vrsqrt.pop %v922
        %v924 = vmul.f32 %v916, %v923
        %v925 = vlaneseq
        %v926 = vshrl.u32 %v925, 7
        %v927 = vsub.s32 0, %v926
        %v928 = vrot.slane %v910, %v927
        %v929 = vmul.f32 %v924, %v928
        %v930 = vlaneseq
        %v931 = vshrl.u32 %v930, 7
        %v932 = vsub.s32 0, %v931
        %v933 = vrot.slane %v911, %v932
        %v934 = vadd.f32 %v929, %v933
        %v935 = vld [vmem:[#allocation2 + $0x418] sm:$0xff]
        %v936 = vld [vmem:[#allocation2 + $0x420] sm:$0xff]
        %v937 = vld [vmem:[#allocation2 + $0x428] sm:$0xff]
        %v938 = vld [vmem:[#allocation2 + $0x430] sm:$0xff]
        %v939 = vld [vmem:[#allocation2 + $0x3f0] sm:$0x1]
        %v940 = vlaneseq
        %v941 = vshrl.u32 %v940, 7
        %v942 = vsub.s32 0, %v941
        %v943 = vrot.slane %v939, %v942
        %v945 = vsel %vm261, %v934, 0
        %947 = vmatprep.subr.mxu0 0.0
        %948 = vmatpush1.msra.mxu0 %v935
        %949 = vmatprep.subr.mxu0 0.0
        %950 = vmatpush1.msra.mxu0 %v936
        %951 = vmatprep.subr.mxu0 0.0
        %952 = vmatpush1.msra.mxu0 %v937
        %953 = vmatprep.subr.mxu0 0.0
        %954 = vmatpush1.msra.mxu0 %v938
        %955 = vmatprep.subr.mxu0 0.0
        %956 = vmatpush1.msra.mxu0 0.0
        %957 = vmatprep.subr.mxu0 0.0
        %958 = vmatpush1.msra.mxu0 0.0
        %959 = vmatprep.subr.mxu0 0.0
        %960 = vmatpush1.msra.mxu0 0.0
        %961 = vmatprep.subr.mxu0 0.0
        %962 = vmatpush1.msra.mxu0 0.0
        %963 = vmatprep.subr.mxu0 0.0
        %964 = vmatpush1.msra.mxu0 0.0
        %965 = vmatprep.subr.mxu0 0.0
        %966 = vmatpush1.msra.mxu0 0.0
        %967 = vmatprep.subr.mxu0 0.0
        %968 = vmatpush1.msra.mxu0 0.0
        %969 = vmatprep.subr.mxu0 0.0
        %970 = vmatpush1.msra.mxu0 0.0
        %971 = vmatprep.subr.mxu0 0.0
        %972 = vmatpush1.msra.mxu0 0.0
        %973 = vmatprep.subr.mxu0 0.0
        %974 = vmatpush1.msra.mxu0 0.0
        %975 = vmatprep.subr.mxu0 0.0
        %976 = vmatpush1.msra.mxu0 0.0
        %977 = vmatprep.subr.mxu0 0.0
        %978 = vmatpush1.msra.mxu0 0.0
        %979 = vmatprep.subr.mxu0 0.0
        %980 = vmatpush1.msra.mxu0 0.0
        %981 = vmatprep.subr.mxu0 0.0
        %982 = vmatpush1.msra.mxu0 0.0
        %983 = vmatprep.subr.mxu0 0.0
        %984 = vmatpush1.msra.mxu0 0.0
        %985 = vmatprep.subr.mxu0 0.0
        %986 = vmatpush1.msra.mxu0 0.0
        %987 = vmatprep.subr.mxu0 0.0
        %988 = vmatpush1.msra.mxu0 0.0
        %989 = vmatprep.subr.mxu0 0.0
        %990 = vmatpush1.msra.mxu0 0.0
        %991 = vmatprep.subr.mxu0 0.0
        %992 = vmatpush1.msra.mxu0 0.0
        %993 = vmatprep.subr.mxu0 0.0
        %994 = vmatpush1.msra.mxu0 0.0
        %995 = vmatprep.subr.mxu0 0.0
        %996 = vmatpush1.msra.mxu0 0.0
        %997 = vmatprep.subr.mxu0 0.0
        %998 = vmatpush1.msra.mxu0 0.0
        %999 = vmatprep.subr.mxu0 0.0
        %1000 = vmatpush1.msra.mxu0 0.0
        %1001 = vmatprep.subr.mxu0 0.0
        %1002 = vmatpush1.msra.mxu0 0.0
        %1003 = vmatprep.subr.mxu0 0.0
        %1004 = vmatpush1.msra.mxu0 0.0
        %1005 = vmatprep.subr.mxu0 0.0
        %1006 = vmatpush1.msra.mxu0 0.0
        %1007 = vmatprep.subr.mxu0 0.0
        %1008 = vmatpush1.msra.mxu0 0.0
        %1009 = vmatprep.subr.mxu0 0.0
        %1010 = vmatpush1.msra.mxu0 0.0
        %1011 = vmatprep.mubr.f32.mxu0 0.0
        %1012 = vmatmul.mubr.f32.gmra.mrb[0].mxu0 %v945
        %v1013 = vpop.f32.mrb[0].mxu0
        %v1014 = vadd.f32 %v943, %v1013
        %v1015 = vpop.f32.mrb[0].mxu0
        %1016 = vdwg.mxu0
        %v1017 = vld [vmem:[#allocation2 + $0x3f8] sm:$0xff]
        %v1018 = vld [vmem:[#allocation2 + $0x400] sm:$0xff]
        %v1019 = vld [vmem:[#allocation2 + $0x408] sm:$0xff]
        %v1020 = vld [vmem:[#allocation2 + $0x410] sm:$0xff]
        %v1021 = vld [vmem:[#allocation2 + $0x3e8] sm:$0x1]
        %v1022 = vmul.f32 %v1014, %v345
        %v1023 = vmul.f32 %v1014, %v347
        %v1024 = vmul.f32 %v1014, %v349
        %v1025 = vmul.f32 %v1014, %v351
        %v1026 = vmul.f32 %v1014, %v361
        %v1027 = vmul.f32 %v1014, %v363
        %v1028 = vmul.f32 %v1014, %v365
        %v1029 = vmul.f32 %v1014, %v367
        %1034 = vrot.lane.b32.xlu0 %v1022, 96
        %v1035 = vpop.permute.xlu0 %1034
        %1036 = vrot.lane.b32.xlu0 %v1023, 96
        %v1037 = vpop.permute.xlu0 %1036
        %1038 = vrot.lane.b32.xlu0 %v1024, 96
        %v1039 = vpop.permute.xlu0 %1038
        %1040 = vrot.lane.b32.xlu0 %v1025, 96
        %v1041 = vpop.permute.xlu0 %1040
        %v1043 = vsel %vm261, %v1014, 0
        %v1045 = vsel %vm261, %v1035, 0
        %v1047 = vsel %vm261, %v1037, 0
        %v1049 = vsel %vm261, %v1039, 0
        %v1051 = vsel %vm261, %v1041, 0
        %1053 = vmatprep.subr.mxu0 0.0
        %1054 = vmatpush1.xpose.msra.mxu0 %v1045
        %1055 = vmatprep.subr.mxu0 0.0
        %1056 = vmatpush1.xpose.msra.mxu0 %v1047
        %1057 = vmatprep.subr.mxu0 0.0
        %1058 = vmatpush1.xpose.msra.mxu0 %v1049
        %1059 = vmatprep.subr.mxu0 0.0
        %1060 = vmatpush1.xpose.msra.mxu0 %v1051
        %1061 = vmatprep.subr.mxu0 0.0
        %1062 = vmatpush1.xpose.msra.mxu0 0.0
        %1063 = vmatprep.subr.mxu0 0.0
        %1064 = vmatpush1.xpose.msra.mxu0 0.0
        %1065 = vmatprep.subr.mxu0 0.0
        %1066 = vmatpush1.xpose.msra.mxu0 0.0
        %1067 = vmatprep.subr.mxu0 0.0
        %1068 = vmatpush1.xpose.msra.mxu0 0.0
        %1069 = vmatprep.subr.mxu0 0.0
        %1070 = vmatpush1.xpose.msra.mxu0 0.0
        %1071 = vmatprep.subr.mxu0 0.0
        %1072 = vmatpush1.xpose.msra.mxu0 0.0
        %1073 = vmatprep.subr.mxu0 0.0
        %1074 = vmatpush1.xpose.msra.mxu0 0.0
        %1075 = vmatprep.subr.mxu0 0.0
        %1076 = vmatpush1.xpose.msra.mxu0 0.0
        %1077 = vmatprep.subr.mxu0 0.0
        %1078 = vmatpush1.xpose.msra.mxu0 0.0
        %1079 = vmatprep.subr.mxu0 0.0
        %1080 = vmatpush1.xpose.msra.mxu0 0.0
        %1081 = vmatprep.subr.mxu0 0.0
        %1082 = vmatpush1.xpose.msra.mxu0 0.0
        %1083 = vmatprep.subr.mxu0 0.0
        %1084 = vmatpush1.xpose.msra.mxu0 0.0
        %1085 = vmatprep.subr.mxu0 0.0
        %1086 = vmatpush1.xpose.msra.mxu0 0.0
        %1087 = vmatprep.subr.mxu0 0.0
        %1088 = vmatpush1.xpose.msra.mxu0 0.0
        %1089 = vmatprep.subr.mxu0 0.0
        %1090 = vmatpush1.xpose.msra.mxu0 0.0
        %1091 = vmatprep.subr.mxu0 0.0
        %1092 = vmatpush1.xpose.msra.mxu0 0.0
        %1093 = vmatprep.subr.mxu0 0.0
        %1094 = vmatpush1.xpose.msra.mxu0 0.0
        %1095 = vmatprep.subr.mxu0 0.0
        %1096 = vmatpush1.xpose.msra.mxu0 0.0
        %1097 = vmatprep.subr.mxu0 0.0
        %1098 = vmatpush1.xpose.msra.mxu0 0.0
        %1099 = vmatprep.subr.mxu0 0.0
        %1100 = vmatpush1.xpose.msra.mxu0 0.0
        %1101 = vmatprep.subr.mxu0 0.0
        %1102 = vmatpush1.xpose.msra.mxu0 0.0
        %1103 = vmatprep.subr.mxu0 0.0
        %1104 = vmatpush1.xpose.msra.mxu0 0.0
        %1105 = vmatprep.subr.mxu0 0.0
        %1106 = vmatpush1.xpose.msra.mxu0 0.0
        %1107 = vmatprep.subr.mxu0 0.0
        %1108 = vmatpush1.xpose.msra.mxu0 0.0
        %1109 = vmatprep.subr.mxu0 0.0
        %1110 = vmatpush1.xpose.msra.mxu0 0.0
        %1111 = vmatprep.subr.mxu0 0.0
        %1112 = vmatpush1.xpose.msra.mxu0 0.0
        %1113 = vmatprep.subr.mxu0 0.0
        %1114 = vmatpush1.xpose.msra.mxu0 0.0
        %1115 = vmatprep.subr.mxu0 0.0
        %1116 = vmatpush1.xpose.msra.mxu0 0.0
        %1117 = vmatprep.mubr.f32.mxu0 0.0
        %1118 = vmatmul.mubr.f32.gmra.mrb[0].mxu0 %v1043
        %v1119 = vpop.f32.mrb[0].mxu0
        %v1120 = vadd.f32 0.0, %v1119
        %v1121 = vpop.f32.mrb[0].mxu0
        %1122 = vdwg.mxu0
        %v1123 = vmul.f32 %v1120, 0.35355338
        %v1124 = vsel %vm261, %v1123, -inf
        %1125 = vmax.xlane.f32.xlu0 %v1124
        %v1126 = vpop.xlane.xlu0 %1125
        %v1127 = vsub.f32 %v1123, %v1126
        %v1128 = vmul.f32 %v1127, 1.442695
        %v1129 = vpow.pop %v1128
        %v1131 = vsel %vm261, %v1129, 0
        %1133 = vmatprep.subr.mxu0 0.0
        %1134 = vmatpush1.msra.mxu0 %v158
        %1135 = vmatprep.subr.mxu0 0.0
        %1136 = vmatpush1.msra.mxu0 %v159
        %1137 = vmatprep.subr.mxu0 0.0
        %1138 = vmatpush1.msra.mxu0 %v160
        %1139 = vmatprep.subr.mxu0 0.0
        %1140 = vmatpush1.msra.mxu0 %v161
        %1141 = vmatprep.subr.mxu0 0.0
        %1142 = vmatpush1.msra.mxu0 0.0
        %1143 = vmatprep.subr.mxu0 0.0
        %1144 = vmatpush1.msra.mxu0 0.0
        %1145 = vmatprep.subr.mxu0 0.0
        %1146 = vmatpush1.msra.mxu0 0.0
        %1147 = vmatprep.subr.mxu0 0.0
        %1148 = vmatpush1.msra.mxu0 0.0
        %1149 = vmatprep.subr.mxu0 0.0
        %1150 = vmatpush1.msra.mxu0 0.0
        %1151 = vmatprep.subr.mxu0 0.0
        %1152 = vmatpush1.msra.mxu0 0.0
        %1153 = vmatprep.subr.mxu0 0.0
        %1154 = vmatpush1.msra.mxu0 0.0
        %1155 = vmatprep.subr.mxu0 0.0
        %1156 = vmatpush1.msra.mxu0 0.0
        %1157 = vmatprep.subr.mxu0 0.0
        %1158 = vmatpush1.msra.mxu0 0.0
        %1159 = vmatprep.subr.mxu0 0.0
        %1160 = vmatpush1.msra.mxu0 0.0
        %1161 = vmatprep.subr.mxu0 0.0
        %1162 = vmatpush1.msra.mxu0 0.0
        %1163 = vmatprep.subr.mxu0 0.0
        %1164 = vmatpush1.msra.mxu0 0.0
        %1165 = vmatprep.subr.mxu0 0.0
        %1166 = vmatpush1.msra.mxu0 0.0
        %1167 = vmatprep.subr.mxu0 0.0
        %1168 = vmatpush1.msra.mxu0 0.0
        %1169 = vmatprep.subr.mxu0 0.0
        %1170 = vmatpush1.msra.mxu0 0.0
        %1171 = vmatprep.subr.mxu0 0.0
        %1172 = vmatpush1.msra.mxu0 0.0
        %1173 = vmatprep.subr.mxu0 0.0
        %1174 = vmatpush1.msra.mxu0 0.0
        %1175 = vmatprep.subr.mxu0 0.0
        %1176 = vmatpush1.msra.mxu0 0.0
        %1177 = vmatprep.subr.mxu0 0.0
        %1178 = vmatpush1.msra.mxu0 0.0
        %1179 = vmatprep.subr.mxu0 0.0
        %1180 = vmatpush1.msra.mxu0 0.0
        %1181 = vmatprep.subr.mxu0 0.0
        %1182 = vmatpush1.msra.mxu0 0.0
        %1183 = vmatprep.subr.mxu0 0.0
        %1184 = vmatpush1.msra.mxu0 0.0
        %1185 = vmatprep.subr.mxu0 0.0
        %1186 = vmatpush1.msra.mxu0 0.0
        %1187 = vmatprep.subr.mxu0 0.0
        %1188 = vmatpush1.msra.mxu0 0.0
        %1189 = vmatprep.subr.mxu0 0.0
        %1190 = vmatpush1.msra.mxu0 0.0
        %1191 = vmatprep.subr.mxu0 0.0
        %1192 = vmatpush1.msra.mxu0 0.0
        %1193 = vmatprep.subr.mxu0 0.0
        %1194 = vmatpush1.msra.mxu0 0.0
        %1195 = vmatprep.subr.mxu0 0.0
        %1196 = vmatpush1.msra.mxu0 0.0
        %1197 = vmatprep.mubr.f32.mxu0 0.0
        %1198 = vmatmul.mubr.f32.gmra.mrb[0].mxu0 %v1131
        %v1199 = vpop.f32.mrb[0].mxu0
        %v1200 = vadd.f32 0.0, %v1199
        %v1201 = vpop.f32.mrb[0].mxu0
        %1202 = vdwg.mxu0
        %v1203 = vrcp.pop %v1200
        %v1204 = vmul.f32 %v1129, %v1203
        %1209 = vrot.lane.b32.xlu0 %v1026, 64
        %v1210 = vpop.permute.xlu0 %1209
        %1211 = vrot.lane.b32.xlu0 %v1027, 64
        %v1212 = vpop.permute.xlu0 %1211
        %1213 = vrot.lane.b32.xlu0 %v1028, 64
        %v1214 = vpop.permute.xlu0 %1213
        %1215 = vrot.lane.b32.xlu0 %v1029, 64
        %v1216 = vpop.permute.xlu0 %1215
        %v1222 = vsel %vm261, %v1204, 0
        %1224 = vmatprep.subr.mxu0 0.0
        %1225 = vmatpush1.msra.mxu0 %v1210
        %1226 = vmatprep.subr.mxu0 0.0
        %1227 = vmatpush1.msra.mxu0 %v1212
        %1228 = vmatprep.subr.mxu0 0.0
        %1229 = vmatpush1.msra.mxu0 %v1214
        %1230 = vmatprep.subr.mxu0 0.0
        %1231 = vmatpush1.msra.mxu0 %v1216
        %1232 = vmatprep.subr.mxu0 0.0
        %1233 = vmatpush1.msra.mxu0 0.0
        %1234 = vmatprep.subr.mxu0 0.0
        %1235 = vmatpush1.msra.mxu0 0.0
        %1236 = vmatprep.subr.mxu0 0.0
        %1237 = vmatpush1.msra.mxu0 0.0
        %1238 = vmatprep.subr.mxu0 0.0
        %1239 = vmatpush1.msra.mxu0 0.0
        %1240 = vmatprep.subr.mxu0 0.0
        %1241 = vmatpush1.msra.mxu0 0.0
        %1242 = vmatprep.subr.mxu0 0.0
        %1243 = vmatpush1.msra.mxu0 0.0
        %1244 = vmatprep.subr.mxu0 0.0
        %1245 = vmatpush1.msra.mxu0 0.0
        %1246 = vmatprep.subr.mxu0 0.0
        %1247 = vmatpush1.msra.mxu0 0.0
        %1248 = vmatprep.subr.mxu0 0.0
        %1249 = vmatpush1.msra.mxu0 0.0
        %1250 = vmatprep.subr.mxu0 0.0
        %1251 = vmatpush1.msra.mxu0 0.0
        %1252 = vmatprep.subr.mxu0 0.0
        %1253 = vmatpush1.msra.mxu0 0.0
        %1254 = vmatprep.subr.mxu0 0.0
        %1255 = vmatpush1.msra.mxu0 0.0
        %1256 = vmatprep.subr.mxu0 0.0
        %1257 = vmatpush1.msra.mxu0 0.0
        %1258 = vmatprep.subr.mxu0 0.0
        %1259 = vmatpush1.msra.mxu0 0.0
        %1260 = vmatprep.subr.mxu0 0.0
        %1261 = vmatpush1.msra.mxu0 0.0
        %1262 = vmatprep.subr.mxu0 0.0
        %1263 = vmatpush1.msra.mxu0 0.0
        %1264 = vmatprep.subr.mxu0 0.0
        %1265 = vmatpush1.msra.mxu0 0.0
        %1266 = vmatprep.subr.mxu0 0.0
        %1267 = vmatpush1.msra.mxu0 0.0
        %1268 = vmatprep.subr.mxu0 0.0
        %1269 = vmatpush1.msra.mxu0 0.0
        %1270 = vmatprep.subr.mxu0 0.0
        %1271 = vmatpush1.msra.mxu0 0.0
        %1272 = vmatprep.subr.mxu0 0.0
        %1273 = vmatpush1.msra.mxu0 0.0
        %1274 = vmatprep.subr.mxu0 0.0
        %1275 = vmatpush1.msra.mxu0 0.0
        %1276 = vmatprep.subr.mxu0 0.0
        %1277 = vmatpush1.msra.mxu0 0.0
        %1278 = vmatprep.subr.mxu0 0.0
        %1279 = vmatpush1.msra.mxu0 0.0
        %1280 = vmatprep.subr.mxu0 0.0
        %1281 = vmatpush1.msra.mxu0 0.0
        %1282 = vmatprep.subr.mxu0 0.0
        %1283 = vmatpush1.msra.mxu0 0.0
        %1284 = vmatprep.subr.mxu0 0.0
        %1285 = vmatpush1.msra.mxu0 0.0
        %1286 = vmatprep.subr.mxu0 0.0
        %1287 = vmatpush1.msra.mxu0 0.0
        %1288 = vmatprep.mubr.f32.mxu0 0.0
        %1289 = vmatmul.mubr.f32.gmra.mrb[0].mxu0 %v1222
        %v1290 = vpop.f32.mrb[0].mxu0
        %v1291 = vadd.f32 0.0, %v1290
        %v1292 = vpop.f32.mrb[0].mxu0
        %1293 = vdwg.mxu0
        %v1294 = vlaneseq
        %v1295 = vshrl.u32 %v1294, 7
        %v1296 = vsub.s32 0, %v1295
        %v1297 = vrot.slane %v1021, %v1296
        %v1299 = vsel %vm261, %v1291, 0
        %1301 = vmatprep.subr.mxu0 0.0
        %1302 = vmatpush1.msra.mxu0 %v1017
        %1303 = vmatprep.subr.mxu0 0.0
        %1304 = vmatpush1.msra.mxu0 %v1018
        %1305 = vmatprep.subr.mxu0 0.0
        %1306 = vmatpush1.msra.mxu0 %v1019
        %1307 = vmatprep.subr.mxu0 0.0
        %1308 = vmatpush1.msra.mxu0 %v1020
        %1309 = vmatprep.subr.mxu0 0.0
        %1310 = vmatpush1.msra.mxu0 0.0
        %1311 = vmatprep.subr.mxu0 0.0
        %1312 = vmatpush1.msra.mxu0 0.0
        %1313 = vmatprep.subr.mxu0 0.0
        %1314 = vmatpush1.msra.mxu0 0.0
        %1315 = vmatprep.subr.mxu0 0.0
        %1316 = vmatpush1.msra.mxu0 0.0
        %1317 = vmatprep.subr.mxu0 0.0
        %1318 = vmatpush1.msra.mxu0 0.0
        %1319 = vmatprep.subr.mxu0 0.0
        %1320 = vmatpush1.msra.mxu0 0.0
        %1321 = vmatprep.subr.mxu0 0.0
        %1322 = vmatpush1.msra.mxu0 0.0
        %1323 = vmatprep.subr.mxu0 0.0
        %1324 = vmatpush1.msra.mxu0 0.0
        %1325 = vmatprep.subr.mxu0 0.0
        %1326 = vmatpush1.msra.mxu0 0.0
        %1327 = vmatprep.subr.mxu0 0.0
        %1328 = vmatpush1.msra.mxu0 0.0
        %1329 = vmatprep.subr.mxu0 0.0
        %1330 = vmatpush1.msra.mxu0 0.0
        %1331 = vmatprep.subr.mxu0 0.0
        %1332 = vmatpush1.msra.mxu0 0.0
        %1333 = vmatprep.subr.mxu0 0.0
        %1334 = vmatpush1.msra.mxu0 0.0
        %1335 = vmatprep.subr.mxu0 0.0
        %1336 = vmatpush1.msra.mxu0 0.0
        %1337 = vmatprep.subr.mxu0 0.0
        %1338 = vmatpush1.msra.mxu0 0.0
        %1339 = vmatprep.subr.mxu0 0.0
        %1340 = vmatpush1.msra.mxu0 0.0
        %1341 = vmatprep.subr.mxu0 0.0
        %1342 = vmatpush1.msra.mxu0 0.0
        %1343 = vmatprep.subr.mxu0 0.0
        %1344 = vmatpush1.msra.mxu0 0.0
        %1345 = vmatprep.subr.mxu0 0.0
        %1346 = vmatpush1.msra.mxu0 0.0
        %1347 = vmatprep.subr.mxu0 0.0
        %1348 = vmatpush1.msra.mxu0 0.0
        %1349 = vmatprep.subr.mxu0 0.0
        %1350 = vmatpush1.msra.mxu0 0.0
        %1351 = vmatprep.subr.mxu0 0.0
        %1352 = vmatpush1.msra.mxu0 0.0
        %1353 = vmatprep.subr.mxu0 0.0
        %1354 = vmatpush1.msra.mxu0 0.0
        %1355 = vmatprep.subr.mxu0 0.0
        %1356 = vmatpush1.msra.mxu0 0.0
        %1357 = vmatprep.subr.mxu0 0.0
        %1358 = vmatpush1.msra.mxu0 0.0
        %1359 = vmatprep.subr.mxu0 0.0
        %1360 = vmatpush1.msra.mxu0 0.0
        %1361 = vmatprep.subr.mxu0 0.0
        %1362 = vmatpush1.msra.mxu0 0.0
        %1363 = vmatprep.subr.mxu0 0.0
        %1364 = vmatpush1.msra.mxu0 0.0
        %1365 = vmatprep.mubr.f32.mxu0 0.0
        %1366 = vmatmul.mubr.f32.gmra.mrb[0].mxu0 %v1299
        %v1367 = vpop.f32.mrb[0].mxu0
        %v1368 = vadd.f32 %v1297, %v1367
        %v1369 = vpop.f32.mrb[0].mxu0
        %1370 = vdwg.mxu0
        %v1371 = vadd.f32 %v934, %v1368
        %v1372 = vld [vmem:[#allocation2 + $0x3d0] sm:$0x1]
        %v1373 = vld [vmem:[#allocation2 + $0x3c8] sm:$0x1]
        %v1374 = vsel %vm261, %v1371, 0.0
        %1375 = vadd.xlane.f32.xlu0 %v1374
        %v1376 = vpop.xlane.xlu0 %1375
        %v1377 = vmul.f32 %v1376, %v723
        %v1378 = vsub.f32 %v1371, %v1377
        %v1379 = vmul.f32 %v1378, %v1378
        %v1380 = vsel %vm261, %v1379, 0.0
        %1381 = vadd.xlane.f32.xlu0 %v1380
        %v1382 = vpop.xlane.xlu0 %1381
        %v1383 = vmul.f32 %v1382, %v723
        %v1384 = vadd.f32 %v1383, 1e-05
        %v1385 = vrsqrt.pop %v1384
        %v1386 = vmul.f32 %v1378, %v1385
        %v1387 = vlaneseq
        %v1388 = vshrl.u32 %v1387, 7
        %v1389 = vsub.s32 0, %v1388
        %v1390 = vrot.slane %v1372, %v1389
        %v1391 = vmul.f32 %v1386, %v1390
        %v1392 = vlaneseq
        %v1393 = vshrl.u32 %v1392, 7
        %v1394 = vsub.s32 0, %v1393
        %v1395 = vrot.slane %v1373, %v1394
        %v1396 = vadd.f32 %v1391, %v1395
        %v1397 = vld [vmem:[#allocation2 + $0x438] sm:$0xff]
        %v1398 = vld [vmem:[#allocation2 + $0x440] sm:$0xff]
        %v1399 = vld [vmem:[#allocation2 + $0x448] sm:$0xff]
        %v1400 = vld [vmem:[#allocation2 + $0x450] sm:$0xff]
        %v1401 = vld [vmem:[#allocation2 + $0x3b8] sm:$0x1]
        %v1402 = vlaneseq
        %v1403 = vshrl.u32 %v1402, 7
        %v1404 = vsub.s32 0, %v1403
        %v1405 = vrot.slane %v1401, %v1404
        %v1407 = vsel %vm261, %v1396, 0
        %1409 = vmatprep.subr.mxu0 0.0
        %1410 = vmatpush1.msra.mxu0 %v1397
        %1411 = vmatprep.subr.mxu0 0.0
        %1412 = vmatpush1.msra.mxu0 %v1398
        %1413 = vmatprep.subr.mxu0 0.0
        %1414 = vmatpush1.msra.mxu0 %v1399
        %1415 = vmatprep.subr.mxu0 0.0
        %1416 = vmatpush1.msra.mxu0 %v1400
        %1417 = vmatprep.subr.mxu0 0.0
        %1418 = vmatpush1.msra.mxu0 0.0
        %1419 = vmatprep.subr.mxu0 0.0
        %1420 = vmatpush1.msra.mxu0 0.0
        %1421 = vmatprep.subr.mxu0 0.0
        %1422 = vmatpush1.msra.mxu0 0.0
        %1423 = vmatprep.subr.mxu0 0.0
        %1424 = vmatpush1.msra.mxu0 0.0
        %1425 = vmatprep.subr.mxu0 0.0
        %1426 = vmatpush1.msra.mxu0 0.0
        %1427 = vmatprep.subr.mxu0 0.0
        %1428 = vmatpush1.msra.mxu0 0.0
        %1429 = vmatprep.subr.mxu0 0.0
        %1430 = vmatpush1.msra.mxu0 0.0
        %1431 = vmatprep.subr.mxu0 0.0
        %1432 = vmatpush1.msra.mxu0 0.0
        %1433 = vmatprep.subr.mxu0 0.0
        %1434 = vmatpush1.msra.mxu0 0.0
        %1435 = vmatprep.subr.mxu0 0.0
        %1436 = vmatpush1.msra.mxu0 0.0
        %1437 = vmatprep.subr.mxu0 0.0
        %1438 = vmatpush1.msra.mxu0 0.0
        %1439 = vmatprep.subr.mxu0 0.0
        %1440 = vmatpush1.msra.mxu0 0.0
        %1441 = vmatprep.subr.mxu0 0.0
        %1442 = vmatpush1.msra.mxu0 0.0
        %1443 = vmatprep.subr.mxu0 0.0
        %1444 = vmatpush1.msra.mxu0 0.0
        %1445 = vmatprep.subr.mxu0 0.0
        %1446 = vmatpush1.msra.mxu0 0.0
        %1447 = vmatprep.subr.mxu0 0.0
        %1448 = vmatpush1.msra.mxu0 0.0
        %1449 = vmatprep.subr.mxu0 0.0
        %1450 = vmatpush1.msra.mxu0 0.0
        %1451 = vmatprep.subr.mxu0 0.0
        %1452 = vmatpush1.msra.mxu0 0.0
        %1453 = vmatprep.subr.mxu0 0.0
        %1454 = vmatpush1.msra.mxu0 0.0
        %1455 = vmatprep.subr.mxu0 0.0
        %1456 = vmatpush1.msra.mxu0 0.0
        %1457 = vmatprep.subr.mxu0 0.0
        %1458 = vmatpush1.msra.mxu0 0.0
        %1459 = vmatprep.subr.mxu0 0.0
        %1460 = vmatpush1.msra.mxu0 0.0
        %1461 = vmatprep.subr.mxu0 0.0
        %1462 = vmatpush1.msra.mxu0 0.0
        %1463 = vmatprep.subr.mxu0 0.0
        %1464 = vmatpush1.msra.mxu0 0.0
        %1465 = vmatprep.subr.mxu0 0.0
        %1466 = vmatpush1.msra.mxu0 0.0
        %1467 = vmatprep.subr.mxu0 0.0
        %1468 = vmatpush1.msra.mxu0 0.0
        %1469 = vmatprep.subr.mxu0 0.0
        %1470 = vmatpush1.msra.mxu0 0.0
        %1471 = vmatprep.subr.mxu0 0.0
        %1472 = vmatpush1.msra.mxu0 0.0
        %1473 = vmatprep.mubr.f32.mxu0 0.0
        %1474 = vmatmul.mubr.f32.gmra.mrb[0].mxu0 %v1407
        %v1475 = vpop.f32.mrb[0].mxu0
        %v1476 = vadd.f32 %v1405, %v1475
        %v1477 = vpop.f32.mrb[0].mxu0
        %1478 = vdwg.mxu0
        %v1479 = vmax.f32 %v1476, 0.0
        %v1480 = vld [vmem:[#allocation2 + $0x458] sm:$0xff]
        %v1481 = vld [vmem:[#allocation2 + $0x460] sm:$0xff]
        %v1482 = vld [vmem:[#allocation2 + $0x468] sm:$0xff]
        %v1483 = vld [vmem:[#allocation2 + $0x470] sm:$0xff]
        %v1484 = vld [vmem:[#allocation2 + $0x3c0] sm:$0x1]
        %v1485 = vlaneseq
        %v1486 = vshrl.u32 %v1485, 7
        %v1487 = vsub.s32 0, %v1486
        %v1488 = vrot.slane %v1484, %v1487
        %v1490 = vsel %vm261, %v1479, 0
        %1492 = vmatprep.subr.mxu0 0.0
        %1493 = vmatpush1.msra.mxu0 %v1480
        %1494 = vmatprep.subr.mxu0 0.0
        %1495 = vmatpush1.msra.mxu0 %v1481
        %1496 = vmatprep.subr.mxu0 0.0
        %1497 = vmatpush1.msra.mxu0 %v1482
        %1498 = vmatprep.subr.mxu0 0.0
        %1499 = vmatpush1.msra.mxu0 %v1483
        %1500 = vmatprep.subr.mxu0 0.0
        %1501 = vmatpush1.msra.mxu0 0.0
        %1502 = vmatprep.subr.mxu0 0.0
        %1503 = vmatpush1.msra.mxu0 0.0
        %1504 = vmatprep.subr.mxu0 0.0
        %1505 = vmatpush1.msra.mxu0 0.0
        %1506 = vmatprep.subr.mxu0 0.0
        %1507 = vmatpush1.msra.mxu0 0.0
        %1508 = vmatprep.subr.mxu0 0.0
        %1509 = vmatpush1.msra.mxu0 0.0
        %1510 = vmatprep.subr.mxu0 0.0
        %1511 = vmatpush1.msra.mxu0 0.0
        %1512 = vmatprep.subr.mxu0 0.0
        %1513 = vmatpush1.msra.mxu0 0.0
        %1514 = vmatprep.subr.mxu0 0.0
        %1515 = vmatpush1.msra.mxu0 0.0
        %1516 = vmatprep.subr.mxu0 0.0
        %1517 = vmatpush1.msra.mxu0 0.0
        %1518 = vmatprep.subr.mxu0 0.0
        %1519 = vmatpush1.msra.mxu0 0.0
        %1520 = vmatprep.subr.mxu0 0.0
        %1521 = vmatpush1.msra.mxu0 0.0
        %1522 = vmatprep.subr.mxu0 0.0
        %1523 = vmatpush1.msra.mxu0 0.0
        %1524 = vmatprep.subr.mxu0 0.0
        %1525 = vmatpush1.msra.mxu0 0.0
        %1526 = vmatprep.subr.mxu0 0.0
        %1527 = vmatpush1.msra.mxu0 0.0
        %1528 = vmatprep.subr.mxu0 0.0
        %1529 = vmatpush1.msra.mxu0 0.0
        %1530 = vmatprep.subr.mxu0 0.0
        %1531 = vmatpush1.msra.mxu0 0.0
        %1532 = vmatprep.subr.mxu0 0.0
        %1533 = vmatpush1.msra.mxu0 0.0
        %1534 = vmatprep.subr.mxu0 0.0
        %1535 = vmatpush1.msra.mxu0 0.0
        %1536 = vmatprep.subr.mxu0 0.0
        %1537 = vmatpush1.msra.mxu0 0.0
        %1538 = vmatprep.subr.mxu0 0.0
        %1539 = vmatpush1.msra.mxu0 0.0
        %1540 = vmatprep.subr.mxu0 0.0
        %1541 = vmatpush1.msra.mxu0 0.0
        %1542 = vmatprep.subr.mxu0 0.0
        %1543 = vmatpush1.msra.mxu0 0.0
        %1544 = vmatprep.subr.mxu0 0.0
        %1545 = vmatpush1.msra.mxu0 0.0
        %1546 = vmatprep.subr.mxu0 0.0
        %1547 = vmatpush1.msra.mxu0 0.0
        %1548 = vmatprep.subr.mxu0 0.0
        %1549 = vmatpush1.msra.mxu0 0.0
        %1550 = vmatprep.subr.mxu0 0.0
        %1551 = vmatpush1.msra.mxu0 0.0
        %1552 = vmatprep.subr.mxu0 0.0
        %1553 = vmatpush1.msra.mxu0 0.0
        %1554 = vmatprep.subr.mxu0 0.0
        %1555 = vmatpush1.msra.mxu0 0.0
        %1556 = vmatprep.mubr.f32.mxu0 0.0
        %1557 = vmatmul.mubr.f32.gmra.mrb[0].mxu0 %v1490
        %v1558 = vpop.f32.mrb[0].mxu0
        %v1559 = vadd.f32 %v1488, %v1558
        %v1560 = vpop.f32.mrb[0].mxu0
        %1561 = vdwg.mxu0
        %v1562 = vadd.f32 %v1396, %v1559
        %v1563 = vld [vmem:[#allocation2 + $0x3e0] sm:$0x1]
        %v1564 = vld [vmem:[#allocation2 + $0x3d8] sm:$0x1]
        %v1565 = vsel %vm261, %v1562, 0.0
        %1566 = vadd.xlane.f32.xlu0 %v1565
        %v1567 = vpop.xlane.xlu0 %1566
        %v1568 = vmul.f32 %v1567, %v723
        %v1569 = vsub.f32 %v1562, %v1568
        %v1570 = vmul.f32 %v1569, %v1569
        %v1571 = vsel %vm261, %v1570, 0.0
        %1572 = vadd.xlane.f32.xlu0 %v1571
        %v1573 = vpop.xlane.xlu0 %1572
        %v1574 = vmul.f32 %v1573, %v723
        %v1575 = vadd.f32 %v1574, 1e-05
        %v1576 = vrsqrt.pop %v1575
        %v1577 = vmul.f32 %v1569, %v1576
        %v1578 = vlaneseq
        %v1579 = vshrl.u32 %v1578, 7
        %v1580 = vsub.s32 0, %v1579
        %v1581 = vrot.slane %v1563, %v1580
        %v1582 = vmul.f32 %v1577, %v1581
        %v1583 = vlaneseq
        %v1584 = vshrl.u32 %v1583, 7
        %v1585 = vsub.s32 0, %v1584
        %v1586 = vrot.slane %v1564, %v1585
        %v1587 = vadd.f32 %v1582, %v1586
        %v1588 = vld [vmem:[#allocation2 + $0x480] sm:$0x1]
        %v1589 = vld [vmem:[#allocation2 + $0x478] sm:$0x1]
        %v1590 = vsel %vm261, %v1587, 0.0
        %1591 = vadd.xlane.f32.xlu0 %v1590
        %v1592 = vpop.xlane.xlu0 %1591
        %v1593 = vmul.f32 %v1592, %v723
        %v1594 = vsub.f32 %v1587, %v1593
        %v1595 = vmul.f32 %v1594, %v1594
        %v1596 = vsel %vm261, %v1595, 0.0
        %1597 = vadd.xlane.f32.xlu0 %v1596
        %v1598 = vpop.xlane.xlu0 %1597
        %v1599 = vmul.f32 %v1598, %v723
        %v1600 = vadd.f32 %v1599, 1e-05
        %v1601 = vrsqrt.pop %v1600
        %v1602 = vmul.f32 %v1594, %v1601
        %v1603 = vlaneseq
        %v1604 = vshrl.u32 %v1603, 7
        %v1605 = vsub.s32 0, %v1604
        %v1606 = vrot.slane %v1588, %v1605
        %v1607 = vmul.f32 %v1602, %v1606
        %v1608 = vlaneseq
        %v1609 = vshrl.u32 %v1608, 7
        %v1610 = vsub.s32 0, %v1609
        %v1611 = vrot.slane %v1589, %v1610
        %v1612 = vadd.f32 %v1607, %v1611
        %v1613 = vld [vmem:[#allocation2 + $0x140] sm:$0xff]
        %v1614 = vld [vmem:[#allocation2 + $0x148] sm:$0xff]
        %v1615 = vld [vmem:[#allocation2 + $0x150] sm:$0xff]
        %v1616 = vld [vmem:[#allocation2 + $0x158] sm:$0xff]
        %v1617 = vld [vmem:[#allocation2 + $0x118] sm:$0x1]
        %v1618 = vlaneseq
        %v1619 = vshrl.u32 %v1618, 7
        %v1620 = vsub.s32 0, %v1619
        %v1621 = vrot.slane %v1617, %v1620
        %1622 = vmatprep.subr.mxu0 0.0
        %1623 = vmatpush1.msra.mxu0 %v1613
        %1624 = vmatprep.subr.mxu0 0.0
        %1625 = vmatpush1.msra.mxu0 %v1614
        %1626 = vmatprep.subr.mxu0 0.0
        %1627 = vmatpush1.msra.mxu0 %v1615
        %1628 = vmatprep.subr.mxu0 0.0
        %1629 = vmatpush1.msra.mxu0 %v1616
        %1630 = vmatprep.subr.mxu0 0.0
        %1631 = vmatpush1.msra.mxu0 0.0
        %1632 = vmatprep.subr.mxu0 0.0
        %1633 = vmatpush1.msra.mxu0 0.0
        %1634 = vmatprep.subr.mxu0 0.0
        %1635 = vmatpush1.msra.mxu0 0.0
        %1636 = vmatprep.subr.mxu0 0.0
        %1637 = vmatpush1.msra.mxu0 0.0
        %1638 = vmatprep.subr.mxu0 0.0
        %1639 = vmatpush1.msra.mxu0 0.0
        %1640 = vmatprep.subr.mxu0 0.0
        %1641 = vmatpush1.msra.mxu0 0.0
        %1642 = vmatprep.subr.mxu0 0.0
        %1643 = vmatpush1.msra.mxu0 0.0
        %1644 = vmatprep.subr.mxu0 0.0
        %1645 = vmatpush1.msra.mxu0 0.0
        %1646 = vmatprep.subr.mxu0 0.0
        %1647 = vmatpush1.msra.mxu0 0.0
        %1648 = vmatprep.subr.mxu0 0.0
        %1649 = vmatpush1.msra.mxu0 0.0
        %1650 = vmatprep.subr.mxu0 0.0
        %1651 = vmatpush1.msra.mxu0 0.0
        %1652 = vmatprep.subr.mxu0 0.0
        %1653 = vmatpush1.msra.mxu0 0.0
        %1654 = vmatprep.subr.mxu0 0.0
        %1655 = vmatpush1.msra.mxu0 0.0
        %1656 = vmatprep.subr.mxu0 0.0
        %1657 = vmatpush1.msra.mxu0 0.0
        %1658 = vmatprep.subr.mxu0 0.0
        %1659 = vmatpush1.msra.mxu0 0.0
        %1660 = vmatprep.subr.mxu0 0.0
        %1661 = vmatpush1.msra.mxu0 0.0
        %1662 = vmatprep.subr.mxu0 0.0
        %1663 = vmatpush1.msra.mxu0 0.0
        %1664 = vmatprep.subr.mxu0 0.0
        %1665 = vmatpush1.msra.mxu0 0.0
        %1666 = vmatprep.subr.mxu0 0.0
        %1667 = vmatpush1.msra.mxu0 0.0
        %1668 = vmatprep.subr.mxu0 0.0
        %1669 = vmatpush1.msra.mxu0 0.0
        %1670 = vmatprep.subr.mxu0 0.0
        %1671 = vmatpush1.msra.mxu0 0.0
        %1672 = vmatprep.subr.mxu0 0.0
        %1673 = vmatpush1.msra.mxu0 0.0
        %1674 = vmatprep.subr.mxu0 0.0
        %1675 = vmatpush1.msra.mxu0 0.0
        %1676 = vmatprep.subr.mxu0 0.0
        %1677 = vmatpush1.msra.mxu0 0.0
        %1678 = vmatprep.subr.mxu0 0.0
        %1679 = vmatpush1.msra.mxu0 0.0
        %1680 = vmatprep.subr.mxu0 0.0
        %1681 = vmatpush1.msra.mxu0 0.0
        %1682 = vmatprep.subr.mxu0 0.0
        %1683 = vmatpush1.msra.mxu0 0.0
        %1684 = vmatprep.subr.mxu0 0.0
        %1685 = vmatpush1.msra.mxu0 0.0
        %1686 = vmatprep.mubr.f32.mxu0 0.0
        %1687 = vmatmul.mubr.f32.gmra.mrb[0].mxu0 %v263
        %v1688 = vpop.f32.mrb[0].mxu0
        %v1689 = vadd.f32 %v1621, %v1688
        %v1690 = vpop.f32.mrb[0].mxu0
        %1691 = vdwg.mxu0
        %v1692 = vld [vmem:[#allocation2 + $0x120] sm:$0xff]
        %v1693 = vld [vmem:[#allocation2 + $0x128] sm:$0xff]
        %v1694 = vld [vmem:[#allocation2 + $0x130] sm:$0xff]
        %v1695 = vld [vmem:[#allocation2 + $0x138] sm:$0xff]
        %v1696 = vld [vmem:[#allocation2 + $0x110] sm:$0x1]
        %v1697 = vmul.f32 %v1689, %v345
        %v1698 = vmul.f32 %v1689, %v347
        %v1699 = vmul.f32 %v1689, %v349
        %v1700 = vmul.f32 %v1689, %v351
        %v1701 = vmul.f32 %v1689, %v361
        %v1702 = vmul.f32 %v1689, %v363
        %v1703 = vmul.f32 %v1689, %v365
        %v1704 = vmul.f32 %v1689, %v367
        %1709 = vrot.lane.b32.xlu0 %v1697, 96
        %v1710 = vpop.permute.xlu0 %1709
        %1711 = vrot.lane.b32.xlu0 %v1698, 96
        %v1712 = vpop.permute.xlu0 %1711
        %1713 = vrot.lane.b32.xlu0 %v1699, 96
        %v1714 = vpop.permute.xlu0 %1713
        %1715 = vrot.lane.b32.xlu0 %v1700, 96
        %v1716 = vpop.permute.xlu0 %1715
        %v1718 = vsel %vm261, %v1689, 0
        %v1720 = vsel %vm261, %v1710, 0
        %v1722 = vsel %vm261, %v1712, 0
        %v1724 = vsel %vm261, %v1714, 0
        %v1726 = vsel %vm261, %v1716, 0
        %1728 = vmatprep.subr.mxu0 0.0
        %1729 = vmatpush1.xpose.msra.mxu0 %v1720
        %1730 = vmatprep.subr.mxu0 0.0
        %1731 = vmatpush1.xpose.msra.mxu0 %v1722
        %1732 = vmatprep.subr.mxu0 0.0
        %1733 = vmatpush1.xpose.msra.mxu0 %v1724
        %1734 = vmatprep.subr.mxu0 0.0
        %1735 = vmatpush1.xpose.msra.mxu0 %v1726
        %1736 = vmatprep.subr.mxu0 0.0
        %1737 = vmatpush1.xpose.msra.mxu0 0.0
        %1738 = vmatprep.subr.mxu0 0.0
        %1739 = vmatpush1.xpose.msra.mxu0 0.0
        %1740 = vmatprep.subr.mxu0 0.0
        %1741 = vmatpush1.xpose.msra.mxu0 0.0
        %1742 = vmatprep.subr.mxu0 0.0
        %1743 = vmatpush1.xpose.msra.mxu0 0.0
        %1744 = vmatprep.subr.mxu0 0.0
        %1745 = vmatpush1.xpose.msra.mxu0 0.0
        %1746 = vmatprep.subr.mxu0 0.0
        %1747 = vmatpush1.xpose.msra.mxu0 0.0
        %1748 = vmatprep.subr.mxu0 0.0
        %1749 = vmatpush1.xpose.msra.mxu0 0.0
        %1750 = vmatprep.subr.mxu0 0.0
        %1751 = vmatpush1.xpose.msra.mxu0 0.0
        %1752 = vmatprep.subr.mxu0 0.0
        %1753 = vmatpush1.xpose.msra.mxu0 0.0
        %1754 = vmatprep.subr.mxu0 0.0
        %1755 = vmatpush1.xpose.msra.mxu0 0.0
        %1756 = vmatprep.subr.mxu0 0.0
        %1757 = vmatpush1.xpose.msra.mxu0 0.0
        %1758 = vmatprep.subr.mxu0 0.0
        %1759 = vmatpush1.xpose.msra.mxu0 0.0
        %1760 = vmatprep.subr.mxu0 0.0
        %1761 = vmatpush1.xpose.msra.mxu0 0.0
        %1762 = vmatprep.subr.mxu0 0.0
        %1763 = vmatpush1.xpose.msra.mxu0 0.0
        %1764 = vmatprep.subr.mxu0 0.0
        %1765 = vmatpush1.xpose.msra.mxu0 0.0
        %1766 = vmatprep.subr.mxu0 0.0
        %1767 = vmatpush1.xpose.msra.mxu0 0.0
        %1768 = vmatprep.subr.mxu0 0.0
        %1769 = vmatpush1.xpose.msra.mxu0 0.0
        %1770 = vmatprep.subr.mxu0 0.0
        %1771 = vmatpush1.xpose.msra.mxu0 0.0
        %1772 = vmatprep.subr.mxu0 0.0
        %1773 = vmatpush1.xpose.msra.mxu0 0.0
        %1774 = vmatprep.subr.mxu0 0.0
        %1775 = vmatpush1.xpose.msra.mxu0 0.0
        %1776 = vmatprep.subr.mxu0 0.0
        %1777 = vmatpush1.xpose.msra.mxu0 0.0
        %1778 = vmatprep.subr.mxu0 0.0
        %1779 = vmatpush1.xpose.msra.mxu0 0.0
        %1780 = vmatprep.subr.mxu0 0.0
        %1781 = vmatpush1.xpose.msra.mxu0 0.0
        %1782 = vmatprep.subr.mxu0 0.0
        %1783 = vmatpush1.xpose.msra.mxu0 0.0
        %1784 = vmatprep.subr.mxu0 0.0
        %1785 = vmatpush1.xpose.msra.mxu0 0.0
        %1786 = vmatprep.subr.mxu0 0.0
        %1787 = vmatpush1.xpose.msra.mxu0 0.0
        %1788 = vmatprep.subr.mxu0 0.0
        %1789 = vmatpush1.xpose.msra.mxu0 0.0
        %1790 = vmatprep.subr.mxu0 0.0
        %1791 = vmatpush1.xpose.msra.mxu0 0.0
        %1792 = vmatprep.mubr.f32.mxu0 0.0
        %1793 = vmatmul.mubr.f32.gmra.mrb[0].mxu0 %v1718
        %v1794 = vpop.f32.mrb[0].mxu0
        %v1795 = vadd.f32 0.0, %v1794
        %v1796 = vpop.f32.mrb[0].mxu0
        %1797 = vdwg.mxu0
        %v1798 = vmul.f32 %v1795, 0.35355338
        %v1799 = vsel %vm261, %v1798, -inf
        %1800 = vmax.xlane.f32.xlu0 %v1799
        %v1801 = vpop.xlane.xlu0 %1800
        %v1802 = vsub.f32 %v1798, %v1801
        %v1803 = vmul.f32 %v1802, 1.442695
        %v1804 = vpow.pop %v1803
        %v1806 = vsel %vm261, %v1804, 0
        %1808 = vmatprep.subr.mxu0 0.0
        %1809 = vmatpush1.msra.mxu0 %v158
        %1810 = vmatprep.subr.mxu0 0.0
        %1811 = vmatpush1.msra.mxu0 %v159
        %1812 = vmatprep.subr.mxu0 0.0
        %1813 = vmatpush1.msra.mxu0 %v160
        %1814 = vmatprep.subr.mxu0 0.0
        %1815 = vmatpush1.msra.mxu0 %v161
        %1816 = vmatprep.subr.mxu0 0.0
        %1817 = vmatpush1.msra.mxu0 0.0
        %1818 = vmatprep.subr.mxu0 0.0
        %1819 = vmatpush1.msra.mxu0 0.0
        %1820 = vmatprep.subr.mxu0 0.0
        %1821 = vmatpush1.msra.mxu0 0.0
        %1822 = vmatprep.subr.mxu0 0.0
        %1823 = vmatpush1.msra.mxu0 0.0
        %1824 = vmatprep.subr.mxu0 0.0
        %1825 = vmatpush1.msra.mxu0 0.0
        %1826 = vmatprep.subr.mxu0 0.0
        %1827 = vmatpush1.msra.mxu0 0.0
        %1828 = vmatprep.subr.mxu0 0.0
        %1829 = vmatpush1.msra.mxu0 0.0
        %1830 = vmatprep.subr.mxu0 0.0
        %1831 = vmatpush1.msra.mxu0 0.0
        %1832 = vmatprep.subr.mxu0 0.0
        %1833 = vmatpush1.msra.mxu0 0.0
        %1834 = vmatprep.subr.mxu0 0.0
        %1835 = vmatpush1.msra.mxu0 0.0
        %1836 = vmatprep.subr.mxu0 0.0
        %1837 = vmatpush1.msra.mxu0 0.0
        %1838 = vmatprep.subr.mxu0 0.0
        %1839 = vmatpush1.msra.mxu0 0.0
        %1840 = vmatprep.subr.mxu0 0.0
        %1841 = vmatpush1.msra.mxu0 0.0
        %1842 = vmatprep.subr.mxu0 0.0
        %1843 = vmatpush1.msra.mxu0 0.0
        %1844 = vmatprep.subr.mxu0 0.0
        %1845 = vmatpush1.msra.mxu0 0.0
        %1846 = vmatprep.subr.mxu0 0.0
        %1847 = vmatpush1.msra.mxu0 0.0
        %1848 = vmatprep.subr.mxu0 0.0
        %1849 = vmatpush1.msra.mxu0 0.0
        %1850 = vmatprep.subr.mxu0 0.0
        %1851 = vmatpush1.msra.mxu0 0.0
        %1852 = vmatprep.subr.mxu0 0.0
        %1853 = vmatpush1.msra.mxu0 0.0
        %1854 = vmatprep.subr.mxu0 0.0
        %1855 = vmatpush1.msra.mxu0 0.0
        %1856 = vmatprep.subr.mxu0 0.0
        %1857 = vmatpush1.msra.mxu0 0.0
        %1858 = vmatprep.subr.mxu0 0.0
        %1859 = vmatpush1.msra.mxu0 0.0
        %1860 = vmatprep.subr.mxu0 0.0
        %1861 = vmatpush1.msra.mxu0 0.0
        %1862 = vmatprep.subr.mxu0 0.0
        %1863 = vmatpush1.msra.mxu0 0.0
        %1864 = vmatprep.subr.mxu0 0.0
        %1865 = vmatpush1.msra.mxu0 0.0
        %1866 = vmatprep.subr.mxu0 0.0
        %1867 = vmatpush1.msra.mxu0 0.0
        %1868 = vmatprep.subr.mxu0 0.0
        %1869 = vmatpush1.msra.mxu0 0.0
        %1870 = vmatprep.subr.mxu0 0.0
        %1871 = vmatpush1.msra.mxu0 0.0
        %1872 = vmatprep.mubr.f32.mxu0 0.0
        %1873 = vmatmul.mubr.f32.gmra.mrb[0].mxu0 %v1806
        %v1874 = vpop.f32.mrb[0].mxu0
        %v1875 = vadd.f32 0.0, %v1874
        %v1876 = vpop.f32.mrb[0].mxu0
        %1877 = vdwg.mxu0
        %v1878 = vrcp.pop %v1875
        %v1879 = vmul.f32 %v1804, %v1878
        %1884 = vrot.lane.b32.xlu0 %v1701, 64
        %v1885 = vpop.permute.xlu0 %1884
        %1886 = vrot.lane.b32.xlu0 %v1702, 64
        %v1887 = vpop.permute.xlu0 %1886
        %1888 = vrot.lane.b32.xlu0 %v1703, 64
        %v1889 = vpop.permute.xlu0 %1888
        %1890 = vrot.lane.b32.xlu0 %v1704, 64
        %v1891 = vpop.permute.xlu0 %1890
        %v1897 = vsel %vm261, %v1879, 0
        %1899 = vmatprep.subr.mxu0 0.0
        %1900 = vmatpush1.msra.mxu0 %v1885
        %1901 = vmatprep.subr.mxu0 0.0
        %1902 = vmatpush1.msra.mxu0 %v1887
        %1903 = vmatprep.subr.mxu0 0.0
        %1904 = vmatpush1.msra.mxu0 %v1889
        %1905 = vmatprep.subr.mxu0 0.0
        %1906 = vmatpush1.msra.mxu0 %v1891
        %1907 = vmatprep.subr.mxu0 0.0
        %1908 = vmatpush1.msra.mxu0 0.0
        %1909 = vmatprep.subr.mxu0 0.0
        %1910 = vmatpush1.msra.mxu0 0.0
        %1911 = vmatprep.subr.mxu0 0.0
        %1912 = vmatpush1.msra.mxu0 0.0
        %1913 = vmatprep.subr.mxu0 0.0
        %1914 = vmatpush1.msra.mxu0 0.0
        %1915 = vmatprep.subr.mxu0 0.0
        %1916 = vmatpush1.msra.mxu0 0.0
        %1917 = vmatprep.subr.mxu0 0.0
        %1918 = vmatpush1.msra.mxu0 0.0
        %1919 = vmatprep.subr.mxu0 0.0
        %1920 = vmatpush1.msra.mxu0 0.0
        %1921 = vmatprep.subr.mxu0 0.0
        %1922 = vmatpush1.msra.mxu0 0.0
        %1923 = vmatprep.subr.mxu0 0.0
        %1924 = vmatpush1.msra.mxu0 0.0
        %1925 = vmatprep.subr.mxu0 0.0
        %1926 = vmatpush1.msra.mxu0 0.0
        %1927 = vmatprep.subr.mxu0 0.0
        %1928 = vmatpush1.msra.mxu0 0.0
        %1929 = vmatprep.subr.mxu0 0.0
        %1930 = vmatpush1.msra.mxu0 0.0
        %1931 = vmatprep.subr.mxu0 0.0
        %1932 = vmatpush1.msra.mxu0 0.0
        %1933 = vmatprep.subr.mxu0 0.0
        %1934 = vmatpush1.msra.mxu0 0.0
        %1935 = vmatprep.subr.mxu0 0.0
        %1936 = vmatpush1.msra.mxu0 0.0
        %1937 = vmatprep.subr.mxu0 0.0
        %1938 = vmatpush1.msra.mxu0 0.0
        %1939 = vmatprep.subr.mxu0 0.0
        %1940 = vmatpush1.msra.mxu0 0.0
        %1941 = vmatprep.subr.mxu0 0.0
        %1942 = vmatpush1.msra.mxu0 0.0
        %1943 = vmatprep.subr.mxu0 0.0
        %1944 = vmatpush1.msra.mxu0 0.0
        %1945 = vmatprep.subr.mxu0 0.0
        %1946 = vmatpush1.msra.mxu0 0.0
        %1947 = vmatprep.subr.mxu0 0.0
        %1948 = vmatpush1.msra.mxu0 0.0
        %1949 = vmatprep.subr.mxu0 0.0
        %1950 = vmatpush1.msra.mxu0 0.0
        %1951 = vmatprep.subr.mxu0 0.0
        %1952 = vmatpush1.msra.mxu0 0.0
        %1953 = vmatprep.subr.mxu0 0.0
        %1954 = vmatpush1.msra.mxu0 0.0
        %1955 = vmatprep.subr.mxu0 0.0
        %1956 = vmatpush1.msra.mxu0 0.0
        %1957 = vmatprep.subr.mxu0 0.0
        %1958 = vmatpush1.msra.mxu0 0.0
        %1959 = vmatprep.subr.mxu0 0.0
        %1960 = vmatpush1.msra.mxu0 0.0
        %1961 = vmatprep.subr.mxu0 0.0
        %1962 = vmatpush1.msra.mxu0 0.0
        %1963 = vmatprep.mubr.f32.mxu0 0.0
        %1964 = vmatmul.mubr.f32.gmra.mrb[0].mxu0 %v1897
        %v1965 = vpop.f32.mrb[0].mxu0
        %v1966 = vadd.f32 0.0, %v1965
        %v1967 = vpop.f32.mrb[0].mxu0
        %1968 = vdwg.mxu0
        %v1969 = vlaneseq
        %v1970 = vshrl.u32 %v1969, 7
        %v1971 = vsub.s32 0, %v1970
        %v1972 = vrot.slane %v1696, %v1971
        %v1974 = vsel %vm261, %v1966, 0
        %1976 = vmatprep.subr.mxu0 0.0
        %1977 = vmatpush1.msra.mxu0 %v1692
        %1978 = vmatprep.subr.mxu0 0.0
        %1979 = vmatpush1.msra.mxu0 %v1693
        %1980 = vmatprep.subr.mxu0 0.0
        %1981 = vmatpush1.msra.mxu0 %v1694
        %1982 = vmatprep.subr.mxu0 0.0
        %1983 = vmatpush1.msra.mxu0 %v1695
        %1984 = vmatprep.subr.mxu0 0.0
        %1985 = vmatpush1.msra.mxu0 0.0
        %1986 = vmatprep.subr.mxu0 0.0
        %1987 = vmatpush1.msra.mxu0 0.0
        %1988 = vmatprep.subr.mxu0 0.0
        %1989 = vmatpush1.msra.mxu0 0.0
        %1990 = vmatprep.subr.mxu0 0.0
        %1991 = vmatpush1.msra.mxu0 0.0
        %1992 = vmatprep.subr.mxu0 0.0
        %1993 = vmatpush1.msra.mxu0 0.0
        %1994 = vmatprep.subr.mxu0 0.0
        %1995 = vmatpush1.msra.mxu0 0.0
        %1996 = vmatprep.subr.mxu0 0.0
        %1997 = vmatpush1.msra.mxu0 0.0
        %1998 = vmatprep.subr.mxu0 0.0
        %1999 = vmatpush1.msra.mxu0 0.0
        %2000 = vmatprep.subr.mxu0 0.0
        %2001 = vmatpush1.msra.mxu0 0.0
        %2002 = vmatprep.subr.mxu0 0.0
        %2003 = vmatpush1.msra.mxu0 0.0
        %2004 = vmatprep.subr.mxu0 0.0
        %2005 = vmatpush1.msra.mxu0 0.0
        %2006 = vmatprep.subr.mxu0 0.0
        %2007 = vmatpush1.msra.mxu0 0.0
        %2008 = vmatprep.subr.mxu0 0.0
        %2009 = vmatpush1.msra.mxu0 0.0
        %2010 = vmatprep.subr.mxu0 0.0
        %2011 = vmatpush1.msra.mxu0 0.0
        %2012 = vmatprep.subr.mxu0 0.0
        %2013 = vmatpush1.msra.mxu0 0.0
        %2014 = vmatprep.subr.mxu0 0.0
        %2015 = vmatpush1.msra.mxu0 0.0
        %2016 = vmatprep.subr.mxu0 0.0
        %2017 = vmatpush1.msra.mxu0 0.0
        %2018 = vmatprep.subr.mxu0 0.0
        %2019 = vmatpush1.msra.mxu0 0.0
        %2020 = vmatprep.subr.mxu0 0.0
        %2021 = vmatpush1.msra.mxu0 0.0
        %2022 = vmatprep.subr.mxu0 0.0
        %2023 = vmatpush1.msra.mxu0 0.0
        %2024 = vmatprep.subr.mxu0 0.0
        %2025 = vmatpush1.msra.mxu0 0.0
        %2026 = vmatprep.subr.mxu0 0.0
        %2027 = vmatpush1.msra.mxu0 0.0
        %2028 = vmatprep.subr.mxu0 0.0
        %2029 = vmatpush1.msra.mxu0 0.0
        %2030 = vmatprep.subr.mxu0 0.0
        %2031 = vmatpush1.msra.mxu0 0.0
        %2032 = vmatprep.subr.mxu0 0.0
        %2033 = vmatpush1.msra.mxu0 0.0
        %2034 = vmatprep.subr.mxu0 0.0
        %2035 = vmatpush1.msra.mxu0 0.0
        %2036 = vmatprep.subr.mxu0 0.0
        %2037 = vmatpush1.msra.mxu0 0.0
        %2038 = vmatprep.subr.mxu0 0.0
        %2039 = vmatpush1.msra.mxu0 0.0
        %2040 = vmatprep.mubr.f32.mxu0 0.0
        %2041 = vmatmul.mubr.f32.gmra.mrb[0].mxu0 %v1974
        %v2042 = vpop.f32.mrb[0].mxu0
        %v2043 = vadd.f32 %v1972, %v2042
        %v2044 = vpop.f32.mrb[0].mxu0
        %2045 = vdwg.mxu0
        %v2046 = vadd.f32 %v251, %v2043
        %v2047 = vld [vmem:[#allocation2 + $0xe8] sm:$0x1]
        %v2048 = vld [vmem:[#allocation2 + $0xe0] sm:$0x1]
        %v2049 = vsel %vm261, %v2046, 0.0
        %2050 = vadd.xlane.f32.xlu0 %v2049
        %v2051 = vpop.xlane.xlu0 %2050
        %v2052 = vmul.f32 %v2051, %v723
        %v2053 = vsub.f32 %v2046, %v2052
        %v2054 = vmul.f32 %v2053, %v2053
        %v2055 = vsel %vm261, %v2054, 0.0
        %2056 = vadd.xlane.f32.xlu0 %v2055
        %v2057 = vpop.xlane.xlu0 %2056
        %v2058 = vmul.f32 %v2057, %v723
        %v2059 = vadd.f32 %v2058, 1e-05
        %v2060 = vrsqrt.pop %v2059
        %v2061 = vmul.f32 %v2053, %v2060
        %v2062 = vlaneseq
        %v2063 = vshrl.u32 %v2062, 7
        %v2064 = vsub.s32 0, %v2063
        %v2065 = vrot.slane %v2047, %v2064
        %v2066 = vmul.f32 %v2061, %v2065
        %v2067 = vlaneseq
        %v2068 = vshrl.u32 %v2067, 7
        %v2069 = vsub.s32 0, %v2068
        %v2070 = vrot.slane %v2048, %v2069
        %v2071 = vadd.f32 %v2066, %v2070
        %v2072 = vld [vmem:[#allocation2 + $0xc0] sm:$0xff]
        %v2073 = vld [vmem:[#allocation2 + $0xc8] sm:$0xff]
        %v2074 = vld [vmem:[#allocation2 + $0xd0] sm:$0xff]
        %v2075 = vld [vmem:[#allocation2 + $0xd8] sm:$0xff]
        %v2076 = vld [vmem:[#allocation2 + $0x78] sm:$0x1]
        %v2077 = vlaneseq
        %v2078 = vshrl.u32 %v2077, 7
        %v2079 = vsub.s32 0, %v2078
        %v2080 = vrot.slane %v2076, %v2079
        %v2082 = vsel %vm261, %v2071, 0
        %2084 = vmatprep.subr.mxu0 0.0
        %2085 = vmatpush1.msra.mxu0 %v2072
        %2086 = vmatprep.subr.mxu0 0.0
        %2087 = vmatpush1.msra.mxu0 %v2073
        %2088 = vmatprep.subr.mxu0 0.0
        %2089 = vmatpush1.msra.mxu0 %v2074
        %2090 = vmatprep.subr.mxu0 0.0
        %2091 = vmatpush1.msra.mxu0 %v2075
        %2092 = vmatprep.subr.mxu0 0.0
        %2093 = vmatpush1.msra.mxu0 0.0
        %2094 = vmatprep.subr.mxu0 0.0
        %2095 = vmatpush1.msra.mxu0 0.0
        %2096 = vmatprep.subr.mxu0 0.0
        %2097 = vmatpush1.msra.mxu0 0.0
        %2098 = vmatprep.subr.mxu0 0.0
        %2099 = vmatpush1.msra.mxu0 0.0
        %2100 = vmatprep.subr.mxu0 0.0
        %2101 = vmatpush1.msra.mxu0 0.0
        %2102 = vmatprep.subr.mxu0 0.0
        %2103 = vmatpush1.msra.mxu0 0.0
        %2104 = vmatprep.subr.mxu0 0.0
        %2105 = vmatpush1.msra.mxu0 0.0
        %2106 = vmatprep.subr.mxu0 0.0
        %2107 = vmatpush1.msra.mxu0 0.0
        %2108 = vmatprep.subr.mxu0 0.0
        %2109 = vmatpush1.msra.mxu0 0.0
        %2110 = vmatprep.subr.mxu0 0.0
        %2111 = vmatpush1.msra.mxu0 0.0
        %2112 = vmatprep.subr.mxu0 0.0
        %2113 = vmatpush1.msra.mxu0 0.0
        %2114 = vmatprep.subr.mxu0 0.0
        %2115 = vmatpush1.msra.mxu0 0.0
        %2116 = vmatprep.subr.mxu0 0.0
        %2117 = vmatpush1.msra.mxu0 0.0
        %2118 = vmatprep.subr.mxu0 0.0
        %2119 = vmatpush1.msra.mxu0 0.0
        %2120 = vmatprep.subr.mxu0 0.0
        %2121 = vmatpush1.msra.mxu0 0.0
        %2122 = vmatprep.subr.mxu0 0.0
        %2123 = vmatpush1.msra.mxu0 0.0
        %2124 = vmatprep.subr.mxu0 0.0
        %2125 = vmatpush1.msra.mxu0 0.0
        %2126 = vmatprep.subr.mxu0 0.0
        %2127 = vmatpush1.msra.mxu0 0.0
        %2128 = vmatprep.subr.mxu0 0.0
        %2129 = vmatpush1.msra.mxu0 0.0
        %2130 = vmatprep.subr.mxu0 0.0
        %2131 = vmatpush1.msra.mxu0 0.0
        %2132 = vmatprep.subr.mxu0 0.0
        %2133 = vmatpush1.msra.mxu0 0.0
        %2134 = vmatprep.subr.mxu0 0.0
        %2135 = vmatpush1.msra.mxu0 0.0
        %2136 = vmatprep.subr.mxu0 0.0
        %2137 = vmatpush1.msra.mxu0 0.0
        %2138 = vmatprep.subr.mxu0 0.0
        %2139 = vmatpush1.msra.mxu0 0.0
        %2140 = vmatprep.subr.mxu0 0.0
        %2141 = vmatpush1.msra.mxu0 0.0
        %2142 = vmatprep.subr.mxu0 0.0
        %2143 = vmatpush1.msra.mxu0 0.0
        %2144 = vmatprep.subr.mxu0 0.0
        %2145 = vmatpush1.msra.mxu0 0.0
        %2146 = vmatprep.subr.mxu0 0.0
        %2147 = vmatpush1.msra.mxu0 0.0
        %2148 = vmatprep.mubr.f32.mxu0 0.0
        %2149 = vmatmul.mubr.f32.gmra.mrb[0].mxu0 %v2082
        %v2150 = vpop.f32.mrb[0].mxu0
        %v2151 = vadd.f32 %v2080, %v2150
        %v2152 = vpop.f32.mrb[0].mxu0
        %2153 = vdwg.mxu0
        %v2154 = vld [vmem:[#allocation2 + $0x80] sm:$0xff]
        %v2155 = vld [vmem:[#allocation2 + $0x88] sm:$0xff]
        %v2156 = vld [vmem:[#allocation2 + $0x90] sm:$0xff]
        %v2157 = vld [vmem:[#allocation2 + $0x98] sm:$0xff]
        %v2158 = vld [vmem:[#allocation2 + $0x68] sm:$0x1]
        %v2159 = vlaneseq
        %v2160 = vshrl.u32 %v2159, 7
        %v2161 = vsub.s32 0, %v2160
        %v2162 = vrot.slane %v2158, %v2161
        %v2164 = vsel %vm261, %v1612, 0
        %2166 = vmatprep.subr.mxu0 0.0
        %2167 = vmatpush1.msra.mxu0 %v2154
        %2168 = vmatprep.subr.mxu0 0.0
        %2169 = vmatpush1.msra.mxu0 %v2155
        %2170 = vmatprep.subr.mxu0 0.0
        %2171 = vmatpush1.msra.mxu0 %v2156
        %2172 = vmatprep.subr.mxu0 0.0
        %2173 = vmatpush1.msra.mxu0 %v2157
        %2174 = vmatprep.subr.mxu0 0.0
        %2175 = vmatpush1.msra.mxu0 0.0
        %2176 = vmatprep.subr.mxu0 0.0
        %2177 = vmatpush1.msra.mxu0 0.0
        %2178 = vmatprep.subr.mxu0 0.0
        %2179 = vmatpush1.msra.mxu0 0.0
        %2180 = vmatprep.subr.mxu0 0.0
        %2181 = vmatpush1.msra.mxu0 0.0
        %2182 = vmatprep.subr.mxu0 0.0
        %2183 = vmatpush1.msra.mxu0 0.0
        %2184 = vmatprep.subr.mxu0 0.0
        %2185 = vmatpush1.msra.mxu0 0.0
        %2186 = vmatprep.subr.mxu0 0.0
        %2187 = vmatpush1.msra.mxu0 0.0
        %2188 = vmatprep.subr.mxu0 0.0
        %2189 = vmatpush1.msra.mxu0 0.0
        %2190 = vmatprep.subr.mxu0 0.0
        %2191 = vmatpush1.msra.mxu0 0.0
        %2192 = vmatprep.subr.mxu0 0.0
        %2193 = vmatpush1.msra.mxu0 0.0
        %2194 = vmatprep.subr.mxu0 0.0
        %2195 = vmatpush1.msra.mxu0 0.0
        %2196 = vmatprep.subr.mxu0 0.0
        %2197 = vmatpush1.msra.mxu0 0.0
        %2198 = vmatprep.subr.mxu0 0.0
        %2199 = vmatpush1.msra.mxu0 0.0
        %2200 = vmatprep.subr.mxu0 0.0
        %2201 = vmatpush1.msra.mxu0 0.0
        %2202 = vmatprep.subr.mxu0 0.0
        %2203 = vmatpush1.msra.mxu0 0.0
        %2204 = vmatprep.subr.mxu0 0.0
        %2205 = vmatpush1.msra.mxu0 0.0
        %2206 = vmatprep.subr.mxu0 0.0
        %2207 = vmatpush1.msra.mxu0 0.0
        %2208 = vmatprep.subr.mxu0 0.0
        %2209 = vmatpush1.msra.mxu0 0.0
        %2210 = vmatprep.subr.mxu0 0.0
        %2211 = vmatpush1.msra.mxu0 0.0
        %2212 = vmatprep.subr.mxu0 0.0
        %2213 = vmatpush1.msra.mxu0 0.0
        %2214 = vmatprep.subr.mxu0 0.0
        %2215 = vmatpush1.msra.mxu0 0.0
        %2216 = vmatprep.subr.mxu0 0.0
        %2217 = vmatpush1.msra.mxu0 0.0
        %2218 = vmatprep.subr.mxu0 0.0
        %2219 = vmatpush1.msra.mxu0 0.0
        %2220 = vmatprep.subr.mxu0 0.0
        %2221 = vmatpush1.msra.mxu0 0.0
        %2222 = vmatprep.subr.mxu0 0.0
        %2223 = vmatpush1.msra.mxu0 0.0
        %2224 = vmatprep.subr.mxu0 0.0
        %2225 = vmatpush1.msra.mxu0 0.0
        %2226 = vmatprep.subr.mxu0 0.0
        %2227 = vmatpush1.msra.mxu0 0.0
        %2228 = vmatprep.subr.mxu0 0.0
        %2229 = vmatpush1.msra.mxu0 0.0
        %2230 = vmatprep.mubr.f32.mxu0 0.0
        %2231 = vmatmul.mubr.f32.gmra.mrb[0].mxu0 %v2164
        %v2232 = vpop.f32.mrb[0].mxu0
        %v2233 = vadd.f32 %v2162, %v2232
        %v2234 = vpop.f32.mrb[0].mxu0
        %2235 = vdwg.mxu0
        %v2236 = vld [vmem:[#allocation2 + $0xa0] sm:$0xff]
        %v2237 = vld [vmem:[#allocation2 + $0xa8] sm:$0xff]
        %v2238 = vld [vmem:[#allocation2 + $0xb0] sm:$0xff]
        %v2239 = vld [vmem:[#allocation2 + $0xb8] sm:$0xff]
        %v2240 = vld [vmem:[#allocation2 + $0x70] sm:$0x1]
        %v2241 = vmul.f32 %v2233, %v154
        %v2242 = vmul.f32 %v2233, %v155
        %v2243 = vmul.f32 %v2233, %v156
        %v2244 = vmul.f32 %v2233, %v157
        %v2245 = vmul.f32 %v2233, %v345
        %v2246 = vmul.f32 %v2233, %v347
        %v2247 = vmul.f32 %v2233, %v349
        %v2248 = vmul.f32 %v2233, %v351
        %v2250 = vsel %vm261, %v2151, 0
        %v2253 = vsel %vm261, %v2241, 0
        %v2256 = vsel %vm261, %v2242, 0
        %v2259 = vsel %vm261, %v2243, 0
        %v2262 = vsel %vm261, %v2244, 0
        %2264 = vmatprep.subr.mxu0 0.0
        %2265 = vmatpush1.xpose.msra.mxu0 %v2253
        %2266 = vmatprep.subr.mxu0 0.0
        %2267 = vmatpush1.xpose.msra.mxu0 %v2256
        %2268 = vmatprep.subr.mxu0 0.0
        %2269 = vmatpush1.xpose.msra.mxu0 %v2259
        %2270 = vmatprep.subr.mxu0 0.0
        %2271 = vmatpush1.xpose.msra.mxu0 %v2262
        %2272 = vmatprep.subr.mxu0 0.0
        %2273 = vmatpush1.xpose.msra.mxu0 0.0
        %2274 = vmatprep.subr.mxu0 0.0
        %2275 = vmatpush1.xpose.msra.mxu0 0.0
        %2276 = vmatprep.subr.mxu0 0.0
        %2277 = vmatpush1.xpose.msra.mxu0 0.0
        %2278 = vmatprep.subr.mxu0 0.0
        %2279 = vmatpush1.xpose.msra.mxu0 0.0
        %2280 = vmatprep.subr.mxu0 0.0
        %2281 = vmatpush1.xpose.msra.mxu0 0.0
        %2282 = vmatprep.subr.mxu0 0.0
        %2283 = vmatpush1.xpose.msra.mxu0 0.0
        %2284 = vmatprep.subr.mxu0 0.0
        %2285 = vmatpush1.xpose.msra.mxu0 0.0
        %2286 = vmatprep.subr.mxu0 0.0
        %2287 = vmatpush1.xpose.msra.mxu0 0.0
        %2288 = vmatprep.subr.mxu0 0.0
        %2289 = vmatpush1.xpose.msra.mxu0 0.0
        %2290 = vmatprep.subr.mxu0 0.0
        %2291 = vmatpush1.xpose.msra.mxu0 0.0
        %2292 = vmatprep.subr.mxu0 0.0
        %2293 = vmatpush1.xpose.msra.mxu0 0.0
        %2294 = vmatprep.subr.mxu0 0.0
        %2295 = vmatpush1.xpose.msra.mxu0 0.0
        %2296 = vmatprep.subr.mxu0 0.0
        %2297 = vmatpush1.xpose.msra.mxu0 0.0
        %2298 = vmatprep.subr.mxu0 0.0
        %2299 = vmatpush1.xpose.msra.mxu0 0.0
        %2300 = vmatprep.subr.mxu0 0.0
        %2301 = vmatpush1.xpose.msra.mxu0 0.0
        %2302 = vmatprep.subr.mxu0 0.0
        %2303 = vmatpush1.xpose.msra.mxu0 0.0
        %2304 = vmatprep.subr.mxu0 0.0
        %2305 = vmatpush1.xpose.msra.mxu0 0.0
        %2306 = vmatprep.subr.mxu0 0.0
        %2307 = vmatpush1.xpose.msra.mxu0 0.0
        %2308 = vmatprep.subr.mxu0 0.0
        %2309 = vmatpush1.xpose.msra.mxu0 0.0
        %2310 = vmatprep.subr.mxu0 0.0
        %2311 = vmatpush1.xpose.msra.mxu0 0.0
        %2312 = vmatprep.subr.mxu0 0.0
        %2313 = vmatpush1.xpose.msra.mxu0 0.0
        %2314 = vmatprep.subr.mxu0 0.0
        %2315 = vmatpush1.xpose.msra.mxu0 0.0
        %2316 = vmatprep.subr.mxu0 0.0
        %2317 = vmatpush1.xpose.msra.mxu0 0.0
        %2318 = vmatprep.subr.mxu0 0.0
        %2319 = vmatpush1.xpose.msra.mxu0 0.0
        %2320 = vmatprep.subr.mxu0 0.0
        %2321 = vmatpush1.xpose.msra.mxu0 0.0
        %2322 = vmatprep.subr.mxu0 0.0
        %2323 = vmatpush1.xpose.msra.mxu0 0.0
        %2324 = vmatprep.subr.mxu0 0.0
        %2325 = vmatpush1.xpose.msra.mxu0 0.0
        %2326 = vmatprep.subr.mxu0 0.0
        %2327 = vmatpush1.xpose.msra.mxu0 0.0
        %2328 = vmatprep.mubr.f32.mxu0 0.0
        %2329 = vmatmul.mubr.f32.gmra.mrb[0].mxu0 %v2250
        %v2330 = vpop.f32.mrb[0].mxu0
        %v2331 = vadd.f32 0.0, %v2330
        %v2332 = vpop.f32.mrb[0].mxu0
        %2333 = vdwg.mxu0
        %v2334 = vmul.f32 %v2331, 0.35355338
        %v2335 = vsel %vm261, %v2334, -inf
        %2336 = vmax.xlane.f32.xlu0 %v2335
        %v2337 = vpop.xlane.xlu0 %2336
        %v2338 = vsub.f32 %v2334, %v2337
        %v2339 = vmul.f32 %v2338, 1.442695
        %v2340 = vpow.pop %v2339
        %v2342 = vsel %vm261, %v2340, 0
        %2344 = vmatprep.subr.mxu0 0.0
        %2345 = vmatpush1.msra.mxu0 %v158
        %2346 = vmatprep.subr.mxu0 0.0
        %2347 = vmatpush1.msra.mxu0 %v159
        %2348 = vmatprep.subr.mxu0 0.0
        %2349 = vmatpush1.msra.mxu0 %v160
        %2350 = vmatprep.subr.mxu0 0.0
        %2351 = vmatpush1.msra.mxu0 %v161
        %2352 = vmatprep.subr.mxu0 0.0
        %2353 = vmatpush1.msra.mxu0 0.0
        %2354 = vmatprep.subr.mxu0 0.0
        %2355 = vmatpush1.msra.mxu0 0.0
        %2356 = vmatprep.subr.mxu0 0.0
        %2357 = vmatpush1.msra.mxu0 0.0
        %2358 = vmatprep.subr.mxu0 0.0
        %2359 = vmatpush1.msra.mxu0 0.0
        %2360 = vmatprep.subr.mxu0 0.0
        %2361 = vmatpush1.msra.mxu0 0.0
        %2362 = vmatprep.subr.mxu0 0.0
        %2363 = vmatpush1.msra.mxu0 0.0
        %2364 = vmatprep.subr.mxu0 0.0
        %2365 = vmatpush1.msra.mxu0 0.0
        %2366 = vmatprep.subr.mxu0 0.0
        %2367 = vmatpush1.msra.mxu0 0.0
        %2368 = vmatprep.subr.mxu0 0.0
        %2369 = vmatpush1.msra.mxu0 0.0
        %2370 = vmatprep.subr.mxu0 0.0
        %2371 = vmatpush1.msra.mxu0 0.0
        %2372 = vmatprep.subr.mxu0 0.0
        %2373 = vmatpush1.msra.mxu0 0.0
        %2374 = vmatprep.subr.mxu0 0.0
        %2375 = vmatpush1.msra.mxu0 0.0
        %2376 = vmatprep.subr.mxu0 0.0
        %2377 = vmatpush1.msra.mxu0 0.0
        %2378 = vmatprep.subr.mxu0 0.0
        %2379 = vmatpush1.msra.mxu0 0.0
        %2380 = vmatprep.subr.mxu0 0.0
        %2381 = vmatpush1.msra.mxu0 0.0
        %2382 = vmatprep.subr.mxu0 0.0
        %2383 = vmatpush1.msra.mxu0 0.0
        %2384 = vmatprep.subr.mxu0 0.0
        %2385 = vmatpush1.msra.mxu0 0.0
        %2386 = vmatprep.subr.mxu0 0.0
        %2387 = vmatpush1.msra.mxu0 0.0
        %2388 = vmatprep.subr.mxu0 0.0
        %2389 = vmatpush1.msra.mxu0 0.0
        %2390 = vmatprep.subr.mxu0 0.0
        %2391 = vmatpush1.msra.mxu0 0.0
        %2392 = vmatprep.subr.mxu0 0.0
        %2393 = vmatpush1.msra.mxu0 0.0
        %2394 = vmatprep.subr.mxu0 0.0
        %2395 = vmatpush1.msra.mxu0 0.0
        %2396 = vmatprep.subr.mxu0 0.0
        %2397 = vmatpush1.msra.mxu0 0.0
        %2398 = vmatprep.subr.mxu0 0.0
        %2399 = vmatpush1.msra.mxu0 0.0
        %2400 = vmatprep.subr.mxu0 0.0
        %2401 = vmatpush1.msra.mxu0 0.0
        %2402 = vmatprep.subr.mxu0 0.0
        %2403 = vmatpush1.msra.mxu0 0.0
        %2404 = vmatprep.subr.mxu0 0.0
        %2405 = vmatpush1.msra.mxu0 0.0
        %2406 = vmatprep.subr.mxu0 0.0
        %2407 = vmatpush1.msra.mxu0 0.0
        %2408 = vmatprep.mubr.f32.mxu0 0.0
        %2409 = vmatmul.mubr.f32.gmra.mrb[0].mxu0 %v2342
        %v2410 = vpop.f32.mrb[0].mxu0
        %v2411 = vadd.f32 0.0, %v2410
        %v2412 = vpop.f32.mrb[0].mxu0
        %2413 = vdwg.mxu0
        %v2414 = vrcp.pop %v2411
        %v2415 = vmul.f32 %v2340, %v2414
        %2420 = vrot.lane.b32.xlu0 %v2245, 96
        %v2421 = vpop.permute.xlu0 %2420
        %2422 = vrot.lane.b32.xlu0 %v2246, 96
        %v2423 = vpop.permute.xlu0 %2422
        %2424 = vrot.lane.b32.xlu0 %v2247, 96
        %v2425 = vpop.permute.xlu0 %2424
        %2426 = vrot.lane.b32.xlu0 %v2248, 96
        %v2427 = vpop.permute.xlu0 %2426
        %v2433 = vsel %vm261, %v2415, 0
        %2435 = vmatprep.subr.mxu0 0.0
        %2436 = vmatpush1.msra.mxu0 %v2421
        %2437 = vmatprep.subr.mxu0 0.0
        %2438 = vmatpush1.msra.mxu0 %v2423
        %2439 = vmatprep.subr.mxu0 0.0
        %2440 = vmatpush1.msra.mxu0 %v2425
        %2441 = vmatprep.subr.mxu0 0.0
        %2442 = vmatpush1.msra.mxu0 %v2427
        %2443 = vmatprep.subr.mxu0 0.0
        %2444 = vmatpush1.msra.mxu0 0.0
        %2445 = vmatprep.subr.mxu0 0.0
        %2446 = vmatpush1.msra.mxu0 0.0
        %2447 = vmatprep.subr.mxu0 0.0
        %2448 = vmatpush1.msra.mxu0 0.0
        %2449 = vmatprep.subr.mxu0 0.0
        %2450 = vmatpush1.msra.mxu0 0.0
        %2451 = vmatprep.subr.mxu0 0.0
        %2452 = vmatpush1.msra.mxu0 0.0
        %2453 = vmatprep.subr.mxu0 0.0
        %2454 = vmatpush1.msra.mxu0 0.0
        %2455 = vmatprep.subr.mxu0 0.0
        %2456 = vmatpush1.msra.mxu0 0.0
        %2457 = vmatprep.subr.mxu0 0.0
        %2458 = vmatpush1.msra.mxu0 0.0
        %2459 = vmatprep.subr.mxu0 0.0
        %2460 = vmatpush1.msra.mxu0 0.0
        %2461 = vmatprep.subr.mxu0 0.0
        %2462 = vmatpush1.msra.mxu0 0.0
        %2463 = vmatprep.subr.mxu0 0.0
        %2464 = vmatpush1.msra.mxu0 0.0
        %2465 = vmatprep.subr.mxu0 0.0
        %2466 = vmatpush1.msra.mxu0 0.0
        %2467 = vmatprep.subr.mxu0 0.0
        %2468 = vmatpush1.msra.mxu0 0.0
        %2469 = vmatprep.subr.mxu0 0.0
        %2470 = vmatpush1.msra.mxu0 0.0
        %2471 = vmatprep.subr.mxu0 0.0
        %2472 = vmatpush1.msra.mxu0 0.0
        %2473 = vmatprep.subr.mxu0 0.0
        %2474 = vmatpush1.msra.mxu0 0.0
        %2475 = vmatprep.subr.mxu0 0.0
        %2476 = vmatpush1.msra.mxu0 0.0
        %2477 = vmatprep.subr.mxu0 0.0
        %2478 = vmatpush1.msra.mxu0 0.0
        %2479 = vmatprep.subr.mxu0 0.0
        %2480 = vmatpush1.msra.mxu0 0.0
        %2481 = vmatprep.subr.mxu0 0.0
        %2482 = vmatpush1.msra.mxu0 0.0
        %2483 = vmatprep.subr.mxu0 0.0
        %2484 = vmatpush1.msra.mxu0 0.0
        %2485 = vmatprep.subr.mxu0 0.0
        %2486 = vmatpush1.msra.mxu0 0.0
        %2487 = vmatprep.subr.mxu0 0.0
        %2488 = vmatpush1.msra.mxu0 0.0
        %2489 = vmatprep.subr.mxu0 0.0
        %2490 = vmatpush1.msra.mxu0 0.0
        %2491 = vmatprep.subr.mxu0 0.0
        %2492 = vmatpush1.msra.mxu0 0.0
        %2493 = vmatprep.subr.mxu0 0.0
        %2494 = vmatpush1.msra.mxu0 0.0
        %2495 = vmatprep.subr.mxu0 0.0
        %2496 = vmatpush1.msra.mxu0 0.0
        %2497 = vmatprep.subr.mxu0 0.0
        %2498 = vmatpush1.msra.mxu0 0.0
        %2499 = vmatprep.mubr.f32.mxu0 0.0
        %2500 = vmatmul.mubr.f32.gmra.mrb[0].mxu0 %v2433
        %v2501 = vpop.f32.mrb[0].mxu0
        %v2502 = vadd.f32 0.0, %v2501
        %v2503 = vpop.f32.mrb[0].mxu0
        %2504 = vdwg.mxu0
        %v2505 = vlaneseq
        %v2506 = vshrl.u32 %v2505, 7
        %v2507 = vsub.s32 0, %v2506
        %v2508 = vrot.slane %v2240, %v2507
        %v2510 = vsel %vm261, %v2502, 0
        %2512 = vmatprep.subr.mxu0 0.0
        %2513 = vmatpush1.msra.mxu0 %v2236
        %2514 = vmatprep.subr.mxu0 0.0
        %2515 = vmatpush1.msra.mxu0 %v2237
        %2516 = vmatprep.subr.mxu0 0.0
        %2517 = vmatpush1.msra.mxu0 %v2238
        %2518 = vmatprep.subr.mxu0 0.0
        %2519 = vmatpush1.msra.mxu0 %v2239
        %2520 = vmatprep.subr.mxu0 0.0
        %2521 = vmatpush1.msra.mxu0 0.0
        %2522 = vmatprep.subr.mxu0 0.0
        %2523 = vmatpush1.msra.mxu0 0.0
        %2524 = vmatprep.subr.mxu0 0.0
        %2525 = vmatpush1.msra.mxu0 0.0
        %2526 = vmatprep.subr.mxu0 0.0
        %2527 = vmatpush1.msra.mxu0 0.0
        %2528 = vmatprep.subr.mxu0 0.0
        %2529 = vmatpush1.msra.mxu0 0.0
        %2530 = vmatprep.subr.mxu0 0.0
        %2531 = vmatpush1.msra.mxu0 0.0
        %2532 = vmatprep.subr.mxu0 0.0
        %2533 = vmatpush1.msra.mxu0 0.0
        %2534 = vmatprep.subr.mxu0 0.0
        %2535 = vmatpush1.msra.mxu0 0.0
        %2536 = vmatprep.subr.mxu0 0.0
        %2537 = vmatpush1.msra.mxu0 0.0
        %2538 = vmatprep.subr.mxu0 0.0
        %2539 = vmatpush1.msra.mxu0 0.0
        %2540 = vmatprep.subr.mxu0 0.0
        %2541 = vmatpush1.msra.mxu0 0.0
        %2542 = vmatprep.subr.mxu0 0.0
        %2543 = vmatpush1.msra.mxu0 0.0
        %2544 = vmatprep.subr.mxu0 0.0
        %2545 = vmatpush1.msra.mxu0 0.0
        %2546 = vmatprep.subr.mxu0 0.0
        %2547 = vmatpush1.msra.mxu0 0.0
        %2548 = vmatprep.subr.mxu0 0.0
        %2549 = vmatpush1.msra.mxu0 0.0
        %2550 = vmatprep.subr.mxu0 0.0
        %2551 = vmatpush1.msra.mxu0 0.0
        %2552 = vmatprep.subr.mxu0 0.0
        %2553 = vmatpush1.msra.mxu0 0.0
        %2554 = vmatprep.subr.mxu0 0.0
        %2555 = vmatpush1.msra.mxu0 0.0
        %2556 = vmatprep.subr.mxu0 0.0
        %2557 = vmatpush1.msra.mxu0 0.0
        %2558 = vmatprep.subr.mxu0 0.0
        %2559 = vmatpush1.msra.mxu0 0.0
        %2560 = vmatprep.subr.mxu0 0.0
        %2561 = vmatpush1.msra.mxu0 0.0
        %2562 = vmatprep.subr.mxu0 0.0
        %2563 = vmatpush1.msra.mxu0 0.0
        %2564 = vmatprep.subr.mxu0 0.0
        %2565 = vmatpush1.msra.mxu0 0.0
        %2566 = vmatprep.subr.mxu0 0.0
        %2567 = vmatpush1.msra.mxu0 0.0
        %2568 = vmatprep.subr.mxu0 0.0
        %2569 = vmatpush1.msra.mxu0 0.0
        %2570 = vmatprep.subr.mxu0 0.0
        %2571 = vmatpush1.msra.mxu0 0.0
        %2572 = vmatprep.subr.mxu0 0.0
        %2573 = vmatpush1.msra.mxu0 0.0
        %2574 = vmatprep.subr.mxu0 0.0
        %2575 = vmatpush1.msra.mxu0 0.0
        %2576 = vmatprep.mubr.f32.mxu0 0.0
        %2577 = vmatmul.mubr.f32.gmra.mrb[0].mxu0 %v2510
        %v2578 = vpop.f32.mrb[0].mxu0
        %v2579 = vadd.f32 %v2508, %v2578
        %v2580 = vpop.f32.mrb[0].mxu0
        %2581 = vdwg.mxu0
        %v2582 = vadd.f32 %v2071, %v2579
        %v2583 = vld [vmem:[#allocation2 + $0xf8] sm:$0x1]
        %v2584 = vld [vmem:[#allocation2 + $0xf0] sm:$0x1]
        %v2585 = vsel %vm261, %v2582, 0.0
        %2586 = vadd.xlane.f32.xlu0 %v2585
        %v2587 = vpop.xlane.xlu0 %2586
        %v2588 = vmul.f32 %v2587, %v723
        %v2589 = vsub.f32 %v2582, %v2588
        %v2590 = vmul.f32 %v2589, %v2589
        %v2591 = vsel %vm261, %v2590, 0.0
        %2592 = vadd.xlane.f32.xlu0 %v2591
        %v2593 = vpop.xlane.xlu0 %2592
        %v2594 = vmul.f32 %v2593, %v723
        %v2595 = vadd.f32 %v2594, 1e-05
        %v2596 = vrsqrt.pop %v2595
        %v2597 = vmul.f32 %v2589, %v2596
        %v2598 = vlaneseq
        %v2599 = vshrl.u32 %v2598, 7
        %v2600 = vsub.s32 0, %v2599
        %v2601 = vrot.slane %v2583, %v2600
        %v2602 = vmul.f32 %v2597, %v2601
        %v2603 = vlaneseq
        %v2604 = vshrl.u32 %v2603, 7
        %v2605 = vsub.s32 0, %v2604
        %v2606 = vrot.slane %v2584, %v2605
        %v2607 = vadd.f32 %v2602, %v2606
        %v2608 = vld [vmem:[#allocation2 + $0x160] sm:$0xff]
        %v2609 = vld [vmem:[#allocation2 + $0x168] sm:$0xff]
        %v2610 = vld [vmem:[#allocation2 + $0x170] sm:$0xff]
        %v2611 = vld [vmem:[#allocation2 + $0x178] sm:$0xff]
        %v2612 = vld [vmem:[#allocation2 + $0x58] sm:$0x1]
        %v2613 = vlaneseq
        %v2614 = vshrl.u32 %v2613, 7
        %v2615 = vsub.s32 0, %v2614
        %v2616 = vrot.slane %v2612, %v2615
        %v2618 = vsel %vm261, %v2607, 0
        %2620 = vmatprep.subr.mxu0 0.0
        %2621 = vmatpush1.msra.mxu0 %v2608
        %2622 = vmatprep.subr.mxu0 0.0
        %2623 = vmatpush1.msra.mxu0 %v2609
        %2624 = vmatprep.subr.mxu0 0.0
        %2625 = vmatpush1.msra.mxu0 %v2610
        %2626 = vmatprep.subr.mxu0 0.0
        %2627 = vmatpush1.msra.mxu0 %v2611
        %2628 = vmatprep.subr.mxu0 0.0
        %2629 = vmatpush1.msra.mxu0 0.0
        %2630 = vmatprep.subr.mxu0 0.0
        %2631 = vmatpush1.msra.mxu0 0.0
        %2632 = vmatprep.subr.mxu0 0.0
        %2633 = vmatpush1.msra.mxu0 0.0
        %2634 = vmatprep.subr.mxu0 0.0
        %2635 = vmatpush1.msra.mxu0 0.0
        %2636 = vmatprep.subr.mxu0 0.0
        %2637 = vmatpush1.msra.mxu0 0.0
        %2638 = vmatprep.subr.mxu0 0.0
        %2639 = vmatpush1.msra.mxu0 0.0
        %2640 = vmatprep.subr.mxu0 0.0
        %2641 = vmatpush1.msra.mxu0 0.0
        %2642 = vmatprep.subr.mxu0 0.0
        %2643 = vmatpush1.msra.mxu0 0.0
        %2644 = vmatprep.subr.mxu0 0.0
        %2645 = vmatpush1.msra.mxu0 0.0
        %2646 = vmatprep.subr.mxu0 0.0
        %2647 = vmatpush1.msra.mxu0 0.0
        %2648 = vmatprep.subr.mxu0 0.0
        %2649 = vmatpush1.msra.mxu0 0.0
        %2650 = vmatprep.subr.mxu0 0.0
        %2651 = vmatpush1.msra.mxu0 0.0
        %2652 = vmatprep.subr.mxu0 0.0
        %2653 = vmatpush1.msra.mxu0 0.0
        %2654 = vmatprep.subr.mxu0 0.0
        %2655 = vmatpush1.msra.mxu0 0.0
        %2656 = vmatprep.subr.mxu0 0.0
        %2657 = vmatpush1.msra.mxu0 0.0
        %2658 = vmatprep.subr.mxu0 0.0
        %2659 = vmatpush1.msra.mxu0 0.0
        %2660 = vmatprep.subr.mxu0 0.0
        %2661 = vmatpush1.msra.mxu0 0.0
        %2662 = vmatprep.subr.mxu0 0.0
        %2663 = vmatpush1.msra.mxu0 0.0
        %2664 = vmatprep.subr.mxu0 0.0
        %2665 = vmatpush1.msra.mxu0 0.0
        %2666 = vmatprep.subr.mxu0 0.0
        %2667 = vmatpush1.msra.mxu0 0.0
        %2668 = vmatprep.subr.mxu0 0.0
        %2669 = vmatpush1.msra.mxu0 0.0
        %2670 = vmatprep.subr.mxu0 0.0
        %2671 = vmatpush1.msra.mxu0 0.0
        %2672 = vmatprep.subr.mxu0 0.0
        %2673 = vmatpush1.msra.mxu0 0.0
        %2674 = vmatprep.subr.mxu0 0.0
        %2675 = vmatpush1.msra.mxu0 0.0
        %2676 = vmatprep.subr.mxu0 0.0
        %2677 = vmatpush1.msra.mxu0 0.0
        %2678 = vmatprep.subr.mxu0 0.0
        %2679 = vmatpush1.msra.mxu0 0.0
        %2680 = vmatprep.subr.mxu0 0.0
        %2681 = vmatpush1.msra.mxu0 0.0
        %2682 = vmatprep.subr.mxu0 0.0
        %2683 = vmatpush1.msra.mxu0 0.0
        %2684 = vmatprep.mubr.f32.mxu0 0.0
        %2685 = vmatmul.mubr.f32.gmra.mrb[0].mxu0 %v2618
        %v2686 = vpop.f32.mrb[0].mxu0
        %v2687 = vadd.f32 %v2616, %v2686
        %v2688 = vpop.f32.mrb[0].mxu0
        %2689 = vdwg.mxu0
        %v2690 = vmax.f32 %v2687, 0.0
        %v2691 = vld [vmem:[#allocation2 + $0x180] sm:$0xff]
        %v2692 = vld [vmem:[#allocation2 + $0x188] sm:$0xff]
        %v2693 = vld [vmem:[#allocation2 + $0x190] sm:$0xff]
        %v2694 = vld [vmem:[#allocation2 + $0x198] sm:$0xff]
        %v2695 = vld [vmem:[#allocation2 + $0x60] sm:$0x1]
        %v2696 = vlaneseq
        %v2697 = vshrl.u32 %v2696, 7
        %v2698 = vsub.s32 0, %v2697
        %v2699 = vrot.slane %v2695, %v2698
        %v2701 = vsel %vm261, %v2690, 0
        %2703 = vmatprep.subr.mxu0 0.0
        %2704 = vmatpush1.msra.mxu0 %v2691
        %2705 = vmatprep.subr.mxu0 0.0
        %2706 = vmatpush1.msra.mxu0 %v2692
        %2707 = vmatprep.subr.mxu0 0.0
        %2708 = vmatpush1.msra.mxu0 %v2693
        %2709 = vmatprep.subr.mxu0 0.0
        %2710 = vmatpush1.msra.mxu0 %v2694
        %2711 = vmatprep.subr.mxu0 0.0
        %2712 = vmatpush1.msra.mxu0 0.0
        %2713 = vmatprep.subr.mxu0 0.0
        %2714 = vmatpush1.msra.mxu0 0.0
        %2715 = vmatprep.subr.mxu0 0.0
        %2716 = vmatpush1.msra.mxu0 0.0
        %2717 = vmatprep.subr.mxu0 0.0
        %2718 = vmatpush1.msra.mxu0 0.0
        %2719 = vmatprep.subr.mxu0 0.0
        %2720 = vmatpush1.msra.mxu0 0.0
        %2721 = vmatprep.subr.mxu0 0.0
        %2722 = vmatpush1.msra.mxu0 0.0
        %2723 = vmatprep.subr.mxu0 0.0
        %2724 = vmatpush1.msra.mxu0 0.0
        %2725 = vmatprep.subr.mxu0 0.0
        %2726 = vmatpush1.msra.mxu0 0.0
        %2727 = vmatprep.subr.mxu0 0.0
        %2728 = vmatpush1.msra.mxu0 0.0
        %2729 = vmatprep.subr.mxu0 0.0
        %2730 = vmatpush1.msra.mxu0 0.0
        %2731 = vmatprep.subr.mxu0 0.0
        %2732 = vmatpush1.msra.mxu0 0.0
        %2733 = vmatprep.subr.mxu0 0.0
        %2734 = vmatpush1.msra.mxu0 0.0
        %2735 = vmatprep.subr.mxu0 0.0
        %2736 = vmatpush1.msra.mxu0 0.0
        %2737 = vmatprep.subr.mxu0 0.0
        %2738 = vmatpush1.msra.mxu0 0.0
        %2739 = vmatprep.subr.mxu0 0.0
        %2740 = vmatpush1.msra.mxu0 0.0
        %2741 = vmatprep.subr.mxu0 0.0
        %2742 = vmatpush1.msra.mxu0 0.0
        %2743 = vmatprep.subr.mxu0 0.0
        %2744 = vmatpush1.msra.mxu0 0.0
        %2745 = vmatprep.subr.mxu0 0.0
        %2746 = vmatpush1.msra.mxu0 0.0
        %2747 = vmatprep.subr.mxu0 0.0
        %2748 = vmatpush1.msra.mxu0 0.0
        %2749 = vmatprep.subr.mxu0 0.0
        %2750 = vmatpush1.msra.mxu0 0.0
        %2751 = vmatprep.subr.mxu0 0.0
        %2752 = vmatpush1.msra.mxu0 0.0
        %2753 = vmatprep.subr.mxu0 0.0
        %2754 = vmatpush1.msra.mxu0 0.0
        %2755 = vmatprep.subr.mxu0 0.0
        %2756 = vmatpush1.msra.mxu0 0.0
        %2757 = vmatprep.subr.mxu0 0.0
        %2758 = vmatpush1.msra.mxu0 0.0
        %2759 = vmatprep.subr.mxu0 0.0
        %2760 = vmatpush1.msra.mxu0 0.0
        %2761 = vmatprep.subr.mxu0 0.0
        %2762 = vmatpush1.msra.mxu0 0.0
        %2763 = vmatprep.subr.mxu0 0.0
        %2764 = vmatpush1.msra.mxu0 0.0
        %2765 = vmatprep.subr.mxu0 0.0
        %2766 = vmatpush1.msra.mxu0 0.0
        %2767 = vmatprep.mubr.f32.mxu0 0.0
        %2768 = vmatmul.mubr.f32.gmra.mrb[0].mxu0 %v2701
        %v2769 = vpop.f32.mrb[0].mxu0
        %v2770 = vadd.f32 %v2699, %v2769
        %v2771 = vpop.f32.mrb[0].mxu0
        %2772 = vdwg.mxu0
        %v2773 = vadd.f32 %v2607, %v2770
        %v2774 = vld [vmem:[#allocation2 + $0x108] sm:$0x1]
        %v2775 = vld [vmem:[#allocation2 + $0x100] sm:$0x1]
        %v2776 = vsel %vm261, %v2773, 0.0
        %2777 = vadd.xlane.f32.xlu0 %v2776
        %v2778 = vpop.xlane.xlu0 %2777
        %v2779 = vmul.f32 %v2778, %v723
        %v2780 = vsub.f32 %v2773, %v2779
        %v2781 = vmul.f32 %v2780, %v2780
        %v2782 = vsel %vm261, %v2781, 0.0
        %2783 = vadd.xlane.f32.xlu0 %v2782
        %v2784 = vpop.xlane.xlu0 %2783
        %v2785 = vmul.f32 %v2784, %v723
        %v2786 = vadd.f32 %v2785, 1e-05
        %v2787 = vrsqrt.pop %v2786
        %v2788 = vmul.f32 %v2780, %v2787
        %v2789 = vlaneseq
        %v2790 = vshrl.u32 %v2789, 7
        %v2791 = vsub.s32 0, %v2790
        %v2792 = vrot.slane %v2774, %v2791
        %v2793 = vmul.f32 %v2788, %v2792
        %v2794 = vlaneseq
        %v2795 = vshrl.u32 %v2794, 7
        %v2796 = vsub.s32 0, %v2795
        %v2797 = vrot.slane %v2775, %v2796
        %v2798 = vadd.f32 %v2793, %v2797
        %v2799 = vld [vmem:[#allocation2 + $0x288] sm:$0xff]
        %v2800 = vld [vmem:[#allocation2 + $0x290] sm:$0xff]
        %v2801 = vld [vmem:[#allocation2 + $0x298] sm:$0xff]
        %v2802 = vld [vmem:[#allocation2 + $0x2a0] sm:$0xff]
        %v2803 = vld [vmem:[#allocation2 + $0x260] sm:$0x1]
        %v2804 = vlaneseq
        %v2805 = vshrl.u32 %v2804, 7
        %v2806 = vsub.s32 0, %v2805
        %v2807 = vrot.slane %v2803, %v2806
        %v2809 = vsel %vm261, %v2798, 0
        %2811 = vmatprep.subr.mxu0 0.0
        %2812 = vmatpush1.msra.mxu0 %v2799
        %2813 = vmatprep.subr.mxu0 0.0
        %2814 = vmatpush1.msra.mxu0 %v2800
        %2815 = vmatprep.subr.mxu0 0.0
        %2816 = vmatpush1.msra.mxu0 %v2801
        %2817 = vmatprep.subr.mxu0 0.0
        %2818 = vmatpush1.msra.mxu0 %v2802
        %2819 = vmatprep.subr.mxu0 0.0
        %2820 = vmatpush1.msra.mxu0 0.0
        %2821 = vmatprep.subr.mxu0 0.0
        %2822 = vmatpush1.msra.mxu0 0.0
        %2823 = vmatprep.subr.mxu0 0.0
        %2824 = vmatpush1.msra.mxu0 0.0
        %2825 = vmatprep.subr.mxu0 0.0
        %2826 = vmatpush1.msra.mxu0 0.0
        %2827 = vmatprep.subr.mxu0 0.0
        %2828 = vmatpush1.msra.mxu0 0.0
        %2829 = vmatprep.subr.mxu0 0.0
        %2830 = vmatpush1.msra.mxu0 0.0
        %2831 = vmatprep.subr.mxu0 0.0
        %2832 = vmatpush1.msra.mxu0 0.0
        %2833 = vmatprep.subr.mxu0 0.0
        %2834 = vmatpush1.msra.mxu0 0.0
        %2835 = vmatprep.subr.mxu0 0.0
        %2836 = vmatpush1.msra.mxu0 0.0
        %2837 = vmatprep.subr.mxu0 0.0
        %2838 = vmatpush1.msra.mxu0 0.0
        %2839 = vmatprep.subr.mxu0 0.0
        %2840 = vmatpush1.msra.mxu0 0.0
        %2841 = vmatprep.subr.mxu0 0.0
        %2842 = vmatpush1.msra.mxu0 0.0
        %2843 = vmatprep.subr.mxu0 0.0
        %2844 = vmatpush1.msra.mxu0 0.0
        %2845 = vmatprep.subr.mxu0 0.0
        %2846 = vmatpush1.msra.mxu0 0.0
        %2847 = vmatprep.subr.mxu0 0.0
        %2848 = vmatpush1.msra.mxu0 0.0
        %2849 = vmatprep.subr.mxu0 0.0
        %2850 = vmatpush1.msra.mxu0 0.0
        %2851 = vmatprep.subr.mxu0 0.0
        %2852 = vmatpush1.msra.mxu0 0.0
        %2853 = vmatprep.subr.mxu0 0.0
        %2854 = vmatpush1.msra.mxu0 0.0
        %2855 = vmatprep.subr.mxu0 0.0
        %2856 = vmatpush1.msra.mxu0 0.0
        %2857 = vmatprep.subr.mxu0 0.0
        %2858 = vmatpush1.msra.mxu0 0.0
        %2859 = vmatprep.subr.mxu0 0.0
        %2860 = vmatpush1.msra.mxu0 0.0
        %2861 = vmatprep.subr.mxu0 0.0
        %2862 = vmatpush1.msra.mxu0 0.0
        %2863 = vmatprep.subr.mxu0 0.0
        %2864 = vmatpush1.msra.mxu0 0.0
        %2865 = vmatprep.subr.mxu0 0.0
        %2866 = vmatpush1.msra.mxu0 0.0
        %2867 = vmatprep.subr.mxu0 0.0
        %2868 = vmatpush1.msra.mxu0 0.0
        %2869 = vmatprep.subr.mxu0 0.0
        %2870 = vmatpush1.msra.mxu0 0.0
        %2871 = vmatprep.subr.mxu0 0.0
        %2872 = vmatpush1.msra.mxu0 0.0
        %2873 = vmatprep.subr.mxu0 0.0
        %2874 = vmatpush1.msra.mxu0 0.0
        %2875 = vmatprep.mubr.f32.mxu0 0.0
        %2876 = vmatmul.mubr.f32.gmra.mrb[0].mxu0 %v2809
        %v2877 = vpop.f32.mrb[0].mxu0
        %v2878 = vadd.f32 %v2807, %v2877
        %v2879 = vpop.f32.mrb[0].mxu0
        %2880 = vdwg.mxu0
        %v2881 = vld [vmem:[#allocation2 + $0x268] sm:$0xff]
        %v2882 = vld [vmem:[#allocation2 + $0x270] sm:$0xff]
        %v2883 = vld [vmem:[#allocation2 + $0x278] sm:$0xff]
        %v2884 = vld [vmem:[#allocation2 + $0x280] sm:$0xff]
        %v2885 = vld [vmem:[#allocation2 + $0x258] sm:$0x1]
        %v2886 = vmul.f32 %v2878, %v345
        %v2887 = vmul.f32 %v2878, %v347
        %v2888 = vmul.f32 %v2878, %v349
        %v2889 = vmul.f32 %v2878, %v351
        %v2890 = vmul.f32 %v2878, %v361
        %v2891 = vmul.f32 %v2878, %v363
        %v2892 = vmul.f32 %v2878, %v365
        %v2893 = vmul.f32 %v2878, %v367
        %2898 = vrot.lane.b32.xlu0 %v2886, 96
        %v2899 = vpop.permute.xlu0 %2898
        %2900 = vrot.lane.b32.xlu0 %v2887, 96
        %v2901 = vpop.permute.xlu0 %2900
        %2902 = vrot.lane.b32.xlu0 %v2888, 96
        %v2903 = vpop.permute.xlu0 %2902
        %2904 = vrot.lane.b32.xlu0 %v2889, 96
        %v2905 = vpop.permute.xlu0 %2904
        %v2907 = vsel %vm261, %v2878, 0
        %v2909 = vsel %vm261, %v2899, 0
        %v2911 = vsel %vm261, %v2901, 0
        %v2913 = vsel %vm261, %v2903, 0
        %v2915 = vsel %vm261, %v2905, 0
        %2917 = vmatprep.subr.mxu0 0.0
        %2918 = vmatpush1.xpose.msra.mxu0 %v2909
        %2919 = vmatprep.subr.mxu0 0.0
        %2920 = vmatpush1.xpose.msra.mxu0 %v2911
        %2921 = vmatprep.subr.mxu0 0.0
        %2922 = vmatpush1.xpose.msra.mxu0 %v2913
        %2923 = vmatprep.subr.mxu0 0.0
        %2924 = vmatpush1.xpose.msra.mxu0 %v2915
        %2925 = vmatprep.subr.mxu0 0.0
        %2926 = vmatpush1.xpose.msra.mxu0 0.0
        %2927 = vmatprep.subr.mxu0 0.0
        %2928 = vmatpush1.xpose.msra.mxu0 0.0
        %2929 = vmatprep.subr.mxu0 0.0
        %2930 = vmatpush1.xpose.msra.mxu0 0.0
        %2931 = vmatprep.subr.mxu0 0.0
        %2932 = vmatpush1.xpose.msra.mxu0 0.0
        %2933 = vmatprep.subr.mxu0 0.0
        %2934 = vmatpush1.xpose.msra.mxu0 0.0
        %2935 = vmatprep.subr.mxu0 0.0
        %2936 = vmatpush1.xpose.msra.mxu0 0.0
        %2937 = vmatprep.subr.mxu0 0.0
        %2938 = vmatpush1.xpose.msra.mxu0 0.0
        %2939 = vmatprep.subr.mxu0 0.0
        %2940 = vmatpush1.xpose.msra.mxu0 0.0
        %2941 = vmatprep.subr.mxu0 0.0
        %2942 = vmatpush1.xpose.msra.mxu0 0.0
        %2943 = vmatprep.subr.mxu0 0.0
        %2944 = vmatpush1.xpose.msra.mxu0 0.0
        %2945 = vmatprep.subr.mxu0 0.0
        %2946 = vmatpush1.xpose.msra.mxu0 0.0
        %2947 = vmatprep.subr.mxu0 0.0
        %2948 = vmatpush1.xpose.msra.mxu0 0.0
        %2949 = vmatprep.subr.mxu0 0.0
        %2950 = vmatpush1.xpose.msra.mxu0 0.0
        %2951 = vmatprep.subr.mxu0 0.0
        %2952 = vmatpush1.xpose.msra.mxu0 0.0
        %2953 = vmatprep.subr.mxu0 0.0
        %2954 = vmatpush1.xpose.msra.mxu0 0.0
        %2955 = vmatprep.subr.mxu0 0.0
        %2956 = vmatpush1.xpose.msra.mxu0 0.0
        %2957 = vmatprep.subr.mxu0 0.0
        %2958 = vmatpush1.xpose.msra.mxu0 0.0
        %2959 = vmatprep.subr.mxu0 0.0
        %2960 = vmatpush1.xpose.msra.mxu0 0.0
        %2961 = vmatprep.subr.mxu0 0.0
        %2962 = vmatpush1.xpose.msra.mxu0 0.0
        %2963 = vmatprep.subr.mxu0 0.0
        %2964 = vmatpush1.xpose.msra.mxu0 0.0
        %2965 = vmatprep.subr.mxu0 0.0
        %2966 = vmatpush1.xpose.msra.mxu0 0.0
        %2967 = vmatprep.subr.mxu0 0.0
        %2968 = vmatpush1.xpose.msra.mxu0 0.0
        %2969 = vmatprep.subr.mxu0 0.0
        %2970 = vmatpush1.xpose.msra.mxu0 0.0
        %2971 = vmatprep.subr.mxu0 0.0
        %2972 = vmatpush1.xpose.msra.mxu0 0.0
        %2973 = vmatprep.subr.mxu0 0.0
        %2974 = vmatpush1.xpose.msra.mxu0 0.0
        %2975 = vmatprep.subr.mxu0 0.0
        %2976 = vmatpush1.xpose.msra.mxu0 0.0
        %2977 = vmatprep.subr.mxu0 0.0
        %2978 = vmatpush1.xpose.msra.mxu0 0.0
        %2979 = vmatprep.subr.mxu0 0.0
        %2980 = vmatpush1.xpose.msra.mxu0 0.0
        %2981 = vmatprep.mubr.f32.mxu0 0.0
        %2982 = vmatmul.mubr.f32.gmra.mrb[0].mxu0 %v2907
        %v2983 = vpop.f32.mrb[0].mxu0
        %v2984 = vadd.f32 0.0, %v2983
        %v2985 = vpop.f32.mrb[0].mxu0
        %2986 = vdwg.mxu0
        %v2987 = vmul.f32 %v2984, 0.35355338
        %v2988 = vsel %vm261, %v2987, -inf
        %2989 = vmax.xlane.f32.xlu0 %v2988
        %v2990 = vpop.xlane.xlu0 %2989
        %v2991 = vsub.f32 %v2987, %v2990
        %v2992 = vmul.f32 %v2991, 1.442695
        %v2993 = vpow.pop %v2992
        %v2995 = vsel %vm261, %v2993, 0
        %2997 = vmatprep.subr.mxu0 0.0
        %2998 = vmatpush1.msra.mxu0 %v158
        %2999 = vmatprep.subr.mxu0 0.0
        %3000 = vmatpush1.msra.mxu0 %v159
        %3001 = vmatprep.subr.mxu0 0.0
        %3002 = vmatpush1.msra.mxu0 %v160
        %3003 = vmatprep.subr.mxu0 0.0
        %3004 = vmatpush1.msra.mxu0 %v161
        %3005 = vmatprep.subr.mxu0 0.0
        %3006 = vmatpush1.msra.mxu0 0.0
        %3007 = vmatprep.subr.mxu0 0.0
        %3008 = vmatpush1.msra.mxu0 0.0
        %3009 = vmatprep.subr.mxu0 0.0
        %3010 = vmatpush1.msra.mxu0 0.0
        %3011 = vmatprep.subr.mxu0 0.0
        %3012 = vmatpush1.msra.mxu0 0.0
        %3013 = vmatprep.subr.mxu0 0.0
        %3014 = vmatpush1.msra.mxu0 0.0
        %3015 = vmatprep.subr.mxu0 0.0
        %3016 = vmatpush1.msra.mxu0 0.0
        %3017 = vmatprep.subr.mxu0 0.0
        %3018 = vmatpush1.msra.mxu0 0.0
        %3019 = vmatprep.subr.mxu0 0.0
        %3020 = vmatpush1.msra.mxu0 0.0
        %3021 = vmatprep.subr.mxu0 0.0
        %3022 = vmatpush1.msra.mxu0 0.0
        %3023 = vmatprep.subr.mxu0 0.0
        %3024 = vmatpush1.msra.mxu0 0.0
        %3025 = vmatprep.subr.mxu0 0.0
        %3026 = vmatpush1.msra.mxu0 0.0
        %3027 = vmatprep.subr.mxu0 0.0
        %3028 = vmatpush1.msra.mxu0 0.0
        %3029 = vmatprep.subr.mxu0 0.0
        %3030 = vmatpush1.msra.mxu0 0.0
        %3031 = vmatprep.subr.mxu0 0.0
        %3032 = vmatpush1.msra.mxu0 0.0
        %3033 = vmatprep.subr.mxu0 0.0
        %3034 = vmatpush1.msra.mxu0 0.0
        %3035 = vmatprep.subr.mxu0 0.0
        %3036 = vmatpush1.msra.mxu0 0.0
        %3037 = vmatprep.subr.mxu0 0.0
        %3038 = vmatpush1.msra.mxu0 0.0
        %3039 = vmatprep.subr.mxu0 0.0
        %3040 = vmatpush1.msra.mxu0 0.0
        %3041 = vmatprep.subr.mxu0 0.0
        %3042 = vmatpush1.msra.mxu0 0.0
        %3043 = vmatprep.subr.mxu0 0.0
        %3044 = vmatpush1.msra.mxu0 0.0
        %3045 = vmatprep.subr.mxu0 0.0
        %3046 = vmatpush1.msra.mxu0 0.0
        %3047 = vmatprep.subr.mxu0 0.0
        %3048 = vmatpush1.msra.mxu0 0.0
        %3049 = vmatprep.subr.mxu0 0.0
        %3050 = vmatpush1.msra.mxu0 0.0
        %3051 = vmatprep.subr.mxu0 0.0
        %3052 = vmatpush1.msra.mxu0 0.0
        %3053 = vmatprep.subr.mxu0 0.0
        %3054 = vmatpush1.msra.mxu0 0.0
        %3055 = vmatprep.subr.mxu0 0.0
        %3056 = vmatpush1.msra.mxu0 0.0
        %3057 = vmatprep.subr.mxu0 0.0
        %3058 = vmatpush1.msra.mxu0 0.0
        %3059 = vmatprep.subr.mxu0 0.0
        %3060 = vmatpush1.msra.mxu0 0.0
        %3061 = vmatprep.mubr.f32.mxu0 0.0
        %3062 = vmatmul.mubr.f32.gmra.mrb[0].mxu0 %v2995
        %v3063 = vpop.f32.mrb[0].mxu0
        %v3064 = vadd.f32 0.0, %v3063
        %v3065 = vpop.f32.mrb[0].mxu0
        %3066 = vdwg.mxu0
        %v3067 = vrcp.pop %v3064
        %v3068 = vmul.f32 %v2993, %v3067
        %3073 = vrot.lane.b32.xlu0 %v2890, 64
        %v3074 = vpop.permute.xlu0 %3073
        %3075 = vrot.lane.b32.xlu0 %v2891, 64
        %v3076 = vpop.permute.xlu0 %3075
        %3077 = vrot.lane.b32.xlu0 %v2892, 64
        %v3078 = vpop.permute.xlu0 %3077
        %3079 = vrot.lane.b32.xlu0 %v2893, 64
        %v3080 = vpop.permute.xlu0 %3079
        %v3086 = vsel %vm261, %v3068, 0
        %3088 = vmatprep.subr.mxu0 0.0
        %3089 = vmatpush1.msra.mxu0 %v3074
        %3090 = vmatprep.subr.mxu0 0.0
        %3091 = vmatpush1.msra.mxu0 %v3076
        %3092 = vmatprep.subr.mxu0 0.0
        %3093 = vmatpush1.msra.mxu0 %v3078
        %3094 = vmatprep.subr.mxu0 0.0
        %3095 = vmatpush1.msra.mxu0 %v3080
        %3096 = vmatprep.subr.mxu0 0.0
        %3097 = vmatpush1.msra.mxu0 0.0
        %3098 = vmatprep.subr.mxu0 0.0
        %3099 = vmatpush1.msra.mxu0 0.0
        %3100 = vmatprep.subr.mxu0 0.0
        %3101 = vmatpush1.msra.mxu0 0.0
        %3102 = vmatprep.subr.mxu0 0.0
        %3103 = vmatpush1.msra.mxu0 0.0
        %3104 = vmatprep.subr.mxu0 0.0
        %3105 = vmatpush1.msra.mxu0 0.0
        %3106 = vmatprep.subr.mxu0 0.0
        %3107 = vmatpush1.msra.mxu0 0.0
        %3108 = vmatprep.subr.mxu0 0.0
        %3109 = vmatpush1.msra.mxu0 0.0
        %3110 = vmatprep.subr.mxu0 0.0
        %3111 = vmatpush1.msra.mxu0 0.0
        %3112 = vmatprep.subr.mxu0 0.0
        %3113 = vmatpush1.msra.mxu0 0.0
        %3114 = vmatprep.subr.mxu0 0.0
        %3115 = vmatpush1.msra.mxu0 0.0
        %3116 = vmatprep.subr.mxu0 0.0
        %3117 = vmatpush1.msra.mxu0 0.0
        %3118 = vmatprep.subr.mxu0 0.0
        %3119 = vmatpush1.msra.mxu0 0.0
        %3120 = vmatprep.subr.mxu0 0.0
        %3121 = vmatpush1.msra.mxu0 0.0
        %3122 = vmatprep.subr.mxu0 0.0
        %3123 = vmatpush1.msra.mxu0 0.0
        %3124 = vmatprep.subr.mxu0 0.0
        %3125 = vmatpush1.msra.mxu0 0.0
        %3126 = vmatprep.subr.mxu0 0.0
        %3127 = vmatpush1.msra.mxu0 0.0
        %3128 = vmatprep.subr.mxu0 0.0
        %3129 = vmatpush1.msra.mxu0 0.0
        %3130 = vmatprep.subr.mxu0 0.0
        %3131 = vmatpush1.msra.mxu0 0.0
        %3132 = vmatprep.subr.mxu0 0.0
        %3133 = vmatpush1.msra.mxu0 0.0
        %3134 = vmatprep.subr.mxu0 0.0
        %3135 = vmatpush1.msra.mxu0 0.0
        %3136 = vmatprep.subr.mxu0 0.0
        %3137 = vmatpush1.msra.mxu0 0.0
        %3138 = vmatprep.subr.mxu0 0.0
        %3139 = vmatpush1.msra.mxu0 0.0
        %3140 = vmatprep.subr.mxu0 0.0
        %3141 = vmatpush1.msra.mxu0 0.0
        %3142 = vmatprep.subr.mxu0 0.0
        %3143 = vmatpush1.msra.mxu0 0.0
        %3144 = vmatprep.subr.mxu0 0.0
        %3145 = vmatpush1.msra.mxu0 0.0
        %3146 = vmatprep.subr.mxu0 0.0
        %3147 = vmatpush1.msra.mxu0 0.0
        %3148 = vmatprep.subr.mxu0 0.0
        %3149 = vmatpush1.msra.mxu0 0.0
        %3150 = vmatprep.subr.mxu0 0.0
        %3151 = vmatpush1.msra.mxu0 0.0
        %3152 = vmatprep.mubr.f32.mxu0 0.0
        %3153 = vmatmul.mubr.f32.gmra.mrb[0].mxu0 %v3086
        %v3154 = vpop.f32.mrb[0].mxu0
        %v3155 = vadd.f32 0.0, %v3154
        %v3156 = vpop.f32.mrb[0].mxu0
        %3157 = vdwg.mxu0
        %v3158 = vlaneseq
        %v3159 = vshrl.u32 %v3158, 7
        %v3160 = vsub.s32 0, %v3159
        %v3161 = vrot.slane %v2885, %v3160
        %v3163 = vsel %vm261, %v3155, 0
        %3165 = vmatprep.subr.mxu0 0.0
        %3166 = vmatpush1.msra.mxu0 %v2881
        %3167 = vmatprep.subr.mxu0 0.0
        %3168 = vmatpush1.msra.mxu0 %v2882
        %3169 = vmatprep.subr.mxu0 0.0
        %3170 = vmatpush1.msra.mxu0 %v2883
        %3171 = vmatprep.subr.mxu0 0.0
        %3172 = vmatpush1.msra.mxu0 %v2884
        %3173 = vmatprep.subr.mxu0 0.0
        %3174 = vmatpush1.msra.mxu0 0.0
        %3175 = vmatprep.subr.mxu0 0.0
        %3176 = vmatpush1.msra.mxu0 0.0
        %3177 = vmatprep.subr.mxu0 0.0
        %3178 = vmatpush1.msra.mxu0 0.0
        %3179 = vmatprep.subr.mxu0 0.0
        %3180 = vmatpush1.msra.mxu0 0.0
        %3181 = vmatprep.subr.mxu0 0.0
        %3182 = vmatpush1.msra.mxu0 0.0
        %3183 = vmatprep.subr.mxu0 0.0
        %3184 = vmatpush1.msra.mxu0 0.0
        %3185 = vmatprep.subr.mxu0 0.0
        %3186 = vmatpush1.msra.mxu0 0.0
        %3187 = vmatprep.subr.mxu0 0.0
        %3188 = vmatpush1.msra.mxu0 0.0
        %3189 = vmatprep.subr.mxu0 0.0
        %3190 = vmatpush1.msra.mxu0 0.0
        %3191 = vmatprep.subr.mxu0 0.0
        %3192 = vmatpush1.msra.mxu0 0.0
        %3193 = vmatprep.subr.mxu0 0.0
        %3194 = vmatpush1.msra.mxu0 0.0
        %3195 = vmatprep.subr.mxu0 0.0
        %3196 = vmatpush1.msra.mxu0 0.0
        %3197 = vmatprep.subr.mxu0 0.0
        %3198 = vmatpush1.msra.mxu0 0.0
        %3199 = vmatprep.subr.mxu0 0.0
        %3200 = vmatpush1.msra.mxu0 0.0
        %3201 = vmatprep.subr.mxu0 0.0
        %3202 = vmatpush1.msra.mxu0 0.0
        %3203 = vmatprep.subr.mxu0 0.0
        %3204 = vmatpush1.msra.mxu0 0.0
        %3205 = vmatprep.subr.mxu0 0.0
        %3206 = vmatpush1.msra.mxu0 0.0
        %3207 = vmatprep.subr.mxu0 0.0
        %3208 = vmatpush1.msra.mxu0 0.0
        %3209 = vmatprep.subr.mxu0 0.0
        %3210 = vmatpush1.msra.mxu0 0.0
        %3211 = vmatprep.subr.mxu0 0.0
        %3212 = vmatpush1.msra.mxu0 0.0
        %3213 = vmatprep.subr.mxu0 0.0
        %3214 = vmatpush1.msra.mxu0 0.0
        %3215 = vmatprep.subr.mxu0 0.0
        %3216 = vmatpush1.msra.mxu0 0.0
        %3217 = vmatprep.subr.mxu0 0.0
        %3218 = vmatpush1.msra.mxu0 0.0
        %3219 = vmatprep.subr.mxu0 0.0
        %3220 = vmatpush1.msra.mxu0 0.0
        %3221 = vmatprep.subr.mxu0 0.0
        %3222 = vmatpush1.msra.mxu0 0.0
        %3223 = vmatprep.subr.mxu0 0.0
        %3224 = vmatpush1.msra.mxu0 0.0
        %3225 = vmatprep.subr.mxu0 0.0
        %3226 = vmatpush1.msra.mxu0 0.0
        %3227 = vmatprep.subr.mxu0 0.0
        %3228 = vmatpush1.msra.mxu0 0.0
        %3229 = vmatprep.mubr.f32.mxu0 0.0
        %3230 = vmatmul.mubr.f32.gmra.mrb[0].mxu0 %v3163
        %v3231 = vpop.f32.mrb[0].mxu0
        %v3232 = vadd.f32 %v3161, %v3231
        %v3233 = vpop.f32.mrb[0].mxu0
        %3234 = vdwg.mxu0
        %v3235 = vadd.f32 %v2798, %v3232
        %v3236 = vld [vmem:[#allocation2 + $0x230] sm:$0x1]
        %v3237 = vld [vmem:[#allocation2 + $0x228] sm:$0x1]
        %v3238 = vsel %vm261, %v3235, 0.0
        %3239 = vadd.xlane.f32.xlu0 %v3238
        %v3240 = vpop.xlane.xlu0 %3239
        %v3241 = vmul.f32 %v3240, %v723
        %v3242 = vsub.f32 %v3235, %v3241
        %v3243 = vmul.f32 %v3242, %v3242
        %v3244 = vsel %vm261, %v3243, 0.0
        %3245 = vadd.xlane.f32.xlu0 %v3244
        %v3246 = vpop.xlane.xlu0 %3245
        %v3247 = vmul.f32 %v3246, %v723
        %v3248 = vadd.f32 %v3247, 1e-05
        %v3249 = vrsqrt.pop %v3248
        %v3250 = vmul.f32 %v3242, %v3249
        %v3251 = vlaneseq
        %v3252 = vshrl.u32 %v3251, 7
        %v3253 = vsub.s32 0, %v3252
        %v3254 = vrot.slane %v3236, %v3253
        %v3255 = vmul.f32 %v3250, %v3254
        %v3256 = vlaneseq
        %v3257 = vshrl.u32 %v3256, 7
        %v3258 = vsub.s32 0, %v3257
        %v3259 = vrot.slane %v3237, %v3258
        %v3260 = vadd.f32 %v3255, %v3259
        %v3261 = vld [vmem:[#allocation2 + $0x208] sm:$0xff]
        %v3262 = vld [vmem:[#allocation2 + $0x210] sm:$0xff]
        %v3263 = vld [vmem:[#allocation2 + $0x218] sm:$0xff]
        %v3264 = vld [vmem:[#allocation2 + $0x220] sm:$0xff]
        %v3265 = vld [vmem:[#allocation2 + $0x1c0] sm:$0x1]
        %v3266 = vlaneseq
        %v3267 = vshrl.u32 %v3266, 7
        %v3268 = vsub.s32 0, %v3267
        %v3269 = vrot.slane %v3265, %v3268
        %v3271 = vsel %vm261, %v3260, 0
        %3273 = vmatprep.subr.mxu0 0.0
        %3274 = vmatpush1.msra.mxu0 %v3261
        %3275 = vmatprep.subr.mxu0 0.0
        %3276 = vmatpush1.msra.mxu0 %v3262
        %3277 = vmatprep.subr.mxu0 0.0
        %3278 = vmatpush1.msra.mxu0 %v3263
        %3279 = vmatprep.subr.mxu0 0.0
        %3280 = vmatpush1.msra.mxu0 %v3264
        %3281 = vmatprep.subr.mxu0 0.0
        %3282 = vmatpush1.msra.mxu0 0.0
        %3283 = vmatprep.subr.mxu0 0.0
        %3284 = vmatpush1.msra.mxu0 0.0
        %3285 = vmatprep.subr.mxu0 0.0
        %3286 = vmatpush1.msra.mxu0 0.0
        %3287 = vmatprep.subr.mxu0 0.0
        %3288 = vmatpush1.msra.mxu0 0.0
        %3289 = vmatprep.subr.mxu0 0.0
        %3290 = vmatpush1.msra.mxu0 0.0
        %3291 = vmatprep.subr.mxu0 0.0
        %3292 = vmatpush1.msra.mxu0 0.0
        %3293 = vmatprep.subr.mxu0 0.0
        %3294 = vmatpush1.msra.mxu0 0.0
        %3295 = vmatprep.subr.mxu0 0.0
        %3296 = vmatpush1.msra.mxu0 0.0
        %3297 = vmatprep.subr.mxu0 0.0
        %3298 = vmatpush1.msra.mxu0 0.0
        %3299 = vmatprep.subr.mxu0 0.0
        %3300 = vmatpush1.msra.mxu0 0.0
        %3301 = vmatprep.subr.mxu0 0.0
        %3302 = vmatpush1.msra.mxu0 0.0
        %3303 = vmatprep.subr.mxu0 0.0
        %3304 = vmatpush1.msra.mxu0 0.0
        %3305 = vmatprep.subr.mxu0 0.0
        %3306 = vmatpush1.msra.mxu0 0.0
        %3307 = vmatprep.subr.mxu0 0.0
        %3308 = vmatpush1.msra.mxu0 0.0
        %3309 = vmatprep.subr.mxu0 0.0
        %3310 = vmatpush1.msra.mxu0 0.0
        %3311 = vmatprep.subr.mxu0 0.0
        %3312 = vmatpush1.msra.mxu0 0.0
        %3313 = vmatprep.subr.mxu0 0.0
        %3314 = vmatpush1.msra.mxu0 0.0
        %3315 = vmatprep.subr.mxu0 0.0
        %3316 = vmatpush1.msra.mxu0 0.0
        %3317 = vmatprep.subr.mxu0 0.0
        %3318 = vmatpush1.msra.mxu0 0.0
        %3319 = vmatprep.subr.mxu0 0.0
        %3320 = vmatpush1.msra.mxu0 0.0
        %3321 = vmatprep.subr.mxu0 0.0
        %3322 = vmatpush1.msra.mxu0 0.0
        %3323 = vmatprep.subr.mxu0 0.0
        %3324 = vmatpush1.msra.mxu0 0.0
        %3325 = vmatprep.subr.mxu0 0.0
        %3326 = vmatpush1.msra.mxu0 0.0
        %3327 = vmatprep.subr.mxu0 0.0
        %3328 = vmatpush1.msra.mxu0 0.0
        %3329 = vmatprep.subr.mxu0 0.0
        %3330 = vmatpush1.msra.mxu0 0.0
        %3331 = vmatprep.subr.mxu0 0.0
        %3332 = vmatpush1.msra.mxu0 0.0
        %3333 = vmatprep.subr.mxu0 0.0
        %3334 = vmatpush1.msra.mxu0 0.0
        %3335 = vmatprep.subr.mxu0 0.0
        %3336 = vmatpush1.msra.mxu0 0.0
        %3337 = vmatprep.mubr.f32.mxu0 0.0
        %3338 = vmatmul.mubr.f32.gmra.mrb[0].mxu0 %v3271
        %v3339 = vpop.f32.mrb[0].mxu0
        %v3340 = vadd.f32 %v3269, %v3339
        %v3341 = vpop.f32.mrb[0].mxu0
        %3342 = vdwg.mxu0
        %v3343 = vld [vmem:[#allocation2 + $0x1c8] sm:$0xff]
        %v3344 = vld [vmem:[#allocation2 + $0x1d0] sm:$0xff]
        %v3345 = vld [vmem:[#allocation2 + $0x1d8] sm:$0xff]
        %v3346 = vld [vmem:[#allocation2 + $0x1e0] sm:$0xff]
        %v3347 = vld [vmem:[#allocation2 + $0x1b0] sm:$0x1]
        %v3348 = vlaneseq
        %v3349 = vshrl.u32 %v3348, 7
        %v3350 = vsub.s32 0, %v3349
        %v3351 = vrot.slane %v3347, %v3350
        %3352 = vmatprep.subr.mxu0 0.0
        %3353 = vmatpush1.msra.mxu0 %v3343
        %3354 = vmatprep.subr.mxu0 0.0
        %3355 = vmatpush1.msra.mxu0 %v3344
        %3356 = vmatprep.subr.mxu0 0.0
        %3357 = vmatpush1.msra.mxu0 %v3345
        %3358 = vmatprep.subr.mxu0 0.0
        %3359 = vmatpush1.msra.mxu0 %v3346
        %3360 = vmatprep.subr.mxu0 0.0
        %3361 = vmatpush1.msra.mxu0 0.0
        %3362 = vmatprep.subr.mxu0 0.0
        %3363 = vmatpush1.msra.mxu0 0.0
        %3364 = vmatprep.subr.mxu0 0.0
        %3365 = vmatpush1.msra.mxu0 0.0
        %3366 = vmatprep.subr.mxu0 0.0
        %3367 = vmatpush1.msra.mxu0 0.0
        %3368 = vmatprep.subr.mxu0 0.0
        %3369 = vmatpush1.msra.mxu0 0.0
        %3370 = vmatprep.subr.mxu0 0.0
        %3371 = vmatpush1.msra.mxu0 0.0
        %3372 = vmatprep.subr.mxu0 0.0
        %3373 = vmatpush1.msra.mxu0 0.0
        %3374 = vmatprep.subr.mxu0 0.0
        %3375 = vmatpush1.msra.mxu0 0.0
        %3376 = vmatprep.subr.mxu0 0.0
        %3377 = vmatpush1.msra.mxu0 0.0
        %3378 = vmatprep.subr.mxu0 0.0
        %3379 = vmatpush1.msra.mxu0 0.0
        %3380 = vmatprep.subr.mxu0 0.0
        %3381 = vmatpush1.msra.mxu0 0.0
        %3382 = vmatprep.subr.mxu0 0.0
        %3383 = vmatpush1.msra.mxu0 0.0
        %3384 = vmatprep.subr.mxu0 0.0
        %3385 = vmatpush1.msra.mxu0 0.0
        %3386 = vmatprep.subr.mxu0 0.0
        %3387 = vmatpush1.msra.mxu0 0.0
        %3388 = vmatprep.subr.mxu0 0.0
        %3389 = vmatpush1.msra.mxu0 0.0
        %3390 = vmatprep.subr.mxu0 0.0
        %3391 = vmatpush1.msra.mxu0 0.0
        %3392 = vmatprep.subr.mxu0 0.0
        %3393 = vmatpush1.msra.mxu0 0.0
        %3394 = vmatprep.subr.mxu0 0.0
        %3395 = vmatpush1.msra.mxu0 0.0
        %3396 = vmatprep.subr.mxu0 0.0
        %3397 = vmatpush1.msra.mxu0 0.0
        %3398 = vmatprep.subr.mxu0 0.0
        %3399 = vmatpush1.msra.mxu0 0.0
        %3400 = vmatprep.subr.mxu0 0.0
        %3401 = vmatpush1.msra.mxu0 0.0
        %3402 = vmatprep.subr.mxu0 0.0
        %3403 = vmatpush1.msra.mxu0 0.0
        %3404 = vmatprep.subr.mxu0 0.0
        %3405 = vmatpush1.msra.mxu0 0.0
        %3406 = vmatprep.subr.mxu0 0.0
        %3407 = vmatpush1.msra.mxu0 0.0
        %3408 = vmatprep.subr.mxu0 0.0
        %3409 = vmatpush1.msra.mxu0 0.0
        %3410 = vmatprep.subr.mxu0 0.0
        %3411 = vmatpush1.msra.mxu0 0.0
        %3412 = vmatprep.subr.mxu0 0.0
        %3413 = vmatpush1.msra.mxu0 0.0
        %3414 = vmatprep.subr.mxu0 0.0
        %3415 = vmatpush1.msra.mxu0 0.0
        %3416 = vmatprep.mubr.f32.mxu0 0.0
        %3417 = vmatmul.mubr.f32.gmra.mrb[0].mxu0 %v2164
        %v3418 = vpop.f32.mrb[0].mxu0
        %v3419 = vadd.f32 %v3351, %v3418
        %v3420 = vpop.f32.mrb[0].mxu0
        %3421 = vdwg.mxu0
        %v3422 = vld [vmem:[#allocation2 + $0x1e8] sm:$0xff]
        %v3423 = vld [vmem:[#allocation2 + $0x1f0] sm:$0xff]
        %v3424 = vld [vmem:[#allocation2 + $0x1f8] sm:$0xff]
        %v3425 = vld [vmem:[#allocation2 + $0x200] sm:$0xff]
        %v3426 = vld [vmem:[#allocation2 + $0x1b8] sm:$0x1]
        %v3427 = vmul.f32 %v3419, %v154
        %v3428 = vmul.f32 %v3419, %v155
        %v3429 = vmul.f32 %v3419, %v156
        %v3430 = vmul.f32 %v3419, %v157
        %v3431 = vmul.f32 %v3419, %v345
        %v3432 = vmul.f32 %v3419, %v347
        %v3433 = vmul.f32 %v3419, %v349
        %v3434 = vmul.f32 %v3419, %v351
        %v3436 = vsel %vm261, %v3340, 0
        %v3439 = vsel %vm261, %v3427, 0
        %v3442 = vsel %vm261, %v3428, 0
        %v3445 = vsel %vm261, %v3429, 0
        %v3448 = vsel %vm261, %v3430, 0
        %3450 = vmatprep.subr.mxu0 0.0
        %3451 = vmatpush1.xpose.msra.mxu0 %v3439
        %3452 = vmatprep.subr.mxu0 0.0
        %3453 = vmatpush1.xpose.msra.mxu0 %v3442
        %3454 = vmatprep.subr.mxu0 0.0
        %3455 = vmatpush1.xpose.msra.mxu0 %v3445
        %3456 = vmatprep.subr.mxu0 0.0
        %3457 = vmatpush1.xpose.msra.mxu0 %v3448
        %3458 = vmatprep.subr.mxu0 0.0
        %3459 = vmatpush1.xpose.msra.mxu0 0.0
        %3460 = vmatprep.subr.mxu0 0.0
        %3461 = vmatpush1.xpose.msra.mxu0 0.0
        %3462 = vmatprep.subr.mxu0 0.0
        %3463 = vmatpush1.xpose.msra.mxu0 0.0
        %3464 = vmatprep.subr.mxu0 0.0
        %3465 = vmatpush1.xpose.msra.mxu0 0.0
        %3466 = vmatprep.subr.mxu0 0.0
        %3467 = vmatpush1.xpose.msra.mxu0 0.0
        %3468 = vmatprep.subr.mxu0 0.0
        %3469 = vmatpush1.xpose.msra.mxu0 0.0
        %3470 = vmatprep.subr.mxu0 0.0
        %3471 = vmatpush1.xpose.msra.mxu0 0.0
        %3472 = vmatprep.subr.mxu0 0.0
        %3473 = vmatpush1.xpose.msra.mxu0 0.0
        %3474 = vmatprep.subr.mxu0 0.0
        %3475 = vmatpush1.xpose.msra.mxu0 0.0
        %3476 = vmatprep.subr.mxu0 0.0
        %3477 = vmatpush1.xpose.msra.mxu0 0.0
        %3478 = vmatprep.subr.mxu0 0.0
        %3479 = vmatpush1.xpose.msra.mxu0 0.0
        %3480 = vmatprep.subr.mxu0 0.0
        %3481 = vmatpush1.xpose.msra.mxu0 0.0
        %3482 = vmatprep.subr.mxu0 0.0
        %3483 = vmatpush1.xpose.msra.mxu0 0.0
        %3484 = vmatprep.subr.mxu0 0.0
        %3485 = vmatpush1.xpose.msra.mxu0 0.0
        %3486 = vmatprep.subr.mxu0 0.0
        %3487 = vmatpush1.xpose.msra.mxu0 0.0
        %3488 = vmatprep.subr.mxu0 0.0
        %3489 = vmatpush1.xpose.msra.mxu0 0.0
        %3490 = vmatprep.subr.mxu0 0.0
        %3491 = vmatpush1.xpose.msra.mxu0 0.0
        %3492 = vmatprep.subr.mxu0 0.0
        %3493 = vmatpush1.xpose.msra.mxu0 0.0
        %3494 = vmatprep.subr.mxu0 0.0
        %3495 = vmatpush1.xpose.msra.mxu0 0.0
        %3496 = vmatprep.subr.mxu0 0.0
        %3497 = vmatpush1.xpose.msra.mxu0 0.0
        %3498 = vmatprep.subr.mxu0 0.0
        %3499 = vmatpush1.xpose.msra.mxu0 0.0
        %3500 = vmatprep.subr.mxu0 0.0
        %3501 = vmatpush1.xpose.msra.mxu0 0.0
        %3502 = vmatprep.subr.mxu0 0.0
        %3503 = vmatpush1.xpose.msra.mxu0 0.0
        %3504 = vmatprep.subr.mxu0 0.0
        %3505 = vmatpush1.xpose.msra.mxu0 0.0
        %3506 = vmatprep.subr.mxu0 0.0
        %3507 = vmatpush1.xpose.msra.mxu0 0.0
        %3508 = vmatprep.subr.mxu0 0.0
        %3509 = vmatpush1.xpose.msra.mxu0 0.0
        %3510 = vmatprep.subr.mxu0 0.0
        %3511 = vmatpush1.xpose.msra.mxu0 0.0
        %3512 = vmatprep.subr.mxu0 0.0
        %3513 = vmatpush1.xpose.msra.mxu0 0.0
        %3514 = vmatprep.mubr.f32.mxu0 0.0
        %3515 = vmatmul.mubr.f32.gmra.mrb[0].mxu0 %v3436
        %v3516 = vpop.f32.mrb[0].mxu0
        %v3517 = vadd.f32 0.0, %v3516
        %v3518 = vpop.f32.mrb[0].mxu0
        %3519 = vdwg.mxu0
        %v3520 = vmul.f32 %v3517, 0.35355338
        %v3521 = vsel %vm261, %v3520, -inf
        %3522 = vmax.xlane.f32.xlu0 %v3521
        %v3523 = vpop.xlane.xlu0 %3522
        %v3524 = vsub.f32 %v3520, %v3523
        %v3525 = vmul.f32 %v3524, 1.442695
        %v3526 = vpow.pop %v3525
        %v3528 = vsel %vm261, %v3526, 0
        %3530 = vmatprep.subr.mxu0 0.0
        %3531 = vmatpush1.msra.mxu0 %v158
        %3532 = vmatprep.subr.mxu0 0.0
        %3533 = vmatpush1.msra.mxu0 %v159
        %3534 = vmatprep.subr.mxu0 0.0
        %3535 = vmatpush1.msra.mxu0 %v160
        %3536 = vmatprep.subr.mxu0 0.0
        %3537 = vmatpush1.msra.mxu0 %v161
        %3538 = vmatprep.subr.mxu0 0.0
        %3539 = vmatpush1.msra.mxu0 0.0
        %3540 = vmatprep.subr.mxu0 0.0
        %3541 = vmatpush1.msra.mxu0 0.0
        %3542 = vmatprep.subr.mxu0 0.0
        %3543 = vmatpush1.msra.mxu0 0.0
        %3544 = vmatprep.subr.mxu0 0.0
        %3545 = vmatpush1.msra.mxu0 0.0
        %3546 = vmatprep.subr.mxu0 0.0
        %3547 = vmatpush1.msra.mxu0 0.0
        %3548 = vmatprep.subr.mxu0 0.0
        %3549 = vmatpush1.msra.mxu0 0.0
        %3550 = vmatprep.subr.mxu0 0.0
        %3551 = vmatpush1.msra.mxu0 0.0
        %3552 = vmatprep.subr.mxu0 0.0
        %3553 = vmatpush1.msra.mxu0 0.0
        %3554 = vmatprep.subr.mxu0 0.0
        %3555 = vmatpush1.msra.mxu0 0.0
        %3556 = vmatprep.subr.mxu0 0.0
        %3557 = vmatpush1.msra.mxu0 0.0
        %3558 = vmatprep.subr.mxu0 0.0
        %3559 = vmatpush1.msra.mxu0 0.0
        %3560 = vmatprep.subr.mxu0 0.0
        %3561 = vmatpush1.msra.mxu0 0.0
        %3562 = vmatprep.subr.mxu0 0.0
        %3563 = vmatpush1.msra.mxu0 0.0
        %3564 = vmatprep.subr.mxu0 0.0
        %3565 = vmatpush1.msra.mxu0 0.0
        %3566 = vmatprep.subr.mxu0 0.0
        %3567 = vmatpush1.msra.mxu0 0.0
        %3568 = vmatprep.subr.mxu0 0.0
        %3569 = vmatpush1.msra.mxu0 0.0
        %3570 = vmatprep.subr.mxu0 0.0
        %3571 = vmatpush1.msra.mxu0 0.0
        %3572 = vmatprep.subr.mxu0 0.0
        %3573 = vmatpush1.msra.mxu0 0.0
        %3574 = vmatprep.subr.mxu0 0.0
        %3575 = vmatpush1.msra.mxu0 0.0
        %3576 = vmatprep.subr.mxu0 0.0
        %3577 = vmatpush1.msra.mxu0 0.0
        %3578 = vmatprep.subr.mxu0 0.0
        %3579 = vmatpush1.msra.mxu0 0.0
        %3580 = vmatprep.subr.mxu0 0.0
        %3581 = vmatpush1.msra.mxu0 0.0
        %3582 = vmatprep.subr.mxu0 0.0
        %3583 = vmatpush1.msra.mxu0 0.0
        %3584 = vmatprep.subr.mxu0 0.0
        %3585 = vmatpush1.msra.mxu0 0.0
        %3586 = vmatprep.subr.mxu0 0.0
        %3587 = vmatpush1.msra.mxu0 0.0
        %3588 = vmatprep.subr.mxu0 0.0
        %3589 = vmatpush1.msra.mxu0 0.0
        %3590 = vmatprep.subr.mxu0 0.0
        %3591 = vmatpush1.msra.mxu0 0.0
        %3592 = vmatprep.subr.mxu0 0.0
        %3593 = vmatpush1.msra.mxu0 0.0
        %3594 = vmatprep.mubr.f32.mxu0 0.0
        %3595 = vmatmul.mubr.f32.gmra.mrb[0].mxu0 %v3528
        %v3596 = vpop.f32.mrb[0].mxu0
        %v3597 = vadd.f32 0.0, %v3596
        %v3598 = vpop.f32.mrb[0].mxu0
        %3599 = vdwg.mxu0
        %v3600 = vrcp.pop %v3597
        %v3601 = vmul.f32 %v3526, %v3600
        %3606 = vrot.lane.b32.xlu0 %v3431, 96
        %v3607 = vpop.permute.xlu0 %3606
        %3608 = vrot.lane.b32.xlu0 %v3432, 96
        %v3609 = vpop.permute.xlu0 %3608
        %3610 = vrot.lane.b32.xlu0 %v3433, 96
        %v3611 = vpop.permute.xlu0 %3610
        %3612 = vrot.lane.b32.xlu0 %v3434, 96
        %v3613 = vpop.permute.xlu0 %3612
        %v3619 = vsel %vm261, %v3601, 0
        %3621 = vmatprep.subr.mxu0 0.0
        %3622 = vmatpush1.msra.mxu0 %v3607
        %3623 = vmatprep.subr.mxu0 0.0
        %3624 = vmatpush1.msra.mxu0 %v3609
        %3625 = vmatprep.subr.mxu0 0.0
        %3626 = vmatpush1.msra.mxu0 %v3611
        %3627 = vmatprep.subr.mxu0 0.0
        %3628 = vmatpush1.msra.mxu0 %v3613
        %3629 = vmatprep.subr.mxu0 0.0
        %3630 = vmatpush1.msra.mxu0 0.0
        %3631 = vmatprep.subr.mxu0 0.0
        %3632 = vmatpush1.msra.mxu0 0.0
        %3633 = vmatprep.subr.mxu0 0.0
        %3634 = vmatpush1.msra.mxu0 0.0
        %3635 = vmatprep.subr.mxu0 0.0
        %3636 = vmatpush1.msra.mxu0 0.0
        %3637 = vmatprep.subr.mxu0 0.0
        %3638 = vmatpush1.msra.mxu0 0.0
        %3639 = vmatprep.subr.mxu0 0.0
        %3640 = vmatpush1.msra.mxu0 0.0
        %3641 = vmatprep.subr.mxu0 0.0
        %3642 = vmatpush1.msra.mxu0 0.0
        %3643 = vmatprep.subr.mxu0 0.0
        %3644 = vmatpush1.msra.mxu0 0.0
        %3645 = vmatprep.subr.mxu0 0.0
        %3646 = vmatpush1.msra.mxu0 0.0
        %3647 = vmatprep.subr.mxu0 0.0
        %3648 = vmatpush1.msra.mxu0 0.0
        %3649 = vmatprep.subr.mxu0 0.0
        %3650 = vmatpush1.msra.mxu0 0.0
        %3651 = vmatprep.subr.mxu0 0.0
        %3652 = vmatpush1.msra.mxu0 0.0
        %3653 = vmatprep.subr.mxu0 0.0
        %3654 = vmatpush1.msra.mxu0 0.0
        %3655 = vmatprep.subr.mxu0 0.0
        %3656 = vmatpush1.msra.mxu0 0.0
        %3657 = vmatprep.subr.mxu0 0.0
        %3658 = vmatpush1.msra.mxu0 0.0
        %3659 = vmatprep.subr.mxu0 0.0
        %3660 = vmatpush1.msra.mxu0 0.0
        %3661 = vmatprep.subr.mxu0 0.0
        %3662 = vmatpush1.msra.mxu0 0.0
        %3663 = vmatprep.subr.mxu0 0.0
        %3664 = vmatpush1.msra.mxu0 0.0
        %3665 = vmatprep.subr.mxu0 0.0
        %3666 = vmatpush1.msra.mxu0 0.0
        %3667 = vmatprep.subr.mxu0 0.0
        %3668 = vmatpush1.msra.mxu0 0.0
        %3669 = vmatprep.subr.mxu0 0.0
        %3670 = vmatpush1.msra.mxu0 0.0
        %3671 = vmatprep.subr.mxu0 0.0
        %3672 = vmatpush1.msra.mxu0 0.0
        %3673 = vmatprep.subr.mxu0 0.0
        %3674 = vmatpush1.msra.mxu0 0.0
        %3675 = vmatprep.subr.mxu0 0.0
        %3676 = vmatpush1.msra.mxu0 0.0
        %3677 = vmatprep.subr.mxu0 0.0
        %3678 = vmatpush1.msra.mxu0 0.0
        %3679 = vmatprep.subr.mxu0 0.0
        %3680 = vmatpush1.msra.mxu0 0.0
        %3681 = vmatprep.subr.mxu0 0.0
        %3682 = vmatpush1.msra.mxu0 0.0
        %3683 = vmatprep.subr.mxu0 0.0
        %3684 = vmatpush1.msra.mxu0 0.0
        %3685 = vmatprep.mubr.f32.mxu0 0.0
        %3686 = vmatmul.mubr.f32.gmra.mrb[0].mxu0 %v3619
        %v3687 = vpop.f32.mrb[0].mxu0
        %v3688 = vadd.f32 0.0, %v3687
        %v3689 = vpop.f32.mrb[0].mxu0
        %3690 = vdwg.mxu0
        %v3691 = vlaneseq
        %v3692 = vshrl.u32 %v3691, 7
        %v3693 = vsub.s32 0, %v3692
        %v3694 = vrot.slane %v3426, %v3693
        %v3696 = vsel %vm261, %v3688, 0
        %3698 = vmatprep.subr.mxu0 0.0
        %3699 = vmatpush1.msra.mxu0 %v3422
        %3700 = vmatprep.subr.mxu0 0.0
        %3701 = vmatpush1.msra.mxu0 %v3423
        %3702 = vmatprep.subr.mxu0 0.0
        %3703 = vmatpush1.msra.mxu0 %v3424
        %3704 = vmatprep.subr.mxu0 0.0
        %3705 = vmatpush1.msra.mxu0 %v3425
        %3706 = vmatprep.subr.mxu0 0.0
        %3707 = vmatpush1.msra.mxu0 0.0
        %3708 = vmatprep.subr.mxu0 0.0
        %3709 = vmatpush1.msra.mxu0 0.0
        %3710 = vmatprep.subr.mxu0 0.0
        %3711 = vmatpush1.msra.mxu0 0.0
        %3712 = vmatprep.subr.mxu0 0.0
        %3713 = vmatpush1.msra.mxu0 0.0
        %3714 = vmatprep.subr.mxu0 0.0
        %3715 = vmatpush1.msra.mxu0 0.0
        %3716 = vmatprep.subr.mxu0 0.0
        %3717 = vmatpush1.msra.mxu0 0.0
        %3718 = vmatprep.subr.mxu0 0.0
        %3719 = vmatpush1.msra.mxu0 0.0
        %3720 = vmatprep.subr.mxu0 0.0
        %3721 = vmatpush1.msra.mxu0 0.0
        %3722 = vmatprep.subr.mxu0 0.0
        %3723 = vmatpush1.msra.mxu0 0.0
        %3724 = vmatprep.subr.mxu0 0.0
        %3725 = vmatpush1.msra.mxu0 0.0
        %3726 = vmatprep.subr.mxu0 0.0
        %3727 = vmatpush1.msra.mxu0 0.0
        %3728 = vmatprep.subr.mxu0 0.0
        %3729 = vmatpush1.msra.mxu0 0.0
        %3730 = vmatprep.subr.mxu0 0.0
        %3731 = vmatpush1.msra.mxu0 0.0
        %3732 = vmatprep.subr.mxu0 0.0
        %3733 = vmatpush1.msra.mxu0 0.0
        %3734 = vmatprep.subr.mxu0 0.0
        %3735 = vmatpush1.msra.mxu0 0.0
        %3736 = vmatprep.subr.mxu0 0.0
        %3737 = vmatpush1.msra.mxu0 0.0
        %3738 = vmatprep.subr.mxu0 0.0
        %3739 = vmatpush1.msra.mxu0 0.0
        %3740 = vmatprep.subr.mxu0 0.0
        %3741 = vmatpush1.msra.mxu0 0.0
        %3742 = vmatprep.subr.mxu0 0.0
        %3743 = vmatpush1.msra.mxu0 0.0
        %3744 = vmatprep.subr.mxu0 0.0
        %3745 = vmatpush1.msra.mxu0 0.0
        %3746 = vmatprep.subr.mxu0 0.0
        %3747 = vmatpush1.msra.mxu0 0.0
        %3748 = vmatprep.subr.mxu0 0.0
        %3749 = vmatpush1.msra.mxu0 0.0
        %3750 = vmatprep.subr.mxu0 0.0
        %3751 = vmatpush1.msra.mxu0 0.0
        %3752 = vmatprep.subr.mxu0 0.0
        %3753 = vmatpush1.msra.mxu0 0.0
        %3754 = vmatprep.subr.mxu0 0.0
        %3755 = vmatpush1.msra.mxu0 0.0
        %3756 = vmatprep.subr.mxu0 0.0
        %3757 = vmatpush1.msra.mxu0 0.0
        %3758 = vmatprep.subr.mxu0 0.0
        %3759 = vmatpush1.msra.mxu0 0.0
        %3760 = vmatprep.subr.mxu0 0.0
        %3761 = vmatpush1.msra.mxu0 0.0
        %3762 = vmatprep.mubr.f32.mxu0 0.0
        %3763 = vmatmul.mubr.f32.gmra.mrb[0].mxu0 %v3696
        %v3764 = vpop.f32.mrb[0].mxu0
        %v3765 = vadd.f32 %v3694, %v3764
        %v3766 = vpop.f32.mrb[0].mxu0
        %3767 = vdwg.mxu0
        %v3768 = vadd.f32 %v3260, %v3765
        %v3769 = vld [vmem:[#allocation2 + $0x240] sm:$0x1]
        %v3770 = vld [vmem:[#allocation2 + $0x238] sm:$0x1]
        %v3771 = vsel %vm261, %v3768, 0.0
        %3772 = vadd.xlane.f32.xlu0 %v3771
        %v3773 = vpop.xlane.xlu0 %3772
        %v3774 = vmul.f32 %v3773, %v723
        %v3775 = vsub.f32 %v3768, %v3774
        %v3776 = vmul.f32 %v3775, %v3775
        %v3777 = vsel %vm261, %v3776, 0.0
        %3778 = vadd.xlane.f32.xlu0 %v3777
        %v3779 = vpop.xlane.xlu0 %3778
        %v3780 = vmul.f32 %v3779, %v723
        %v3781 = vadd.f32 %v3780, 1e-05
        %v3782 = vrsqrt.pop %v3781
        %v3783 = vmul.f32 %v3775, %v3782
        %v3784 = vlaneseq
        %v3785 = vshrl.u32 %v3784, 7
        %v3786 = vsub.s32 0, %v3785
        %v3787 = vrot.slane %v3769, %v3786
        %v3788 = vmul.f32 %v3783, %v3787
        %v3789 = vlaneseq
        %v3790 = vshrl.u32 %v3789, 7
        %v3791 = vsub.s32 0, %v3790
        %v3792 = vrot.slane %v3770, %v3791
        %v3793 = vadd.f32 %v3788, %v3792
        %v3794 = vld [vmem:[#allocation2 + $0x2a8] sm:$0xff]
        %v3795 = vld [vmem:[#allocation2 + $0x2b0] sm:$0xff]
        %v3796 = vld [vmem:[#allocation2 + $0x2b8] sm:$0xff]
        %v3797 = vld [vmem:[#allocation2 + $0x2c0] sm:$0xff]
        %v3798 = vld [vmem:[#allocation2 + $0x1a0] sm:$0x1]
        %v3799 = vlaneseq
        %v3800 = vshrl.u32 %v3799, 7
        %v3801 = vsub.s32 0, %v3800
        %v3802 = vrot.slane %v3798, %v3801
        %v3804 = vsel %vm261, %v3793, 0
        %3806 = vmatprep.subr.mxu0 0.0
        %3807 = vmatpush1.msra.mxu0 %v3794
        %3808 = vmatprep.subr.mxu0 0.0
        %3809 = vmatpush1.msra.mxu0 %v3795
        %3810 = vmatprep.subr.mxu0 0.0
        %3811 = vmatpush1.msra.mxu0 %v3796
        %3812 = vmatprep.subr.mxu0 0.0
        %3813 = vmatpush1.msra.mxu0 %v3797
        %3814 = vmatprep.subr.mxu0 0.0
        %3815 = vmatpush1.msra.mxu0 0.0
        %3816 = vmatprep.subr.mxu0 0.0
        %3817 = vmatpush1.msra.mxu0 0.0
        %3818 = vmatprep.subr.mxu0 0.0
        %3819 = vmatpush1.msra.mxu0 0.0
        %3820 = vmatprep.subr.mxu0 0.0
        %3821 = vmatpush1.msra.mxu0 0.0
        %3822 = vmatprep.subr.mxu0 0.0
        %3823 = vmatpush1.msra.mxu0 0.0
        %3824 = vmatprep.subr.mxu0 0.0
        %3825 = vmatpush1.msra.mxu0 0.0
        %3826 = vmatprep.subr.mxu0 0.0
        %3827 = vmatpush1.msra.mxu0 0.0
        %3828 = vmatprep.subr.mxu0 0.0
        %3829 = vmatpush1.msra.mxu0 0.0
        %3830 = vmatprep.subr.mxu0 0.0
        %3831 = vmatpush1.msra.mxu0 0.0
        %3832 = vmatprep.subr.mxu0 0.0
        %3833 = vmatpush1.msra.mxu0 0.0
        %3834 = vmatprep.subr.mxu0 0.0
        %3835 = vmatpush1.msra.mxu0 0.0
        %3836 = vmatprep.subr.mxu0 0.0
        %3837 = vmatpush1.msra.mxu0 0.0
        %3838 = vmatprep.subr.mxu0 0.0
        %3839 = vmatpush1.msra.mxu0 0.0
        %3840 = vmatprep.subr.mxu0 0.0
        %3841 = vmatpush1.msra.mxu0 0.0
        %3842 = vmatprep.subr.mxu0 0.0
        %3843 = vmatpush1.msra.mxu0 0.0
        %3844 = vmatprep.subr.mxu0 0.0
        %3845 = vmatpush1.msra.mxu0 0.0
        %3846 = vmatprep.subr.mxu0 0.0
        %3847 = vmatpush1.msra.mxu0 0.0
        %3848 = vmatprep.subr.mxu0 0.0
        %3849 = vmatpush1.msra.mxu0 0.0
        %3850 = vmatprep.subr.mxu0 0.0
        %3851 = vmatpush1.msra.mxu0 0.0
        %3852 = vmatprep.subr.mxu0 0.0
        %3853 = vmatpush1.msra.mxu0 0.0
        %3854 = vmatprep.subr.mxu0 0.0
        %3855 = vmatpush1.msra.mxu0 0.0
        %3856 = vmatprep.subr.mxu0 0.0
        %3857 = vmatpush1.msra.mxu0 0.0
        %3858 = vmatprep.subr.mxu0 0.0
        %3859 = vmatpush1.msra.mxu0 0.0
        %3860 = vmatprep.subr.mxu0 0.0
        %3861 = vmatpush1.msra.mxu0 0.0
        %3862 = vmatprep.subr.mxu0 0.0
        %3863 = vmatpush1.msra.mxu0 0.0
        %3864 = vmatprep.subr.mxu0 0.0
        %3865 = vmatpush1.msra.mxu0 0.0
        %3866 = vmatprep.subr.mxu0 0.0
        %3867 = vmatpush1.msra.mxu0 0.0
        %3868 = vmatprep.subr.mxu0 0.0
        %3869 = vmatpush1.msra.mxu0 0.0
        %3870 = vmatprep.mubr.f32.mxu0 0.0
        %3871 = vmatmul.mubr.f32.gmra.mrb[0].mxu0 %v3804
        %v3872 = vpop.f32.mrb[0].mxu0
        %v3873 = vadd.f32 %v3802, %v3872
        %v3874 = vpop.f32.mrb[0].mxu0
        %3875 = vdwg.mxu0
        %v3876 = vmax.f32 %v3873, 0.0
        %v3877 = vld [vmem:[#allocation2 + $0x2c8] sm:$0xff]
        %v3878 = vld [vmem:[#allocation2 + $0x2d0] sm:$0xff]
        %v3879 = vld [vmem:[#allocation2 + $0x2d8] sm:$0xff]
        %v3880 = vld [vmem:[#allocation2 + $0x2e0] sm:$0xff]
        %v3881 = vld [vmem:[#allocation2 + $0x1a8] sm:$0x1]
        %v3882 = vlaneseq
        %v3883 = vshrl.u32 %v3882, 7
        %v3884 = vsub.s32 0, %v3883
        %v3885 = vrot.slane %v3881, %v3884
        %v3887 = vsel %vm261, %v3876, 0
        %3889 = vmatprep.subr.mxu0 0.0
        %3890 = vmatpush1.msra.mxu0 %v3877
        %3891 = vmatprep.subr.mxu0 0.0
        %3892 = vmatpush1.msra.mxu0 %v3878
        %3893 = vmatprep.subr.mxu0 0.0
        %3894 = vmatpush1.msra.mxu0 %v3879
        %3895 = vmatprep.subr.mxu0 0.0
        %3896 = vmatpush1.msra.mxu0 %v3880
        %3897 = vmatprep.subr.mxu0 0.0
        %3898 = vmatpush1.msra.mxu0 0.0
        %3899 = vmatprep.subr.mxu0 0.0
        %3900 = vmatpush1.msra.mxu0 0.0
        %3901 = vmatprep.subr.mxu0 0.0
        %3902 = vmatpush1.msra.mxu0 0.0
        %3903 = vmatprep.subr.mxu0 0.0
        %3904 = vmatpush1.msra.mxu0 0.0
        %3905 = vmatprep.subr.mxu0 0.0
        %3906 = vmatpush1.msra.mxu0 0.0
        %3907 = vmatprep.subr.mxu0 0.0
        %3908 = vmatpush1.msra.mxu0 0.0
        %3909 = vmatprep.subr.mxu0 0.0
        %3910 = vmatpush1.msra.mxu0 0.0
        %3911 = vmatprep.subr.mxu0 0.0
        %3912 = vmatpush1.msra.mxu0 0.0
        %3913 = vmatprep.subr.mxu0 0.0
        %3914 = vmatpush1.msra.mxu0 0.0
        %3915 = vmatprep.subr.mxu0 0.0
        %3916 = vmatpush1.msra.mxu0 0.0
        %3917 = vmatprep.subr.mxu0 0.0
        %3918 = vmatpush1.msra.mxu0 0.0
        %3919 = vmatprep.subr.mxu0 0.0
        %3920 = vmatpush1.msra.mxu0 0.0
        %3921 = vmatprep.subr.mxu0 0.0
        %3922 = vmatpush1.msra.mxu0 0.0
        %3923 = vmatprep.subr.mxu0 0.0
        %3924 = vmatpush1.msra.mxu0 0.0
        %3925 = vmatprep.subr.mxu0 0.0
        %3926 = vmatpush1.msra.mxu0 0.0
        %3927 = vmatprep.subr.mxu0 0.0
        %3928 = vmatpush1.msra.mxu0 0.0
        %3929 = vmatprep.subr.mxu0 0.0
        %3930 = vmatpush1.msra.mxu0 0.0
        %3931 = vmatprep.subr.mxu0 0.0
        %3932 = vmatpush1.msra.mxu0 0.0
        %3933 = vmatprep.subr.mxu0 0.0
        %3934 = vmatpush1.msra.mxu0 0.0
        %3935 = vmatprep.subr.mxu0 0.0
        %3936 = vmatpush1.msra.mxu0 0.0
        %3937 = vmatprep.subr.mxu0 0.0
        %3938 = vmatpush1.msra.mxu0 0.0
        %3939 = vmatprep.subr.mxu0 0.0
        %3940 = vmatpush1.msra.mxu0 0.0
        %3941 = vmatprep.subr.mxu0 0.0
        %3942 = vmatpush1.msra.mxu0 0.0
        %3943 = vmatprep.subr.mxu0 0.0
        %3944 = vmatpush1.msra.mxu0 0.0
        %3945 = vmatprep.subr.mxu0 0.0
        %3946 = vmatpush1.msra.mxu0 0.0
        %3947 = vmatprep.subr.mxu0 0.0
        %3948 = vmatpush1.msra.mxu0 0.0
        %3949 = vmatprep.subr.mxu0 0.0
        %3950 = vmatpush1.msra.mxu0 0.0
        %3951 = vmatprep.subr.mxu0 0.0
        %3952 = vmatpush1.msra.mxu0 0.0
        %3953 = vmatprep.mubr.f32.mxu0 0.0
        %3954 = vmatmul.mubr.f32.gmra.mrb[0].mxu0 %v3887
        %v3955 = vpop.f32.mrb[0].mxu0
        %v3956 = vadd.f32 %v3885, %v3955
        %v3957 = vpop.f32.mrb[0].mxu0
        %3958 = vdwg.mxu0
        %v3959 = vadd.f32 %v3793, %v3956
        %v3960 = vld [vmem:[#allocation2 + $0x250] sm:$0x1]
        %v3961 = vld [vmem:[#allocation2 + $0x248] sm:$0x1]
        %v3962 = vsel %vm261, %v3959, 0.0
        %3963 = vadd.xlane.f32.xlu0 %v3962
        %v3964 = vpop.xlane.xlu0 %3963
        %v3965 = vmul.f32 %v3964, %v723
        %v3966 = vsub.f32 %v3959, %v3965
        %v3967 = vmul.f32 %v3966, %v3966
        %v3968 = vsel %vm261, %v3967, 0.0
        %3969 = vadd.xlane.f32.xlu0 %v3968
        %v3970 = vpop.xlane.xlu0 %3969
        %v3971 = vmul.f32 %v3970, %v723
        %v3972 = vadd.f32 %v3971, 1e-05
        %v3973 = vrsqrt.pop %v3972
        %v3974 = vmul.f32 %v3966, %v3973
        %v3975 = vlaneseq
        %v3976 = vshrl.u32 %v3975, 7
        %v3977 = vsub.s32 0, %v3976
        %v3978 = vrot.slane %v3960, %v3977
        %v3979 = vmul.f32 %v3974, %v3978
        %v3980 = vlaneseq
        %v3981 = vshrl.u32 %v3980, 7
        %v3982 = vsub.s32 0, %v3981
        %v3983 = vrot.slane %v3961, %v3982
        %v3984 = vadd.f32 %v3979, %v3983
        %v3985 = vld [vmem:[#allocation2 + $0x2f0] sm:$0x1]
        %v3986 = vld [vmem:[#allocation2 + $0x2e8] sm:$0x1]
        %v3987 = vsel %vm261, %v3984, 0.0
        %3988 = vadd.xlane.f32.xlu0 %v3987
        %v3989 = vpop.xlane.xlu0 %3988
        %v3990 = vmul.f32 %v3989, %v723
        %v3991 = vsub.f32 %v3984, %v3990
        %v3992 = vmul.f32 %v3991, %v3991
        %v3993 = vsel %vm261, %v3992, 0.0
        %3994 = vadd.xlane.f32.xlu0 %v3993
        %v3995 = vpop.xlane.xlu0 %3994
        %v3996 = vmul.f32 %v3995, %v723
        %v3997 = vadd.f32 %v3996, 1e-05
        %v3998 = vrsqrt.pop %v3997
        %v3999 = vmul.f32 %v3991, %v3998
        %v4000 = vlaneseq
        %v4001 = vshrl.u32 %v4000, 7
        %v4002 = vsub.s32 0, %v4001
        %v4003 = vrot.slane %v3985, %v4002
        %v4004 = vmul.f32 %v3999, %v4003
        %v4005 = vlaneseq
        %v4006 = vshrl.u32 %v4005, 7
        %v4007 = vsub.s32 0, %v4006
        %v4008 = vrot.slane %v3986, %v4007
        %v4009 = vadd.f32 %v4004, %v4008
        %v4010 = vld [vmem:[#allocation2 + $0x38] sm:$0xff]
        %v4011 = vld [vmem:[#allocation2 + $0x40] sm:$0xff]
        %v4012 = vld [vmem:[#allocation2 + $0x48] sm:$0xff]
        %v4013 = vld [vmem:[#allocation2 + $0x50] sm:$0xff]
        %v4014 = vld [vmem:[#allocation2 + $0x30] sm:$0x1]
        %s4016 = vtos %v4014
        %v4017 = vstv %s4016
        %v4020 = vsel %vm261, %v4009, 0
        %4022 = vmatprep.subr.mxu0 0.0
        %4023 = vmatpush1.msra.mxu0 %v4010
        %4024 = vmatprep.subr.mxu0 0.0
        %4025 = vmatpush1.msra.mxu0 %v4011
        %4026 = vmatprep.subr.mxu0 0.0
        %4027 = vmatpush1.msra.mxu0 %v4012
        %4028 = vmatprep.subr.mxu0 0.0
        %4029 = vmatpush1.msra.mxu0 %v4013
        %4030 = vmatprep.subr.mxu0 0.0
        %4031 = vmatpush1.msra.mxu0 0.0
        %4032 = vmatprep.subr.mxu0 0.0
        %4033 = vmatpush1.msra.mxu0 0.0
        %4034 = vmatprep.subr.mxu0 0.0
        %4035 = vmatpush1.msra.mxu0 0.0
        %4036 = vmatprep.subr.mxu0 0.0
        %4037 = vmatpush1.msra.mxu0 0.0
        %4038 = vmatprep.subr.mxu0 0.0
        %4039 = vmatpush1.msra.mxu0 0.0
        %4040 = vmatprep.subr.mxu0 0.0
        %4041 = vmatpush1.msra.mxu0 0.0
        %4042 = vmatprep.subr.mxu0 0.0
        %4043 = vmatpush1.msra.mxu0 0.0
        %4044 = vmatprep.subr.mxu0 0.0
        %4045 = vmatpush1.msra.mxu0 0.0
        %4046 = vmatprep.subr.mxu0 0.0
        %4047 = vmatpush1.msra.mxu0 0.0
        %4048 = vmatprep.subr.mxu0 0.0
        %4049 = vmatpush1.msra.mxu0 0.0
        %4050 = vmatprep.subr.mxu0 0.0
        %4051 = vmatpush1.msra.mxu0 0.0
        %4052 = vmatprep.subr.mxu0 0.0
        %4053 = vmatpush1.msra.mxu0 0.0
        %4054 = vmatprep.subr.mxu0 0.0
        %4055 = vmatpush1.msra.mxu0 0.0
        %4056 = vmatprep.subr.mxu0 0.0
        %4057 = vmatpush1.msra.mxu0 0.0
        %4058 = vmatprep.subr.mxu0 0.0
        %4059 = vmatpush1.msra.mxu0 0.0
        %4060 = vmatprep.subr.mxu0 0.0
        %4061 = vmatpush1.msra.mxu0 0.0
        %4062 = vmatprep.subr.mxu0 0.0
        %4063 = vmatpush1.msra.mxu0 0.0
        %4064 = vmatprep.subr.mxu0 0.0
        %4065 = vmatpush1.msra.mxu0 0.0
        %4066 = vmatprep.subr.mxu0 0.0
        %4067 = vmatpush1.msra.mxu0 0.0
        %4068 = vmatprep.subr.mxu0 0.0
        %4069 = vmatpush1.msra.mxu0 0.0
        %4070 = vmatprep.subr.mxu0 0.0
        %4071 = vmatpush1.msra.mxu0 0.0
        %4072 = vmatprep.subr.mxu0 0.0
        %4073 = vmatpush1.msra.mxu0 0.0
        %4074 = vmatprep.subr.mxu0 0.0
        %4075 = vmatpush1.msra.mxu0 0.0
        %4076 = vmatprep.subr.mxu0 0.0
        %4077 = vmatpush1.msra.mxu0 0.0
        %4078 = vmatprep.subr.mxu0 0.0
        %4079 = vmatpush1.msra.mxu0 0.0
        %4080 = vmatprep.subr.mxu0 0.0
        %4081 = vmatpush1.msra.mxu0 0.0
        %4082 = vmatprep.subr.mxu0 0.0
        %4083 = vmatpush1.msra.mxu0 0.0
        %4084 = vmatprep.subr.mxu0 0.0
        %4085 = vmatpush1.msra.mxu0 0.0
        %4086 = vmatprep.mubr.f32.mxu0 0.0
        %4087 = vmatmul.mubr.f32.gmra.mrb[0].mxu0 %v4020
        %v4088 = vpop.f32.mrb[0].mxu0
        %v4089 = vadd.f32 %v4017, %v4088
        %v4090 = vpop.f32.mrb[0].mxu0
        %4091 = vdwg.mxu0
        %v4092 = vmul.f32 %v4089, 0.5
        %v4093 = vtanh.pop %v4092
        %v4094 = vadd.f32 %v4093, 1.0
        %v4095 = vmul.f32 %v4094, 0.5
        %v4096 = vmul.f32 %v4014, 0.5
        %v4097 = vtanh.pop %v4096
        %v4098 = vadd.f32 %v4097, 1.0
        %v4099 = vmul.f32 %v4098, 0.5
        %4101 = vset.pattern.permute.xlu0 0
        %4102 = vperm.xlu0 %4101, %v4099
        %v4103 = vpop.permute.xlu0 %4102
        %v4105 = vadd.f32 %v4103, 0.0
        %v4106 = vlaneseq
        %vm4107 = vcmp.ge.s32.totalorder %v4106, 0
        %vm4108 = vcmp.lt.s32.totalorder %v4106, 36
        %vm4109 = vmand %vm4107, %vm4108
        %4110 = vst.msk [vmem:[%s153] sm:$0x1] %vm4109, %v4095
        %v4113 = vunpack.c.l.s4 1966171168
        %v4114 = vunpack.c.0.s8 %v4113
        %v4115 = vlaneseq
        %v4116 = vshrl.u32 %v4115, 7
        %v4117 = vsub.s32 %v4114, %v4116
        %v4118 = vrot.slane %v4095, %v4117
        %v4119 = vcombine.high %v4118, %v4118
        %v4121 = vunpack.c.l.s4 1966171168
        %v4122 = vunpack.c.0.s8 %v4121
        %v4123 = vlaneseq
        %v4124 = vshrl.u32 %v4123, 7
        %v4125 = vsub.s32 %v4122, %v4124
        %v4126 = vrot.slane %v4118, %v4125
        %v4128 = vunpack.c.l.s4 1966171168
        %v4129 = vunpack.c.0.s8 %v4128
        %v4130 = vlaneseq
        %v4131 = vshrl.u32 %v4130, 7
        %v4132 = vsub.s32 %v4129, %v4131
        %v4133 = vrot.slane %v4119, %v4132
        %4134 = vrot.lane.b32.xlu0 %v4133, 36
        %v4135 = vpop.permute.xlu0 %4134
        %vm4137 = vcmp.ge.s32.totalorder %v4106, 36
        %vm4138 = vcmp.lt.s32.totalorder %v4106, 72
        %vm4139 = vmand %vm4137, %vm4138
        %4140 = vst.msk [vmem:[%s153] sm:$0x1] %vm4139, %v4135
        %v4141 = vcombine.high %v4126, %v4126
        %4142 = vrot.lane.b32.xlu0 %v4141, 72
        %v4143 = vpop.permute.xlu0 %4142
        %vm4145 = vcmp.ge.s32.totalorder %v4106, 72
        %vm4146 = vcmp.lt.s32.totalorder %v4106, 108
        %vm4147 = vmand %vm4145, %vm4146
        %4148 = vst.msk [vmem:[%s153] sm:$0x1] %vm4147, %v4143
        %v4149 = vcombine.high %v4133, %v4133
        %4150 = vrot.lane.b32.xlu0 %v4149, 108
        %v4151 = vpop.permute.xlu0 %4150
        %v4152 = vrot.slane %v4151, 7
        %vm4153 = vcmask 883712
        %v4154 = vsel %vm4153, %v4152, %v4151
        %vm4156 = vcmp.ge.s32.totalorder %v4106, 108
        %vm4157 = vcmp.lt.s32.totalorder %v4106, 144
        %vm4158 = vmand %vm4156, %vm4157
        %4159 = vst.msk [vmem:[%s153] sm:$0x3] %vm4158, %v4154
        %v4160 = vcombine.high %v4095, %v4095
        %v4162 = vunpack.c.l.s4 1966171168
        %v4163 = vunpack.c.0.s8 %v4162
        %v4164 = vlaneseq
        %v4165 = vshrl.u32 %v4164, 7
        %v4166 = vsub.s32 %v4163, %v4165
        %v4167 = vrot.slane %v4160, %v4166
        %v4169 = vunpack.c.l.s4 1966171168
        %v4170 = vunpack.c.0.s8 %v4169
        %v4171 = vlaneseq
        %v4172 = vshrl.u32 %v4171, 7
        %v4173 = vsub.s32 %v4170, %v4172
        %v4174 = vrot.slane %v4167, %v4173
        %4175 = vrot.lane.b32.xlu0 %v4174, 16
        %v4176 = vpop.permute.xlu0 %4175
        %vm4178 = vcmp.ge.s32.totalorder %v4106, 16
        %vm4179 = vcmp.lt.s32.totalorder %v4106, 52
        %vm4180 = vmand %vm4178, %vm4179
        %4181 = vst.msk [vmem:[%s153 + $0x1] sm:$0x1] %vm4180, %v4176
        %v4182 = vcombine.high %v4167, %v4167
        %v4184 = vunpack.c.l.s4 1966171168
        %v4185 = vunpack.c.0.s8 %v4184
        %v4186 = vlaneseq
        %v4187 = vshrl.u32 %v4186, 7
        %v4188 = vsub.s32 %v4185, %v4187
        %v4189 = vrot.slane %v4182, %v4188
        %4190 = vrot.lane.b32.xlu0 %v4189, 52
        %v4191 = vpop.permute.xlu0 %4190
        %vm4193 = vcmp.ge.s32.totalorder %v4106, 52
        %vm4194 = vcmp.lt.s32.totalorder %v4106, 88
        %vm4195 = vmand %vm4193, %vm4194
        %4196 = vst.msk [vmem:[%s153 + $0x1] sm:$0x1] %vm4195, %v4191
        %v4197 = vcombine.high %v4174, %v4174
        %4198 = vrot.lane.b32.xlu0 %v4197, 88
        %v4199 = vpop.permute.xlu0 %4198
        %vm4201 = vcmp.ge.s32.totalorder %v4106, 88
        %vm4202 = vcmp.lt.s32.totalorder %v4106, 124
        %vm4203 = vmand %vm4201, %vm4202
        %4204 = vst.msk [vmem:[%s153 + $0x1] sm:$0x1] %vm4203, %v4199
        %v4205 = vcombine.high %v4189, %v4189
        %4206 = vrot.lane.b32.xlu0 %v4205, 124
        %v4207 = vpop.permute.xlu0 %4206
        %v4208 = vrot.slane %v4207, 7
        %vm4209 = vcmask 1014784
        %v4210 = vsel %vm4209, %v4208, %v4207
        %vm4212 = vcmp.ge.s32.totalorder %v4106, 124
        %vm4213 = vcmp.lt.s32.totalorder %v4106, 160
        %vm4214 = vmand %vm4212, %vm4213
        %4215 = vst.msk [vmem:[%s153 + $0x1] sm:$0x3] %vm4214, %v4210
        %vm4216 = vcmp.ge.s32.totalorder %v4106, 32
        %vm4217 = vmand %vm4216, %vm4179
        %4218 = vst.msk [vmem:[%s153 + $0x2] sm:$0x1] %vm4217, %v4105
        %p4219 = scmp.lt.s32.totalorder %s14, 1
        %s4220 = scalar_select %p4219, %s14, 1
        %s4221 = smul.addr %s4220, 3
        %s4222 = scalar_lea.vmem %s2, %s4221
        // Predicated region
        $region33: #{forward.1} parent=27 // pred_check
          %p4223 = pneg %p79
        $region34: #{forward.1} parent=27 // pred_check_branch
          %4225 = sbr.rel (%p4223) target = $region36
        $region35: #{forward.1} parent=27 // pred_region
          _
        $region36: #{forward.1} parent=27 // pred_fallthru
          _
      $region28: #{forward.1} parent=5 // pred_fallthru
        _
      %p4226 = scmp.le.s32.totalorder 2, %s9
      // Predicated region
      $region37: #{forward.1} parent=5 // pred_check
        %p4227 = pneg %p4226
      $region38: #{forward.1} parent=5 // pred_check_branch
        %4229 = sbr.rel (%p4227) target = $region40
      $region39: #{forward.1} parent=5 // pred_region
        %s4230 = ssub.s32 %s9, 2
        // Predicated region
        $region41: #{forward.1} parent=39 // pred_check
          %p4231 = pneg %p85
        $region42: #{forward.1} parent=39 // pred_check_branch
          %4233 = sbr.rel (%p4231) target = $region44
        $region43: #{forward.1} parent=39 // pred_region
          %p4234 = scmp.lt.s32.totalorder %s15, 1
          %s4235 = scalar_select %p4234, %s15, 1
          %s4236 = smul.addr %s4235, 3
          %s4237 = scalar_lea.vmem %s2, %s4236
        $region44: #{forward.1} parent=39 // pred_fallthru
          _
      $region40: #{forward.1} parent=5 // pred_fallthru
        _
    $region6: #{forward.1} parent=1 // loop_footer
      %s13 = sadd.s32 1, %s9
    $region7: #{forward.1} parent=1 // loop_footer_branch
      %8 = sbr.rel target = $region3
    $region8: #{forward.1} parent=1 // loop_exit
      _
    %4238 = vsyncpa [#allocation3], 1
    %s4239 = scalar_lea.sflag [#allocation3], 1
    %4240 = vsyncpa %s4239, 1

</llo_original>
